<compile_context>
chip_gen: v7x
topology: tpu7x:2x2x1
jax: 0.10.0
libtpu: 0.0.40
codegen_flags: <defaults>
</compile_context>

<pallas_src>
import numpy as np
import jax
import jax.numpy as jnp
from jax import lax
from jax.experimental import pallas as pl
from jax.experimental.pallas import tpu as pltpu

BN_EPS = 1e-5


def _unet_fused_kernel(x_ref, w1_ref, b1_ref, wf_ref, bias_ref, o_ref, hp_ref, ph_ref):
    # x_ref   : (NB, H+2, W+2, 1)       zero-padded single-channel input
    # w1_ref  : (9, C)  f32             conv1 weight with eval-mode BN folded, row = 3*di + dj
    # b1_ref  : (1, C)  f32             folded conv1/BN bias
    # wf_ref  : (4, 4*C, M) bf16        fused (upconv o conv2) weights, phase p = 2*r + s,
    #                                   K rows ordered (dI, dJ, c)
    # bias_ref: (4, NB*Hh*Wh, M) f32    fused bias (exact w.r.t. conv2's zero padding), per phase
    # o_ref   : (4, NB*Hh*Wh, M) f32    phase-separated output
    # hp_ref  : VMEM (NB, Hh, W, C)     row-pooled scratch
    # ph_ref  : VMEM (NB, Hh+2, Wh+2, C) pooled map with a 1-px zero halo
    NB, Hp2, Wp2, _ = x_ref.shape
    H, W = Hp2 - 2, Wp2 - 2
    Hh, Wh = H // 2, W // 2
    C = w1_ref.shape[1]
    rows = NB * Hh * Wh

    # ---- conv1 (3x3, pad=1, Cin=1) + folded eval-mode BN + ReLU (VPU broadcast-MACs) ----------
    xp = x_ref[...]                                              # (NB, H+2, W+2, 1)
    acc1 = jnp.zeros((NB, H, W, C), jnp.float32)
    for di in range(3):
        for dj in range(3):
            patch = xp[:, di:di + H, dj:dj + W, :]               # (NB, H, W, 1)
            wv = w1_ref[3 * di + dj:3 * di + dj + 1, :]          # (1, C)
            acc1 = acc1 + patch * wv[None, :, :]                 # lane-broadcast MAC
    act = jnp.maximum(acc1 + b1_ref[...][None, :, :], 0.0)       # (NB, H, W, C)

    # ---- 2x2 / stride-2 max-pool ----------------------------------------------------------------
    r2 = act.reshape(NB, Hh, 2, W, C)                            # leading-dim split (layout-trivial)
    hp_ref[...] = jnp.maximum(r2[:, :, 0], r2[:, :, 1])          # (NB, Hh, W, C)
    pooled = jnp.maximum(hp_ref[:, :, pl.ds(0, Wh, 2), :],       # sublane-strided loads
                         hp_ref[:, :, pl.ds(1, Wh, 2), :])       # (NB, Hh, Wh, C)

    # ---- pooled map with a 1-px zero halo (only the border is zeroed; interior is overwritten) --
    ph_ref[:, 0:1, :, :] = jnp.zeros((NB, 1, Wh + 2, C), jnp.float32)
    ph_ref[:, Hh + 1:Hh + 2, :, :] = jnp.zeros((NB, 1, Wh + 2, C), jnp.float32)
    ph_ref[:, :, 0:1, :] = jnp.zeros((NB, Hh + 2, 1, C), jnp.float32)
    ph_ref[:, :, Wh + 1:Wh + 2, :] = jnp.zeros((NB, Hh + 2, 1, C), jnp.float32)
    ph_ref[:, 1:Hh + 1, 1:Wh + 1, :] = pooled

    # ---- fused upconv(k=2,s=2) o conv2(3x3,pad=1): one K=4*C bf16 matmul per output phase -------
    # out[n, 2I+r, 2J+s, m] = sum_{dI,dJ in {0,1}} halo[n, I+r+dI, J+s+dJ, :] @ Weff[r,s,dI,dJ] + bias
    for r in range(2):
        for s in range(2):
            p = 2 * r + s
            wins = []
            for dI in range(2):
                for dJ in range(2):
                    wnd = ph_ref[:, r + dI:r + dI + Hh, s + dJ:s + dJ + Wh, :]  # (NB, Hh, Wh, C)
                    wins.append(wnd.reshape(rows, C))
            win4 = jnp.concatenate(wins, axis=-1).astype(jnp.bfloat16)          # (rows, 4C)
            acc = jnp.dot(win4, wf_ref[p], preferred_element_type=jnp.float32)  # (rows, M) f32
            o_ref[p] = acc + bias_ref[p]


def _pick_batch_block(n):
    for nb in range(min(n, 8), 0, -1):
        if n % nb == 0:
            return nb
    return 1


def init_params(key, num_classes):
    ks = jax.random.split(key, 10)
    p = {}
    p["conv1_w"] = 0.3 * jax.random.normal(ks[0], (3, 3, 1, 64), jnp.float32)   # HWIO
    p["conv1_b"] = 0.1 * jax.random.normal(ks[1], (64,), jnp.float32)
    p["bn_gamma"] = 1.0 + 0.1 * jax.random.normal(ks[2], (64,), jnp.float32)
    p["bn_beta"] = 0.1 * jax.random.normal(ks[3], (64,), jnp.float32)
    p["bn_mean"] = 0.1 * jax.random.normal(ks[4], (64,), jnp.float32)
    p["bn_var"] = jax.random.uniform(ks[5], (64,), jnp.float32, 0.5, 1.5)
    p["up_w"] = 0.1 * jax.random.normal(ks[6], (2, 2, 64, 64), jnp.float32)      # [k, l, cin, cout]
    p["up_b"] = 0.1 * jax.random.normal(ks[7], (64,), jnp.float32)
    p["conv2_w"] = 0.1 * jax.random.normal(ks[8], (3, 3, 64, num_classes), jnp.float32)
    p["conv2_b"] = 0.1 * jax.random.normal(ks[9], (num_classes,), jnp.float32)
    return p


@jax.jit
def unet_forward(x_nchw, params):
    N, Cin, H, W = x_nchw.shape
    assert Cin == 1 and H % 2 == 0 and W % 2 == 0
    C = params["conv1_w"].shape[-1]
    M = params["conv2_w"].shape[-1]
    Hh, Wh = H // 2, W // 2
    NB = _pick_batch_block(N)
    G = N // NB

    x = jnp.transpose(x_nchw, (0, 2, 3, 1)).astype(jnp.float32)       # NCHW -> NHWC
    x_pad = jnp.pad(x, ((0, 0), (1, 1), (1, 1), (0, 0)))              # tiny Cin=1 halo

    # Fold eval-mode BatchNorm into conv1.
    scale = params["bn_gamma"] / jnp.sqrt(params["bn_var"] + BN_EPS)
    w1 = (params["conv1_w"] * scale[None, None, None, :]).reshape(9, C)
    b1 = ((params["conv1_b"] - params["bn_mean"]) * scale + params["bn_beta"]).reshape(1, C)

    # Algebraic fusion of upconv (k=2,s=2) and conv2 (3x3,pad=1).
    # A[r, a, dI, k] = 1 iff conv2 row tap `a` at output row-phase `r` reads upconv row tap `k`
    # at halo row offset `dI` of the pooled map (same matrix for columns with s, b, dJ, l).
    A = np.zeros((2, 3, 2, 2), np.float32)
    A[0, 0, 0, 1] = A[0, 1, 1, 0] = A[0, 2, 1, 1] = 1.0
    A[1, 0, 0, 0] = A[1, 1, 0, 1] = A[1, 2, 1, 0] = 1.0
    A = jnp.asarray(A)
    weff = jnp.einsum("raik,sbjl,klco,abom->rsijcm", A, A,
                      params["up_w"], params["conv2_w"],
                      precision=lax.Precision.HIGHEST)                 # (2,2,2,2,C,M)
    wf = weff.reshape(4, 4 * C, M).astype(jnp.bfloat16)                # K rows ordered (dI, dJ, c)

    # Fused bias = conv2(up_b over the interior, zero halo) + conv2_b (exact at the image border).
    yy = jnp.arange(H)[:, None] + jnp.arange(3)[None, :] - 1
    row_ok = ((yy >= 0) & (yy < H)).astype(jnp.float32)                # (H, 3)
    xx = jnp.arange(W)[:, None] + jnp.arange(3)[None, :] - 1
    col_ok = ((xx >= 0) & (xx < W)).astype(jnp.float32)                # (W, 3)
    w2b = jnp.einsum("o,abom->abm", params["up_b"], params["conv2_w"],
                     precision=lax.Precision.HIGHEST)                  # (3, 3, M)
    bias_full = params["conv2_b"][None, None, :] + jnp.einsum(
        "ya,xb,abm->yxm", row_ok, col_ok, w2b, precision=lax.Precision.HIGHEST)   # (H, W, M)
    bias_ph = bias_full.reshape(Hh, 2, Wh, 2, M).transpose(1, 3, 0, 2, 4).reshape(4, Hh * Wh, M)
    bias_ph = jnp.tile(bias_ph, (1, NB, 1))                            # (4, NB*Hh*Wh, M)

    out_p = pl.pallas_call(
        _unet_fused_kernel,
        out_shape=jax.ShapeDtypeStruct((4, N * Hh * Wh, M), jnp.float32),
        grid=(G,),
        in_specs=[
            pl.BlockSpec((NB, H + 2, W + 2, 1), lambda b: (b, 0, 0, 0)),
            pl.BlockSpec((9, C), lambda b: (0, 0)),
            pl.BlockSpec((1, C), lambda b: (0, 0)),
            pl.BlockSpec((4, 4 * C, M), lambda b: (0, 0, 0)),
            pl.BlockSpec((4, NB * Hh * Wh, M), lambda b: (0, 0, 0)),
        ],
        out_specs=pl.BlockSpec((4, NB * Hh * Wh, M), lambda b: (0, b, 0)),
        scratch_shapes=[
            pltpu.VMEM((NB, Hh, W, C), jnp.float32),                   # row-pooled activations
            pltpu.VMEM((NB, Hh + 2, Wh + 2, C), jnp.float32),          # pooled + zero halo
        ],
        compiler_params=pltpu.CompilerParams(dimension_semantics=("parallel",)),
    )(x_pad, w1, b1, wf, bias_ph)

    # Tiny (N*M*H*W f32) rearrange: phase-separated (4, N*Hh*Wh, M) -> NCHW (N, M, H, W).
    out = out_p.reshape(2, 2, N, Hh, Wh, M).transpose(2, 5, 3, 0, 4, 1).reshape(N, M, H, W)
    return out


def unet_reference(x_nchw, params):
    # Pure-JAX reference (same eval-mode BN semantics) for verification.
    x = jnp.transpose(x_nchw, (0, 2, 3, 1)).astype(jnp.float32)
    dn = ("NHWC", "HWIO", "NHWC")
    y = lax.conv_general_dilated(x, params["conv1_w"], (1, 1), "SAME",
                                 dimension_numbers=dn, precision=lax.Precision.HIGHEST)
    y = y + params["conv1_b"][None, None, None, :]
    y = (y - params["bn_mean"]) / jnp.sqrt(params["bn_var"] + BN_EPS)
    y = y * params["bn_gamma"] + params["bn_beta"]
    y = jnp.maximum(y, 0.0)
    y = lax.reduce_window(y, -jnp.inf, lax.max, (1, 2, 2, 1), (1, 2, 2, 1), "VALID")
    # ConvTranspose2d(k=2, s=2): out[n, 2i+k, 2j+l, o] = sum_c y[n,i,j,c] * W[k,l,c,o] + b
    up = jnp.einsum("nijc,klco->nikjlo", y, params["up_w"], precision=lax.Precision.HIGHEST)
    N, Hp, _, Wp, _, C = up.shape
    up = up.reshape(N, 2 * Hp, 2 * Wp, C) + params["up_b"][None, None, None, :]
    out = lax.conv_general_dilated(up, params["conv2_w"], (1, 1), "SAME",
                                   dimension_numbers=dn, precision=lax.Precision.HIGHEST)
    out = out + params["conv2_b"][None, None, None, :]
    return jnp.transpose(out, (0, 3, 1, 2))


if __name__ == "__main__":
    num_classes = 8
    key = jax.random.PRNGKey(0)
    k_x, k_p = jax.random.split(key)
    x = jax.random.normal(k_x, (2, 1, 16, 16), jnp.float32)   # NCHW, like the PyTorch module
    params = init_params(k_p, num_classes)

    out = jax.block_until_ready(unet_forward(x, params))
    ref = jax.block_until_ready(unet_reference(x, params))

    assert out.shape == (2, num_classes, 16, 16), out.shape
    max_err = float(jnp.max(jnp.abs(out - ref)))
    mean_err = float(jnp.mean(jnp.abs(out - ref)))
    # bf16 MXU operands with f32 accumulation: loosen the pointwise tolerance accordingly.
    assert max_err < 1e-1 and mean_err < 2e-2, (max_err, mean_err)
    print("KERNEL_OK")
</pallas_src>

<mosaic_0001>
module attributes {stable_mosaic.version = 11 : i64} {
  func.func @_unet_fused_kernel(%arg0: i32, %arg1: memref<2x18x18x1xf32, #tpu.memory_space<vmem>>, %arg2: memref<9x64xf32, #tpu.memory_space<vmem>>, %arg3: memref<1x64xf32, #tpu.memory_space<vmem>>, %arg4: memref<4x256x8xbf16, #tpu.memory_space<vmem>>, %arg5: memref<4x128x8xf32, #tpu.memory_space<vmem>>, %arg6: memref<4x128x8xf32, #tpu.memory_space<vmem>>, %arg7: memref<2x8x16x64xf32, #tpu.memory_space<vmem>>, %arg8: memref<2x10x10x64xf32, #tpu.memory_space<vmem>>) attributes {dimension_semantics = [#tpu.dimension_semantics<parallel>], iteration_bounds = array<i64: 1>, scalar_prefetch = 0 : i64, scratch_operands = 2 : i64, tpu.core_type = #tpu.core_type<tc>, window_params = [{transform_indices = @transform_0, window_bounds = array<i64: 2, 18, 18, 1>}, {pipeline_mode = #tpu.pipeline_mode<synchronous>, transform_indices = @transform_1, window_bounds = array<i64: 9, 64>}, {pipeline_mode = #tpu.pipeline_mode<synchronous>, transform_indices = @transform_2, window_bounds = array<i64: 1, 64>}, {pipeline_mode = #tpu.pipeline_mode<synchronous>, transform_indices = @transform_3, window_bounds = array<i64: 4, 256, 8>}, {pipeline_mode = #tpu.pipeline_mode<synchronous>, transform_indices = @transform_4, window_bounds = array<i64: 4, 128, 8>}, {transform_indices = @transform_5, window_bounds = array<i64: 4, 128, 8>}]} {
    %c0 = arith.constant 0 : index
    %c0_0 = arith.constant 0 : index
    %c0_1 = arith.constant 0 : index
    %c0_2 = arith.constant 0 : index
    %0 = vector.load %arg1[%c0, %c0_0, %c0_1, %c0_2] : memref<2x18x18x1xf32, #tpu.memory_space<vmem>>, vector<2x18x18x1xf32>
    %cst = arith.constant 0.000000e+00 : f32
    %1 = vector.broadcast %cst : f32 to vector<2x16x16x64xf32>
    %2 = vector.extract_strided_slice %0 {offsets = [0, 0, 0, 0], sizes = [2, 16, 16, 1], strides = [1, 1, 1, 1]} : vector<2x18x18x1xf32> to vector<2x16x16x1xf32>
    %c0_3 = arith.constant 0 : index
    %c0_4 = arith.constant 0 : index
    %3 = vector.load %arg2[%c0_3, %c0_4] : memref<9x64xf32, #tpu.memory_space<vmem>>, vector<1x64xf32>
    %4 = vector.shape_cast %3 : vector<1x64xf32> to vector<1x1x64xf32>
    %5 = vector.shape_cast %4 : vector<1x1x64xf32> to vector<1x1x1x64xf32>
    %6 = vector.broadcast %2 : vector<2x16x16x1xf32> to vector<2x16x16x64xf32>
    %7 = vector.broadcast %5 : vector<1x1x1x64xf32> to vector<2x16x16x64xf32>
    %8 = arith.mulf %6, %7 : vector<2x16x16x64xf32>
    %9 = arith.addf %1, %8 : vector<2x16x16x64xf32>
    %10 = vector.extract_strided_slice %0 {offsets = [0, 0, 1, 0], sizes = [2, 16, 16, 1], strides = [1, 1, 1, 1]} : vector<2x18x18x1xf32> to vector<2x16x16x1xf32>
    %c1 = arith.constant 1 : index
    %c0_5 = arith.constant 0 : index
    %11 = vector.load %arg2[%c1, %c0_5] : memref<9x64xf32, #tpu.memory_space<vmem>>, vector<1x64xf32>
    %12 = vector.shape_cast %11 : vector<1x64xf32> to vector<1x1x64xf32>
    %13 = vector.shape_cast %12 : vector<1x1x64xf32> to vector<1x1x1x64xf32>
    %14 = vector.broadcast %10 : vector<2x16x16x1xf32> to vector<2x16x16x64xf32>
    %15 = vector.broadcast %13 : vector<1x1x1x64xf32> to vector<2x16x16x64xf32>
    %16 = arith.mulf %14, %15 : vector<2x16x16x64xf32>
    %17 = arith.addf %9, %16 : vector<2x16x16x64xf32>
    %18 = vector.extract_strided_slice %0 {offsets = [0, 0, 2, 0], sizes = [2, 16, 16, 1], strides = [1, 1, 1, 1]} : vector<2x18x18x1xf32> to vector<2x16x16x1xf32>
    %c2 = arith.constant 2 : index
    %c0_6 = arith.constant 0 : index
    %19 = vector.load %arg2[%c2, %c0_6] : memref<9x64xf32, #tpu.memory_space<vmem>>, vector<1x64xf32>
    %20 = vector.shape_cast %19 : vector<1x64xf32> to vector<1x1x64xf32>
    %21 = vector.shape_cast %20 : vector<1x1x64xf32> to vector<1x1x1x64xf32>
    %22 = vector.broadcast %18 : vector<2x16x16x1xf32> to vector<2x16x16x64xf32>
    %23 = vector.broadcast %21 : vector<1x1x1x64xf32> to vector<2x16x16x64xf32>
    %24 = arith.mulf %22, %23 : vector<2x16x16x64xf32>
    %25 = arith.addf %17, %24 : vector<2x16x16x64xf32>
    %26 = vector.extract_strided_slice %0 {offsets = [0, 1, 0, 0], sizes = [2, 16, 16, 1], strides = [1, 1, 1, 1]} : vector<2x18x18x1xf32> to vector<2x16x16x1xf32>
    %c3 = arith.constant 3 : index
    %c0_7 = arith.constant 0 : index
    %27 = vector.load %arg2[%c3, %c0_7] : memref<9x64xf32, #tpu.memory_space<vmem>>, vector<1x64xf32>
    %28 = vector.shape_cast %27 : vector<1x64xf32> to vector<1x1x64xf32>
    %29 = vector.shape_cast %28 : vector<1x1x64xf32> to vector<1x1x1x64xf32>
    %30 = vector.broadcast %26 : vector<2x16x16x1xf32> to vector<2x16x16x64xf32>
    %31 = vector.broadcast %29 : vector<1x1x1x64xf32> to vector<2x16x16x64xf32>
    %32 = arith.mulf %30, %31 : vector<2x16x16x64xf32>
    %33 = arith.addf %25, %32 : vector<2x16x16x64xf32>
    %34 = vector.extract_strided_slice %0 {offsets = [0, 1, 1, 0], sizes = [2, 16, 16, 1], strides = [1, 1, 1, 1]} : vector<2x18x18x1xf32> to vector<2x16x16x1xf32>
    %c4 = arith.constant 4 : index
    %c0_8 = arith.constant 0 : index
    %35 = vector.load %arg2[%c4, %c0_8] : memref<9x64xf32, #tpu.memory_space<vmem>>, vector<1x64xf32>
    %36 = vector.shape_cast %35 : vector<1x64xf32> to vector<1x1x64xf32>
    %37 = vector.shape_cast %36 : vector<1x1x64xf32> to vector<1x1x1x64xf32>
    %38 = vector.broadcast %34 : vector<2x16x16x1xf32> to vector<2x16x16x64xf32>
    %39 = vector.broadcast %37 : vector<1x1x1x64xf32> to vector<2x16x16x64xf32>
    %40 = arith.mulf %38, %39 : vector<2x16x16x64xf32>
    %41 = arith.addf %33, %40 : vector<2x16x16x64xf32>
    %42 = vector.extract_strided_slice %0 {offsets = [0, 1, 2, 0], sizes = [2, 16, 16, 1], strides = [1, 1, 1, 1]} : vector<2x18x18x1xf32> to vector<2x16x16x1xf32>
    %c5 = arith.constant 5 : index
    %c0_9 = arith.constant 0 : index
    %43 = vector.load %arg2[%c5, %c0_9] : memref<9x64xf32, #tpu.memory_space<vmem>>, vector<1x64xf32>
    %44 = vector.shape_cast %43 : vector<1x64xf32> to vector<1x1x64xf32>
    %45 = vector.shape_cast %44 : vector<1x1x64xf32> to vector<1x1x1x64xf32>
    %46 = vector.broadcast %42 : vector<2x16x16x1xf32> to vector<2x16x16x64xf32>
    %47 = vector.broadcast %45 : vector<1x1x1x64xf32> to vector<2x16x16x64xf32>
    %48 = arith.mulf %46, %47 : vector<2x16x16x64xf32>
    %49 = arith.addf %41, %48 : vector<2x16x16x64xf32>
    %50 = vector.extract_strided_slice %0 {offsets = [0, 2, 0, 0], sizes = [2, 16, 16, 1], strides = [1, 1, 1, 1]} : vector<2x18x18x1xf32> to vector<2x16x16x1xf32>
    %c6 = arith.constant 6 : index
    %c0_10 = arith.constant 0 : index
    %51 = vector.load %arg2[%c6, %c0_10] : memref<9x64xf32, #tpu.memory_space<vmem>>, vector<1x64xf32>
    %52 = vector.shape_cast %51 : vector<1x64xf32> to vector<1x1x64xf32>
    %53 = vector.shape_cast %52 : vector<1x1x64xf32> to vector<1x1x1x64xf32>
    %54 = vector.broadcast %50 : vector<2x16x16x1xf32> to vector<2x16x16x64xf32>
    %55 = vector.broadcast %53 : vector<1x1x1x64xf32> to vector<2x16x16x64xf32>
    %56 = arith.mulf %54, %55 : vector<2x16x16x64xf32>
    %57 = arith.addf %49, %56 : vector<2x16x16x64xf32>
    %58 = vector.extract_strided_slice %0 {offsets = [0, 2, 1, 0], sizes = [2, 16, 16, 1], strides = [1, 1, 1, 1]} : vector<2x18x18x1xf32> to vector<2x16x16x1xf32>
    %c7 = arith.constant 7 : index
    %c0_11 = arith.constant 0 : index
    %59 = vector.load %arg2[%c7, %c0_11] : memref<9x64xf32, #tpu.memory_space<vmem>>, vector<1x64xf32>
    %60 = vector.shape_cast %59 : vector<1x64xf32> to vector<1x1x64xf32>
    %61 = vector.shape_cast %60 : vector<1x1x64xf32> to vector<1x1x1x64xf32>
    %62 = vector.broadcast %58 : vector<2x16x16x1xf32> to vector<2x16x16x64xf32>
    %63 = vector.broadcast %61 : vector<1x1x1x64xf32> to vector<2x16x16x64xf32>
    %64 = arith.mulf %62, %63 : vector<2x16x16x64xf32>
    %65 = arith.addf %57, %64 : vector<2x16x16x64xf32>
    %66 = vector.extract_strided_slice %0 {offsets = [0, 2, 2, 0], sizes = [2, 16, 16, 1], strides = [1, 1, 1, 1]} : vector<2x18x18x1xf32> to vector<2x16x16x1xf32>
    %c8 = arith.constant 8 : index
    %c0_12 = arith.constant 0 : index
    %67 = vector.load %arg2[%c8, %c0_12] : memref<9x64xf32, #tpu.memory_space<vmem>>, vector<1x64xf32>
    %68 = vector.shape_cast %67 : vector<1x64xf32> to vector<1x1x64xf32>
    %69 = vector.shape_cast %68 : vector<1x1x64xf32> to vector<1x1x1x64xf32>
    %70 = vector.broadcast %66 : vector<2x16x16x1xf32> to vector<2x16x16x64xf32>
    %71 = vector.broadcast %69 : vector<1x1x1x64xf32> to vector<2x16x16x64xf32>
    %72 = arith.mulf %70, %71 : vector<2x16x16x64xf32>
    %73 = arith.addf %65, %72 : vector<2x16x16x64xf32>
    %c0_13 = arith.constant 0 : index
    %c0_14 = arith.constant 0 : index
    %74 = vector.load %arg3[%c0_13, %c0_14] : memref<1x64xf32, #tpu.memory_space<vmem>>, vector<1x64xf32>
    %75 = vector.shape_cast %74 : vector<1x64xf32> to vector<1x1x64xf32>
    %76 = vector.shape_cast %75 : vector<1x1x64xf32> to vector<1x1x1x64xf32>
    %77 = vector.broadcast %76 : vector<1x1x1x64xf32> to vector<2x16x16x64xf32>
    %78 = arith.addf %73, %77 : vector<2x16x16x64xf32>
    %cst_15 = arith.constant 0.000000e+00 : f32
    %79 = vector.broadcast %cst_15 : f32 to vector<2x16x16x64xf32>
    %80 = arith.maximumf %78, %79 : vector<2x16x16x64xf32>
    %81 = vector.shape_cast %80 : vector<2x16x16x64xf32> to vector<2x8x2x16x64xf32>
    %82 = vector.extract_strided_slice %81 {offsets = [0, 0, 0, 0, 0], sizes = [2, 8, 1, 16, 64], strides = [1, 1, 1, 1, 1]} : vector<2x8x2x16x64xf32> to vector<2x8x1x16x64xf32>
    %83 = vector.shape_cast %82 : vector<2x8x1x16x64xf32> to vector<2x8x16x64xf32>
    %84 = vector.extract_strided_slice %81 {offsets = [0, 0, 1, 0, 0], sizes = [2, 8, 1, 16, 64], strides = [1, 1, 1, 1, 1]} : vector<2x8x2x16x64xf32> to vector<2x8x1x16x64xf32>
    %85 = vector.shape_cast %84 : vector<2x8x1x16x64xf32> to vector<2x8x16x64xf32>
    %86 = arith.maximumf %83, %85 : vector<2x8x16x64xf32>
    %c0_16 = arith.constant 0 : index
    %c0_17 = arith.constant 0 : index
    %c0_18 = arith.constant 0 : index
    %c0_19 = arith.constant 0 : index
    %87 = vector.load %arg7[%c0_16, %c0_17, %c0_18, %c0_19] : memref<2x8x16x64xf32, #tpu.memory_space<vmem>>, vector<2x8x16x64xf32>
    tpu.vector_store %arg7[%c0_16, %c0_17, %c0_18, %c0_19], %86 {strides = array<i32>} : memref<2x8x16x64xf32, #tpu.memory_space<vmem>>, vector<2x8x16x64xf32>,
    %c0_20 = arith.constant 0 : index
    %c0_21 = arith.constant 0 : index
    %c0_22 = arith.constant 0 : index
    %c0_23 = arith.constant 0 : index
    %88 = tpu.strided_load %arg7[%c0_20, %c0_21, %c0_22, %c0_23] {strides = array<i32: 1, 1, 2, 1>} : memref<2x8x16x64xf32, #tpu.memory_space<vmem>>, vector<2x8x8x64xf32>
    %c0_24 = arith.constant 0 : index
    %c0_25 = arith.constant 0 : index
    %c1_26 = arith.constant 1 : index
    %c0_27 = arith.constant 0 : index
    %89 = tpu.strided_load %arg7[%c0_24, %c0_25, %c1_26, %c0_27] {strides = array<i32: 1, 1, 2, 1>} : memref<2x8x16x64xf32, #tpu.memory_space<vmem>>, vector<2x8x8x64xf32>
    %90 = arith.maximumf %88, %89 : vector<2x8x8x64xf32>
    %cst_28 = arith.constant 0.000000e+00 : f32
    %91 = vector.broadcast %cst_28 : f32 to vector<2x1x10x64xf32>
    %c0_29 = arith.constant 0 : index
    %c0_30 = arith.constant 0 : index
    %c0_31 = arith.constant 0 : index
    %c0_32 = arith.constant 0 : index
    %92 = vector.load %arg8[%c0_29, %c0_30, %c0_31, %c0_32] : memref<2x10x10x64xf32, #tpu.memory_space<vmem>>, vector<2x1x10x64xf32>
    tpu.vector_store %arg8[%c0_29, %c0_30, %c0_31, %c0_32], %91 {strides = array<i32>} : memref<2x10x10x64xf32, #tpu.memory_space<vmem>>, vector<2x1x10x64xf32>,
    %cst_33 = arith.constant 0.000000e+00 : f32
    %93 = vector.broadcast %cst_33 : f32 to vector<2x1x10x64xf32>
    %c0_34 = arith.constant 0 : index
    %c9 = arith.constant 9 : index
    %c0_35 = arith.constant 0 : index
    %c0_36 = arith.constant 0 : index
    %94 = vector.load %arg8[%c0_34, %c9, %c0_35, %c0_36] : memref<2x10x10x64xf32, #tpu.memory_space<vmem>>, vector<2x1x10x64xf32>
    tpu.vector_store %arg8[%c0_34, %c9, %c0_35, %c0_36], %93 {strides = array<i32>} : memref<2x10x10x64xf32, #tpu.memory_space<vmem>>, vector<2x1x10x64xf32>,
    %cst_37 = arith.constant 0.000000e+00 : f32
    %95 = vector.broadcast %cst_37 : f32 to vector<2x10x1x64xf32>
    %c0_38 = arith.constant 0 : index
    %c0_39 = arith.constant 0 : index
    %c0_40 = arith.constant 0 : index
    %c0_41 = arith.constant 0 : index
    %96 = vector.load %arg8[%c0_38, %c0_39, %c0_40, %c0_41] : memref<2x10x10x64xf32, #tpu.memory_space<vmem>>, vector<2x10x1x64xf32>
    tpu.vector_store %arg8[%c0_38, %c0_39, %c0_40, %c0_41], %95 {strides = array<i32>} : memref<2x10x10x64xf32, #tpu.memory_space<vmem>>, vector<2x10x1x64xf32>,
    %cst_42 = arith.constant 0.000000e+00 : f32
    %97 = vector.broadcast %cst_42 : f32 to vector<2x10x1x64xf32>
    %c0_43 = arith.constant 0 : index
    %c0_44 = arith.constant 0 : index
    %c9_45 = arith.constant 9 : index
    %c0_46 = arith.constant 0 : index
    %98 = vector.load %arg8[%c0_43, %c0_44, %c9_45, %c0_46] : memref<2x10x10x64xf32, #tpu.memory_space<vmem>>, vector<2x10x1x64xf32>
    tpu.vector_store %arg8[%c0_43, %c0_44, %c9_45, %c0_46], %97 {strides = array<i32>} : memref<2x10x10x64xf32, #tpu.memory_space<vmem>>, vector<2x10x1x64xf32>,
    %c0_47 = arith.constant 0 : index
    %c1_48 = arith.constant 1 : index
    %c1_49 = arith.constant 1 : index
    %c0_50 = arith.constant 0 : index
    %99 = vector.load %arg8[%c0_47, %c1_48, %c1_49, %c0_50] : memref<2x10x10x64xf32, #tpu.memory_space<vmem>>, vector<2x8x8x64xf32>
    tpu.vector_store %arg8[%c0_47, %c1_48, %c1_49, %c0_50], %90 {strides = array<i32>} : memref<2x10x10x64xf32, #tpu.memory_space<vmem>>, vector<2x8x8x64xf32>,
    %c0_51 = arith.constant 0 : index
    %c0_52 = arith.constant 0 : index
    %c0_53 = arith.constant 0 : index
    %c0_54 = arith.constant 0 : index
    %100 = vector.load %arg8[%c0_51, %c0_52, %c0_53, %c0_54] : memref<2x10x10x64xf32, #tpu.memory_space<vmem>>, vector<2x8x8x64xf32>
    %101 = vector.shape_cast %100 : vector<2x8x8x64xf32> to vector<128x64xf32>
    %c0_55 = arith.constant 0 : index
    %c0_56 = arith.constant 0 : index
    %c1_57 = arith.constant 1 : index
    %c0_58 = arith.constant 0 : index
    %102 = vector.load %arg8[%c0_55, %c0_56, %c1_57, %c0_58] : memref<2x10x10x64xf32, #tpu.memory_space<vmem>>, vector<2x8x8x64xf32>
    %103 = vector.shape_cast %102 : vector<2x8x8x64xf32> to vector<128x64xf32>
    %c0_59 = arith.constant 0 : index
    %c1_60 = arith.constant 1 : index
    %c0_61 = arith.constant 0 : index
    %c0_62 = arith.constant 0 : index
    %104 = vector.load %arg8[%c0_59, %c1_60, %c0_61, %c0_62] : memref<2x10x10x64xf32, #tpu.memory_space<vmem>>, vector<2x8x8x64xf32>
    %105 = vector.shape_cast %104 : vector<2x8x8x64xf32> to vector<128x64xf32>
    %c0_63 = arith.constant 0 : index
    %c1_64 = arith.constant 1 : index
    %c1_65 = arith.constant 1 : index
    %c0_66 = arith.constant 0 : index
    %106 = vector.load %arg8[%c0_63, %c1_64, %c1_65, %c0_66] : memref<2x10x10x64xf32, #tpu.memory_space<vmem>>, vector<2x8x8x64xf32>
    %107 = vector.shape_cast %106 : vector<2x8x8x64xf32> to vector<128x64xf32>
    %108 = tpu.concatenate %101, %103, %105, %107 in 1 : vector<128x64xf32>, vector<128x64xf32>, vector<128x64xf32>, vector<128x64xf32> -> vector<128x256xf32>
    %109 = arith.truncf %108 : vector<128x256xf32> to vector<128x256xbf16>
    %c0_67 = arith.constant 0 : index
    %c0_68 = arith.constant 0 : index
    %c0_69 = arith.constant 0 : index
    %110 = vector.load %arg4[%c0_67, %c0_68, %c0_69] : memref<4x256x8xbf16, #tpu.memory_space<vmem>>, vector<1x256x8xbf16>
    %111 = vector.shape_cast %110 : vector<1x256x8xbf16> to vector<256x8xbf16>
    %cst_70 = arith.constant dense<0.000000e+00> : vector<128x8xf32>
    %112 = tpu.matmul %109, %111, %cst_70 {dimension_numbers = #tpu.dot_dimension_numbers<[1], [0], [0], [1], [0, 0, 1, 1], [], []>} : vector<128x256xbf16>, vector<256x8xbf16>, vector<128x8xf32> -> vector<128x8xf32>
    %c0_71 = arith.constant 0 : index
    %c0_72 = arith.constant 0 : index
    %c0_73 = arith.constant 0 : index
    %113 = vector.load %arg5[%c0_71, %c0_72, %c0_73] : memref<4x128x8xf32, #tpu.memory_space<vmem>>, vector<1x128x8xf32>
    %114 = vector.shape_cast %113 : vector<1x128x8xf32> to vector<128x8xf32>
    %115 = arith.addf %112, %114 : vector<128x8xf32>
    %c0_74 = arith.constant 0 : index
    %c0_75 = arith.constant 0 : index
    %c0_76 = arith.constant 0 : index
    %116 = vector.load %arg6[%c0_74, %c0_75, %c0_76] : memref<4x128x8xf32, #tpu.memory_space<vmem>>, vector<1x128x8xf32>
    %117 = vector.shape_cast %116 : vector<1x128x8xf32> to vector<128x8xf32>
    %118 = vector.shape_cast %115 : vector<128x8xf32> to vector<1x128x8xf32>
    tpu.vector_store %arg6[%c0_74, %c0_75, %c0_76], %118 {strides = array<i32>} : memref<4x128x8xf32, #tpu.memory_space<vmem>>, vector<1x128x8xf32>,
    %c0_77 = arith.constant 0 : index
    %c0_78 = arith.constant 0 : index
    %c1_79 = arith.constant 1 : index
    %c0_80 = arith.constant 0 : index
    %119 = vector.load %arg8[%c0_77, %c0_78, %c1_79, %c0_80] : memref<2x10x10x64xf32, #tpu.memory_space<vmem>>, vector<2x8x8x64xf32>
    %120 = vector.shape_cast %119 : vector<2x8x8x64xf32> to vector<128x64xf32>
    %c0_81 = arith.constant 0 : index
    %c0_82 = arith.constant 0 : index
    %c2_83 = arith.constant 2 : index
    %c0_84 = arith.constant 0 : index
    %121 = vector.load %arg8[%c0_81, %c0_82, %c2_83, %c0_84] : memref<2x10x10x64xf32, #tpu.memory_space<vmem>>, vector<2x8x8x64xf32>
    %122 = vector.shape_cast %121 : vector<2x8x8x64xf32> to vector<128x64xf32>
    %c0_85 = arith.constant 0 : index
    %c1_86 = arith.constant 1 : index
    %c1_87 = arith.constant 1 : index
    %c0_88 = arith.constant 0 : index
    %123 = vector.load %arg8[%c0_85, %c1_86, %c1_87, %c0_88] : memref<2x10x10x64xf32, #tpu.memory_space<vmem>>, vector<2x8x8x64xf32>
    %124 = vector.shape_cast %123 : vector<2x8x8x64xf32> to vector<128x64xf32>
    %c0_89 = arith.constant 0 : index
    %c1_90 = arith.constant 1 : index
    %c2_91 = arith.constant 2 : index
    %c0_92 = arith.constant 0 : index
    %125 = vector.load %arg8[%c0_89, %c1_90, %c2_91, %c0_92] : memref<2x10x10x64xf32, #tpu.memory_space<vmem>>, vector<2x8x8x64xf32>
    %126 = vector.shape_cast %125 : vector<2x8x8x64xf32> to vector<128x64xf32>
    %127 = tpu.concatenate %120, %122, %124, %126 in 1 : vector<128x64xf32>, vector<128x64xf32>, vector<128x64xf32>, vector<128x64xf32> -> vector<128x256xf32>
    %128 = arith.truncf %127 : vector<128x256xf32> to vector<128x256xbf16>
    %c1_93 = arith.constant 1 : index
    %c0_94 = arith.constant 0 : index
    %c0_95 = arith.constant 0 : index
    %129 = vector.load %arg4[%c1_93, %c0_94, %c0_95] : memref<4x256x8xbf16, #tpu.memory_space<vmem>>, vector<1x256x8xbf16>
    %130 = vector.shape_cast %129 : vector<1x256x8xbf16> to vector<256x8xbf16>
    %cst_96 = arith.constant dense<0.000000e+00> : vector<128x8xf32>
    %131 = tpu.matmul %128, %130, %cst_96 {dimension_numbers = #tpu.dot_dimension_numbers<[1], [0], [0], [1], [0, 0, 1, 1], [], []>} : vector<128x256xbf16>, vector<256x8xbf16>, vector<128x8xf32> -> vector<128x8xf32>
    %c1_97 = arith.constant 1 : index
    %c0_98 = arith.constant 0 : index
    %c0_99 = arith.constant 0 : index
    %132 = vector.load %arg5[%c1_97, %c0_98, %c0_99] : memref<4x128x8xf32, #tpu.memory_space<vmem>>, vector<1x128x8xf32>
    %133 = vector.shape_cast %132 : vector<1x128x8xf32> to vector<128x8xf32>
    %134 = arith.addf %131, %133 : vector<128x8xf32>
    %c1_100 = arith.constant 1 : index
    %c0_101 = arith.constant 0 : index
    %c0_102 = arith.constant 0 : index
    %135 = vector.load %arg6[%c1_100, %c0_101, %c0_102] : memref<4x128x8xf32, #tpu.memory_space<vmem>>, vector<1x128x8xf32>
    %136 = vector.shape_cast %135 : vector<1x128x8xf32> to vector<128x8xf32>
    %137 = vector.shape_cast %134 : vector<128x8xf32> to vector<1x128x8xf32>
    tpu.vector_store %arg6[%c1_100, %c0_101, %c0_102], %137 {strides = array<i32>} : memref<4x128x8xf32, #tpu.memory_space<vmem>>, vector<1x128x8xf32>,
    %c0_103 = arith.constant 0 : index
    %c1_104 = arith.constant 1 : index
    %c0_105 = arith.constant 0 : index
    %c0_106 = arith.constant 0 : index
    %138 = vector.load %arg8[%c0_103, %c1_104, %c0_105, %c0_106] : memref<2x10x10x64xf32, #tpu.memory_space<vmem>>, vector<2x8x8x64xf32>
    %139 = vector.shape_cast %138 : vector<2x8x8x64xf32> to vector<128x64xf32>
    %c0_107 = arith.constant 0 : index
    %c1_108 = arith.constant 1 : index
    %c1_109 = arith.constant 1 : index
    %c0_110 = arith.constant 0 : index
    %140 = vector.load %arg8[%c0_107, %c1_108, %c1_109, %c0_110] : memref<2x10x10x64xf32, #tpu.memory_space<vmem>>, vector<2x8x8x64xf32>
    %141 = vector.shape_cast %140 : vector<2x8x8x64xf32> to vector<128x64xf32>
    %c0_111 = arith.constant 0 : index
    %c2_112 = arith.constant 2 : index
    %c0_113 = arith.constant 0 : index
    %c0_114 = arith.constant 0 : index
    %142 = vector.load %arg8[%c0_111, %c2_112, %c0_113, %c0_114] : memref<2x10x10x64xf32, #tpu.memory_space<vmem>>, vector<2x8x8x64xf32>
    %143 = vector.shape_cast %142 : vector<2x8x8x64xf32> to vector<128x64xf32>
    %c0_115 = arith.constant 0 : index
    %c2_116 = arith.constant 2 : index
    %c1_117 = arith.constant 1 : index
    %c0_118 = arith.constant 0 : index
    %144 = vector.load %arg8[%c0_115, %c2_116, %c1_117, %c0_118] : memref<2x10x10x64xf32, #tpu.memory_space<vmem>>, vector<2x8x8x64xf32>
    %145 = vector.shape_cast %144 : vector<2x8x8x64xf32> to vector<128x64xf32>
    %146 = tpu.concatenate %139, %141, %143, %145 in 1 : vector<128x64xf32>, vector<128x64xf32>, vector<128x64xf32>, vector<128x64xf32> -> vector<128x256xf32>
    %147 = arith.truncf %146 : vector<128x256xf32> to vector<128x256xbf16>
    %c2_119 = arith.constant 2 : index
    %c0_120 = arith.constant 0 : index
    %c0_121 = arith.constant 0 : index
    %148 = vector.load %arg4[%c2_119, %c0_120, %c0_121] : memref<4x256x8xbf16, #tpu.memory_space<vmem>>, vector<1x256x8xbf16>
    %149 = vector.shape_cast %148 : vector<1x256x8xbf16> to vector<256x8xbf16>
    %cst_122 = arith.constant dense<0.000000e+00> : vector<128x8xf32>
    %150 = tpu.matmul %147, %149, %cst_122 {dimension_numbers = #tpu.dot_dimension_numbers<[1], [0], [0], [1], [0, 0, 1, 1], [], []>} : vector<128x256xbf16>, vector<256x8xbf16>, vector<128x8xf32> -> vector<128x8xf32>
    %c2_123 = arith.constant 2 : index
    %c0_124 = arith.constant 0 : index
    %c0_125 = arith.constant 0 : index
    %151 = vector.load %arg5[%c2_123, %c0_124, %c0_125] : memref<4x128x8xf32, #tpu.memory_space<vmem>>, vector<1x128x8xf32>
    %152 = vector.shape_cast %151 : vector<1x128x8xf32> to vector<128x8xf32>
    %153 = arith.addf %150, %152 : vector<128x8xf32>
    %c2_126 = arith.constant 2 : index
    %c0_127 = arith.constant 0 : index
    %c0_128 = arith.constant 0 : index
    %154 = vector.load %arg6[%c2_126, %c0_127, %c0_128] : memref<4x128x8xf32, #tpu.memory_space<vmem>>, vector<1x128x8xf32>
    %155 = vector.shape_cast %154 : vector<1x128x8xf32> to vector<128x8xf32>
    %156 = vector.shape_cast %153 : vector<128x8xf32> to vector<1x128x8xf32>
    tpu.vector_store %arg6[%c2_126, %c0_127, %c0_128], %156 {strides = array<i32>} : memref<4x128x8xf32, #tpu.memory_space<vmem>>, vector<1x128x8xf32>,
    %c0_129 = arith.constant 0 : index
    %c1_130 = arith.constant 1 : index
    %c1_131 = arith.constant 1 : index
    %c0_132 = arith.constant 0 : index
    %157 = vector.load %arg8[%c0_129, %c1_130, %c1_131, %c0_132] : memref<2x10x10x64xf32, #tpu.memory_space<vmem>>, vector<2x8x8x64xf32>
    %158 = vector.shape_cast %157 : vector<2x8x8x64xf32> to vector<128x64xf32>
    %c0_133 = arith.constant 0 : index
    %c1_134 = arith.constant 1 : index
    %c2_135 = arith.constant 2 : index
    %c0_136 = arith.constant 0 : index
    %159 = vector.load %arg8[%c0_133, %c1_134, %c2_135, %c0_136] : memref<2x10x10x64xf32, #tpu.memory_space<vmem>>, vector<2x8x8x64xf32>
    %160 = vector.shape_cast %159 : vector<2x8x8x64xf32> to vector<128x64xf32>
    %c0_137 = arith.constant 0 : index
    %c2_138 = arith.constant 2 : index
    %c1_139 = arith.constant 1 : index
    %c0_140 = arith.constant 0 : index
    %161 = vector.load %arg8[%c0_137, %c2_138, %c1_139, %c0_140] : memref<2x10x10x64xf32, #tpu.memory_space<vmem>>, vector<2x8x8x64xf32>
    %162 = vector.shape_cast %161 : vector<2x8x8x64xf32> to vector<128x64xf32>
    %c0_141 = arith.constant 0 : index
    %c2_142 = arith.constant 2 : index
    %c2_143 = arith.constant 2 : index
    %c0_144 = arith.constant 0 : index
    %163 = vector.load %arg8[%c0_141, %c2_142, %c2_143, %c0_144] : memref<2x10x10x64xf32, #tpu.memory_space<vmem>>, vector<2x8x8x64xf32>
    %164 = vector.shape_cast %163 : vector<2x8x8x64xf32> to vector<128x64xf32>
    %165 = tpu.concatenate %158, %160, %162, %164 in 1 : vector<128x64xf32>, vector<128x64xf32>, vector<128x64xf32>, vector<128x64xf32> -> vector<128x256xf32>
    %166 = arith.truncf %165 : vector<128x256xf32> to vector<128x256xbf16>
    %c3_145 = arith.constant 3 : index
    %c0_146 = arith.constant 0 : index
    %c0_147 = arith.constant 0 : index
    %167 = vector.load %arg4[%c3_145, %c0_146, %c0_147] : memref<4x256x8xbf16, #tpu.memory_space<vmem>>, vector<1x256x8xbf16>
    %168 = vector.shape_cast %167 : vector<1x256x8xbf16> to vector<256x8xbf16>
    %cst_148 = arith.constant dense<0.000000e+00> : vector<128x8xf32>
    %169 = tpu.matmul %166, %168, %cst_148 {dimension_numbers = #tpu.dot_dimension_numbers<[1], [0], [0], [1], [0, 0, 1, 1], [], []>} : vector<128x256xbf16>, vector<256x8xbf16>, vector<128x8xf32> -> vector<128x8xf32>
    %c3_149 = arith.constant 3 : index
    %c0_150 = arith.constant 0 : index
    %c0_151 = arith.constant 0 : index
    %170 = vector.load %arg5[%c3_149, %c0_150, %c0_151] : memref<4x128x8xf32, #tpu.memory_space<vmem>>, vector<1x128x8xf32>
    %171 = vector.shape_cast %170 : vector<1x128x8xf32> to vector<128x8xf32>
    %172 = arith.addf %169, %171 : vector<128x8xf32>
    %c3_152 = arith.constant 3 : index
    %c0_153 = arith.constant 0 : index
    %c0_154 = arith.constant 0 : index
    %173 = vector.load %arg6[%c3_152, %c0_153, %c0_154] : memref<4x128x8xf32, #tpu.memory_space<vmem>>, vector<1x128x8xf32>
    %174 = vector.shape_cast %173 : vector<1x128x8xf32> to vector<128x8xf32>
    %175 = vector.shape_cast %172 : vector<128x8xf32> to vector<1x128x8xf32>
    tpu.vector_store %arg6[%c3_152, %c0_153, %c0_154], %175 {strides = array<i32>} : memref<4x128x8xf32, #tpu.memory_space<vmem>>, vector<1x128x8xf32>,
    return
  }
  func.func @transform_0(%arg0: i32) -> (i32, i32, i32, i32) {
    %c0_i32 = arith.constant 0 : i32
    %c0_i32_0 = arith.constant 0 : i32
    %c0_i32_1 = arith.constant 0 : i32
    %c0_i32_2 = arith.constant 0 : i32
    return %arg0, %c0_i32, %c0_i32_0, %c0_i32_1 : i32, i32, i32, i32
  }
  func.func @transform_1(%arg0: i32) -> (i32, i32) {
    %c0_i32 = arith.constant 0 : i32
    %c0_i32_0 = arith.constant 0 : i32
    %c0_i32_1 = arith.constant 0 : i32
    return %c0_i32, %c0_i32_0 : i32, i32
  }
  func.func @transform_2(%arg0: i32) -> (i32, i32) {
    %c0_i32 = arith.constant 0 : i32
    %c0_i32_0 = arith.constant 0 : i32
    %c0_i32_1 = arith.constant 0 : i32
    return %c0_i32, %c0_i32_0 : i32, i32
  }
  func.func @transform_3(%arg0: i32) -> (i32, i32, i32) {
    %c0_i32 = arith.constant 0 : i32
    %c0_i32_0 = arith.constant 0 : i32
    %c0_i32_1 = arith.constant 0 : i32
    %c0_i32_2 = arith.constant 0 : i32
    return %c0_i32, %c0_i32_0, %c0_i32_1 : i32, i32, i32
  }
  func.func @transform_4(%arg0: i32) -> (i32, i32, i32) {
    %c0_i32 = arith.constant 0 : i32
    %c0_i32_0 = arith.constant 0 : i32
    %c0_i32_1 = arith.constant 0 : i32
    %c0_i32_2 = arith.constant 0 : i32
    return %c0_i32, %c0_i32_0, %c0_i32_1 : i32, i32, i32
  }
  func.func @transform_5(%arg0: i32) -> (i32, i32, i32) {
    %c0_i32 = arith.constant 0 : i32
    %c0_i32_0 = arith.constant 0 : i32
    %c0_i32_1 = arith.constant 0 : i32
    return %c0_i32, %arg0, %c0_i32_0 : i32, i32, i32
  }
}

</mosaic_0001>

<llo_original>
// kernel: unet_forward.1
$region0: #{unet_forward.1}
  #allocation0 [shape = 'u32[]', space=smem, size = 0x4, offset = 0x4, fixed_abs, tag = 'smem constant byte address 0x4 - core index']
  #allocation1 [shape = 'u32[144,128]{1,0:T(1,128)}', space=vmem, size = 0x12000, scoped, tag = 'internal scratch']
  #allocation2 [shape = 'f32[2,8,16,64]{3,2,1,0:T(8,128)}', space=vmem, size = 0x20000, scoped, tag = 'scratch operand']
  #allocation3 [shape = 'f32[2,10,10,64]{3,2,1,0:T(8,128)}', space=vmem, size = 0x28000, scoped, tag = 'scratch operand']
  %s0 = inlined_call_operand.vmem [shape: f32[2,18,18,1], index: 0, kind: input, shape index: {}]
  %s1 = inlined_call_operand.vmem [shape: f32[9,64], index: 1, kind: input, shape index: {}]
  %s2 = inlined_call_operand.vmem [shape: f32[1,64], index: 2, kind: input, shape index: {}]
  %s3 = inlined_call_operand.vmem [shape: bf16[4,256,8], index: 3, kind: input, shape index: {}]
  %s4 = inlined_call_operand.vmem [shape: f32[4,128,8], index: 4, kind: input, shape index: {}]
  %s5 = inlined_call_operand.vmem [shape: f32[4,128,8], index: 5, kind: output, shape index: {}]
  %s6 = sld [smem:[#allocation0]]
  $region30: #{unet_forward.1} parent=0
    _
  %s8 = ssub.s32 1, %s6
  %s9 = scalar_select 0, %s8, %s6
  // Predicated region
  $region2: #{unet_forward.1} parent=0 // pred_check
    _
  $region3: #{unet_forward.1} parent=0 // pred_check_branch
    %11 = sbr.rel (0) target = $region5
  $region4: #{unet_forward.1} parent=0 // pred_region
    _
  $region5: #{unet_forward.1} parent=0 // pred_fallthru
    _
  // Predicated region
  $region6: #{unet_forward.1} parent=0 // pred_check
    _
  $region7: #{unet_forward.1} parent=0 // pred_check_branch
    %13 = sbr.rel (0) target = $region9
  $region8: #{unet_forward.1} parent=0 // pred_region
    _
  $region9: #{unet_forward.1} parent=0 // pred_fallthru
    _
  // Predicated region
  $region10: #{unet_forward.1} parent=0 // pred_check
    _
  $region11: #{unet_forward.1} parent=0 // pred_check_branch
    %15 = sbr.rel (0) target = $region13
  $region12: #{unet_forward.1} parent=0 // pred_region
    _
  $region13: #{unet_forward.1} parent=0 // pred_fallthru
    _
  // Predicated region
  $region14: #{unet_forward.1} parent=0 // pred_check
    _
  $region15: #{unet_forward.1} parent=0 // pred_check_branch
    %17 = sbr.rel (0) target = $region17
  $region16: #{unet_forward.1} parent=0 // pred_region
    _
  $region17: #{unet_forward.1} parent=0 // pred_fallthru
    _
  // Predicated region
  $region18: #{unet_forward.1} parent=0 // pred_check
    _
  $region19: #{unet_forward.1} parent=0 // pred_check_branch
    %19 = sbr.rel (0) target = $region21
  $region20: #{unet_forward.1} parent=0 // pred_region
    _
  $region21: #{unet_forward.1} parent=0 // pred_fallthru
    _
  %v21 = vld [vmem:[%s0] sm:$0xff]
  %v22 = vld [vmem:[%s0 + $0x8] sm:$0xff]
  %v23 = vld [vmem:[%s0 + $0x10] sm:$0x3]
  %v24 = vld [vmem:[%s0 + $0x18] sm:$0xff]
  %v25 = vld [vmem:[%s0 + $0x20] sm:$0xff]
  %v26 = vld [vmem:[%s0 + $0x28] sm:$0x3]
  %v27 = vld [vmem:[%s0 + $0x30] sm:$0xff]
  %v28 = vld [vmem:[%s0 + $0x38] sm:$0xff]
  %v29 = vld [vmem:[%s0 + $0x40] sm:$0x3]
  %v30 = vld [vmem:[%s0 + $0x48] sm:$0xff]
  %v31 = vld [vmem:[%s0 + $0x50] sm:$0xff]
  %v32 = vld [vmem:[%s0 + $0x58] sm:$0x3]
  %v33 = vld [vmem:[%s0 + $0x60] sm:$0xff]
  %v34 = vld [vmem:[%s0 + $0x68] sm:$0xff]
  %v35 = vld [vmem:[%s0 + $0x70] sm:$0x3]
  %v36 = vld [vmem:[%s0 + $0x78] sm:$0xff]
  %v37 = vld [vmem:[%s0 + $0x80] sm:$0xff]
  %v38 = vld [vmem:[%s0 + $0x88] sm:$0x3]
  %v39 = vld [vmem:[%s0 + $0x90] sm:$0xff]
  %v40 = vld [vmem:[%s0 + $0x98] sm:$0xff]
  %v41 = vld [vmem:[%s0 + $0xa0] sm:$0x3]
  %v42 = vld [vmem:[%s0 + $0xa8] sm:$0xff]
  %v43 = vld [vmem:[%s0 + $0xb0] sm:$0xff]
  %v44 = vld [vmem:[%s0 + $0xb8] sm:$0x3]
  %v45 = vld [vmem:[%s0 + $0xc0] sm:$0xff]
  %v46 = vld [vmem:[%s0 + $0xc8] sm:$0xff]
  %v47 = vld [vmem:[%s0 + $0xd0] sm:$0x3]
  %v48 = vld [vmem:[%s0 + $0xd8] sm:$0xff]
  %v49 = vld [vmem:[%s0 + $0xe0] sm:$0xff]
  %v50 = vld [vmem:[%s0 + $0xe8] sm:$0x3]
  %v51 = vld [vmem:[%s0 + $0xf0] sm:$0xff]
  %v52 = vld [vmem:[%s0 + $0xf8] sm:$0xff]
  %v53 = vld [vmem:[%s0 + $0x100] sm:$0x3]
  %v54 = vld [vmem:[%s0 + $0x108] sm:$0xff]
  %v55 = vld [vmem:[%s0 + $0x110] sm:$0xff]
  %v56 = vld [vmem:[%s0 + $0x118] sm:$0x3]
  %v57 = vld [vmem:[%s0 + $0x120] sm:$0xff]
  %v58 = vld [vmem:[%s0 + $0x128] sm:$0xff]
  %v59 = vld [vmem:[%s0 + $0x130] sm:$0x3]
  %v60 = vld [vmem:[%s0 + $0x138] sm:$0xff]
  %v61 = vld [vmem:[%s0 + $0x140] sm:$0xff]
  %v62 = vld [vmem:[%s0 + $0x148] sm:$0x3]
  %v63 = vld [vmem:[%s0 + $0x150] sm:$0xff]
  %v64 = vld [vmem:[%s0 + $0x158] sm:$0xff]
  %v65 = vld [vmem:[%s0 + $0x160] sm:$0x3]
  %v66 = vld [vmem:[%s0 + $0x168] sm:$0xff]
  %v67 = vld [vmem:[%s0 + $0x170] sm:$0xff]
  %v68 = vld [vmem:[%s0 + $0x178] sm:$0x3]
  %v69 = vld [vmem:[%s0 + $0x180] sm:$0xff]
  %v70 = vld [vmem:[%s0 + $0x188] sm:$0xff]
  %v71 = vld [vmem:[%s0 + $0x190] sm:$0x3]
  %v72 = vld [vmem:[%s0 + $0x198] sm:$0xff]
  %v73 = vld [vmem:[%s0 + $0x1a0] sm:$0xff]
  %v74 = vld [vmem:[%s0 + $0x1a8] sm:$0x3]
  %v75 = vld [vmem:[%s0 + $0x1b0] sm:$0xff]
  %v76 = vld [vmem:[%s0 + $0x1b8] sm:$0xff]
  %v77 = vld [vmem:[%s0 + $0x1c0] sm:$0x3]
  %v78 = vld [vmem:[%s0 + $0x1c8] sm:$0xff]
  %v79 = vld [vmem:[%s0 + $0x1d0] sm:$0xff]
  %v80 = vld [vmem:[%s0 + $0x1d8] sm:$0x3]
  %v81 = vld [vmem:[%s0 + $0x1e0] sm:$0xff]
  %v82 = vld [vmem:[%s0 + $0x1e8] sm:$0xff]
  %v83 = vld [vmem:[%s0 + $0x1f0] sm:$0x3]
  %v84 = vld [vmem:[%s0 + $0x1f8] sm:$0xff]
  %v85 = vld [vmem:[%s0 + $0x200] sm:$0xff]
  %v86 = vld [vmem:[%s0 + $0x208] sm:$0x3]
  %v87 = vld [vmem:[%s0 + $0x210] sm:$0xff]
  %v88 = vld [vmem:[%s0 + $0x218] sm:$0xff]
  %v89 = vld [vmem:[%s0 + $0x220] sm:$0x3]
  %v90 = vld [vmem:[%s0 + $0x228] sm:$0xff]
  %v91 = vld [vmem:[%s0 + $0x230] sm:$0xff]
  %v92 = vld [vmem:[%s0 + $0x238] sm:$0x3]
  %v93 = vld [vmem:[%s0 + $0x240] sm:$0xff]
  %v94 = vld [vmem:[%s0 + $0x248] sm:$0xff]
  %v95 = vld [vmem:[%s0 + $0x250] sm:$0x3]
  %v96 = vld [vmem:[%s0 + $0x258] sm:$0xff]
  %v97 = vld [vmem:[%s0 + $0x260] sm:$0xff]
  %v98 = vld [vmem:[%s0 + $0x268] sm:$0x3]
  %v99 = vld [vmem:[%s0 + $0x270] sm:$0xff]
  %v100 = vld [vmem:[%s0 + $0x278] sm:$0xff]
  %v101 = vld [vmem:[%s0 + $0x280] sm:$0x3]
  %v102 = vld [vmem:[%s0 + $0x288] sm:$0xff]
  %v103 = vld [vmem:[%s0 + $0x290] sm:$0xff]
  %v104 = vld [vmem:[%s0 + $0x298] sm:$0x3]
  %v105 = vld [vmem:[%s0 + $0x2a0] sm:$0xff]
  %v106 = vld [vmem:[%s0 + $0x2a8] sm:$0xff]
  %v107 = vld [vmem:[%s0 + $0x2b0] sm:$0x3]
  %v108 = vld [vmem:[%s0 + $0x2b8] sm:$0xff]
  %v109 = vld [vmem:[%s0 + $0x2c0] sm:$0xff]
  %v110 = vld [vmem:[%s0 + $0x2c8] sm:$0x3]
  %v111 = vld [vmem:[%s0 + $0x2d0] sm:$0xff]
  %v112 = vld [vmem:[%s0 + $0x2d8] sm:$0xff]
  %v113 = vld [vmem:[%s0 + $0x2e0] sm:$0x3]
  %v114 = vld [vmem:[%s0 + $0x2e8] sm:$0xff]
  %v115 = vld [vmem:[%s0 + $0x2f0] sm:$0xff]
  %v116 = vld [vmem:[%s0 + $0x2f8] sm:$0x3]
  %v117 = vld [vmem:[%s0 + $0x300] sm:$0xff]
  %v118 = vld [vmem:[%s0 + $0x308] sm:$0xff]
  %v119 = vld [vmem:[%s0 + $0x310] sm:$0x3]
  %v120 = vld [vmem:[%s0 + $0x318] sm:$0xff]
  %v121 = vld [vmem:[%s0 + $0x320] sm:$0xff]
  %v122 = vld [vmem:[%s0 + $0x328] sm:$0x3]
  %v123 = vld [vmem:[%s0 + $0x330] sm:$0xff]
  %v124 = vld [vmem:[%s0 + $0x338] sm:$0xff]
  %v125 = vld [vmem:[%s0 + $0x340] sm:$0x3]
  %v126 = vld [vmem:[%s0 + $0x348] sm:$0xff]
  %v127 = vld [vmem:[%s0 + $0x350] sm:$0xff]
  %v128 = vld [vmem:[%s0 + $0x358] sm:$0x3]
  %v129 = vld [vmem:[%s1] sm:$0x1]
  %131 = vset.pattern.permute.xlu0 0
  %132 = vperm.xlu0 %131, %v21
  %v133 = vpop.permute.xlu0 %132
  %136 = vset.pattern.permute.xlu0 0
  %137 = vperm.xlu0 %136, %v22
  %v138 = vpop.permute.xlu0 %137
  %141 = vset.pattern.permute.xlu0 0
  %142 = vperm.xlu0 %141, %v24
  %v143 = vpop.permute.xlu0 %142
  %146 = vset.pattern.permute.xlu0 0
  %147 = vperm.xlu0 %146, %v25
  %v148 = vpop.permute.xlu0 %147
  %151 = vset.pattern.permute.xlu0 0
  %152 = vperm.xlu0 %151, %v27
  %v153 = vpop.permute.xlu0 %152
  %156 = vset.pattern.permute.xlu0 0
  %157 = vperm.xlu0 %156, %v28
  %v158 = vpop.permute.xlu0 %157
  %161 = vset.pattern.permute.xlu0 0
  %162 = vperm.xlu0 %161, %v30
  %v163 = vpop.permute.xlu0 %162
  %166 = vset.pattern.permute.xlu0 0
  %167 = vperm.xlu0 %166, %v31
  %v168 = vpop.permute.xlu0 %167
  %171 = vset.pattern.permute.xlu0 0
  %172 = vperm.xlu0 %171, %v33
  %v173 = vpop.permute.xlu0 %172
  %176 = vset.pattern.permute.xlu0 0
  %177 = vperm.xlu0 %176, %v34
  %v178 = vpop.permute.xlu0 %177
  %181 = vset.pattern.permute.xlu0 0
  %182 = vperm.xlu0 %181, %v36
  %v183 = vpop.permute.xlu0 %182
  %186 = vset.pattern.permute.xlu0 0
  %187 = vperm.xlu0 %186, %v37
  %v188 = vpop.permute.xlu0 %187
  %191 = vset.pattern.permute.xlu0 0
  %192 = vperm.xlu0 %191, %v39
  %v193 = vpop.permute.xlu0 %192
  %196 = vset.pattern.permute.xlu0 0
  %197 = vperm.xlu0 %196, %v40
  %v198 = vpop.permute.xlu0 %197
  %201 = vset.pattern.permute.xlu0 0
  %202 = vperm.xlu0 %201, %v42
  %v203 = vpop.permute.xlu0 %202
  %206 = vset.pattern.permute.xlu0 0
  %207 = vperm.xlu0 %206, %v43
  %v208 = vpop.permute.xlu0 %207
  %211 = vset.pattern.permute.xlu0 0
  %212 = vperm.xlu0 %211, %v45
  %v213 = vpop.permute.xlu0 %212
  %216 = vset.pattern.permute.xlu0 0
  %217 = vperm.xlu0 %216, %v46
  %v218 = vpop.permute.xlu0 %217
  %221 = vset.pattern.permute.xlu0 0
  %222 = vperm.xlu0 %221, %v48
  %v223 = vpop.permute.xlu0 %222
  %226 = vset.pattern.permute.xlu0 0
  %227 = vperm.xlu0 %226, %v49
  %v228 = vpop.permute.xlu0 %227
  %231 = vset.pattern.permute.xlu0 0
  %232 = vperm.xlu0 %231, %v51
  %v233 = vpop.permute.xlu0 %232
  %236 = vset.pattern.permute.xlu0 0
  %237 = vperm.xlu0 %236, %v52
  %v238 = vpop.permute.xlu0 %237
  %241 = vset.pattern.permute.xlu0 0
  %242 = vperm.xlu0 %241, %v54
  %v243 = vpop.permute.xlu0 %242
  %246 = vset.pattern.permute.xlu0 0
  %247 = vperm.xlu0 %246, %v55
  %v248 = vpop.permute.xlu0 %247
  %251 = vset.pattern.permute.xlu0 0
  %252 = vperm.xlu0 %251, %v57
  %v253 = vpop.permute.xlu0 %252
  %256 = vset.pattern.permute.xlu0 0
  %257 = vperm.xlu0 %256, %v58
  %v258 = vpop.permute.xlu0 %257
  %261 = vset.pattern.permute.xlu0 0
  %262 = vperm.xlu0 %261, %v60
  %v263 = vpop.permute.xlu0 %262
  %266 = vset.pattern.permute.xlu0 0
  %267 = vperm.xlu0 %266, %v61
  %v268 = vpop.permute.xlu0 %267
  %271 = vset.pattern.permute.xlu0 0
  %272 = vperm.xlu0 %271, %v63
  %v273 = vpop.permute.xlu0 %272
  %276 = vset.pattern.permute.xlu0 0
  %277 = vperm.xlu0 %276, %v64
  %v278 = vpop.permute.xlu0 %277
  %281 = vset.pattern.permute.xlu0 0
  %282 = vperm.xlu0 %281, %v66
  %v283 = vpop.permute.xlu0 %282
  %286 = vset.pattern.permute.xlu0 0
  %287 = vperm.xlu0 %286, %v67
  %v288 = vpop.permute.xlu0 %287
  %291 = vset.pattern.permute.xlu0 0
  %292 = vperm.xlu0 %291, %v75
  %v293 = vpop.permute.xlu0 %292
  %296 = vset.pattern.permute.xlu0 0
  %297 = vperm.xlu0 %296, %v76
  %v298 = vpop.permute.xlu0 %297
  %301 = vset.pattern.permute.xlu0 0
  %302 = vperm.xlu0 %301, %v78
  %v303 = vpop.permute.xlu0 %302
  %306 = vset.pattern.permute.xlu0 0
  %307 = vperm.xlu0 %306, %v79
  %v308 = vpop.permute.xlu0 %307
  %311 = vset.pattern.permute.xlu0 0
  %312 = vperm.xlu0 %311, %v81
  %v313 = vpop.permute.xlu0 %312
  %316 = vset.pattern.permute.xlu0 0
  %317 = vperm.xlu0 %316, %v82
  %v318 = vpop.permute.xlu0 %317
  %321 = vset.pattern.permute.xlu0 0
  %322 = vperm.xlu0 %321, %v84
  %v323 = vpop.permute.xlu0 %322
  %326 = vset.pattern.permute.xlu0 0
  %327 = vperm.xlu0 %326, %v85
  %v328 = vpop.permute.xlu0 %327
  %331 = vset.pattern.permute.xlu0 0
  %332 = vperm.xlu0 %331, %v87
  %v333 = vpop.permute.xlu0 %332
  %336 = vset.pattern.permute.xlu0 0
  %337 = vperm.xlu0 %336, %v88
  %v338 = vpop.permute.xlu0 %337
  %341 = vset.pattern.permute.xlu0 0
  %342 = vperm.xlu0 %341, %v90
  %v343 = vpop.permute.xlu0 %342
  %346 = vset.pattern.permute.xlu0 0
  %347 = vperm.xlu0 %346, %v91
  %v348 = vpop.permute.xlu0 %347
  %351 = vset.pattern.permute.xlu0 0
  %352 = vperm.xlu0 %351, %v93
  %v353 = vpop.permute.xlu0 %352
  %356 = vset.pattern.permute.xlu0 0
  %357 = vperm.xlu0 %356, %v94
  %v358 = vpop.permute.xlu0 %357
  %361 = vset.pattern.permute.xlu0 0
  %362 = vperm.xlu0 %361, %v96
  %v363 = vpop.permute.xlu0 %362
  %366 = vset.pattern.permute.xlu0 0
  %367 = vperm.xlu0 %366, %v97
  %v368 = vpop.permute.xlu0 %367
  %371 = vset.pattern.permute.xlu0 0
  %372 = vperm.xlu0 %371, %v99
  %v373 = vpop.permute.xlu0 %372
  %376 = vset.pattern.permute.xlu0 0
  %377 = vperm.xlu0 %376, %v100
  %v378 = vpop.permute.xlu0 %377
  %381 = vset.pattern.permute.xlu0 0
  %382 = vperm.xlu0 %381, %v102
  %v383 = vpop.permute.xlu0 %382
  %386 = vset.pattern.permute.xlu0 0
  %387 = vperm.xlu0 %386, %v103
  %v388 = vpop.permute.xlu0 %387
  %391 = vset.pattern.permute.xlu0 0
  %392 = vperm.xlu0 %391, %v105
  %v393 = vpop.permute.xlu0 %392
  %396 = vset.pattern.permute.xlu0 0
  %397 = vperm.xlu0 %396, %v106
  %v398 = vpop.permute.xlu0 %397
  %401 = vset.pattern.permute.xlu0 0
  %402 = vperm.xlu0 %401, %v108
  %v403 = vpop.permute.xlu0 %402
  %406 = vset.pattern.permute.xlu0 0
  %407 = vperm.xlu0 %406, %v109
  %v408 = vpop.permute.xlu0 %407
  %411 = vset.pattern.permute.xlu0 0
  %412 = vperm.xlu0 %411, %v111
  %v413 = vpop.permute.xlu0 %412
  %416 = vset.pattern.permute.xlu0 0
  %417 = vperm.xlu0 %416, %v112
  %v418 = vpop.permute.xlu0 %417
  %421 = vset.pattern.permute.xlu0 0
  %422 = vperm.xlu0 %421, %v114
  %v423 = vpop.permute.xlu0 %422
  %426 = vset.pattern.permute.xlu0 0
  %427 = vperm.xlu0 %426, %v115
  %v428 = vpop.permute.xlu0 %427
  %431 = vset.pattern.permute.xlu0 0
  %432 = vperm.xlu0 %431, %v117
  %v433 = vpop.permute.xlu0 %432
  %436 = vset.pattern.permute.xlu0 0
  %437 = vperm.xlu0 %436, %v118
  %v438 = vpop.permute.xlu0 %437
  %441 = vset.pattern.permute.xlu0 0
  %442 = vperm.xlu0 %441, %v120
  %v443 = vpop.permute.xlu0 %442
  %446 = vset.pattern.permute.xlu0 0
  %447 = vperm.xlu0 %446, %v121
  %v448 = vpop.permute.xlu0 %447
  %v450 = vlaneseq
  %v451 = vshrl.u32 %v450, 7
  %v452 = vsub.s32 0, %v451
  %v453 = vrot.slane %v129, %v452
  %v454 = vmul.f32 %v133, %v453
  %v455 = vmul.f32 %v138, %v453
  %v456 = vmul.f32 %v143, %v453
  %v457 = vmul.f32 %v148, %v453
  %v458 = vmul.f32 %v153, %v453
  %v459 = vmul.f32 %v158, %v453
  %v460 = vmul.f32 %v163, %v453
  %v461 = vmul.f32 %v168, %v453
  %v462 = vmul.f32 %v173, %v453
  %v463 = vmul.f32 %v178, %v453
  %v464 = vmul.f32 %v183, %v453
  %v465 = vmul.f32 %v188, %v453
  %v466 = vmul.f32 %v193, %v453
  %v467 = vmul.f32 %v198, %v453
  %v468 = vmul.f32 %v203, %v453
  %v469 = vmul.f32 %v208, %v453
  %v470 = vmul.f32 %v213, %v453
  %v471 = vmul.f32 %v218, %v453
  %v472 = vmul.f32 %v223, %v453
  %v473 = vmul.f32 %v228, %v453
  %v474 = vmul.f32 %v233, %v453
  %v475 = vmul.f32 %v238, %v453
  %v476 = vmul.f32 %v243, %v453
  %v477 = vmul.f32 %v248, %v453
  %v478 = vmul.f32 %v253, %v453
  %v479 = vmul.f32 %v258, %v453
  %v480 = vmul.f32 %v263, %v453
  %v481 = vmul.f32 %v268, %v453
  %v482 = vmul.f32 %v273, %v453
  %v483 = vmul.f32 %v278, %v453
  %v484 = vmul.f32 %v283, %v453
  %v485 = vmul.f32 %v288, %v453
  %v486 = vmul.f32 %v293, %v453
  %v487 = vmul.f32 %v298, %v453
  %v488 = vmul.f32 %v303, %v453
  %v489 = vmul.f32 %v308, %v453
  %v490 = vmul.f32 %v313, %v453
  %v491 = vmul.f32 %v318, %v453
  %v492 = vmul.f32 %v323, %v453
  %v493 = vmul.f32 %v328, %v453
  %v494 = vmul.f32 %v333, %v453
  %v495 = vmul.f32 %v338, %v453
  %v496 = vmul.f32 %v343, %v453
  %v497 = vmul.f32 %v348, %v453
  %v498 = vmul.f32 %v353, %v453
  %v499 = vmul.f32 %v358, %v453
  %v500 = vmul.f32 %v363, %v453
  %v501 = vmul.f32 %v368, %v453
  %v502 = vmul.f32 %v373, %v453
  %v503 = vmul.f32 %v378, %v453
  %v504 = vmul.f32 %v383, %v453
  %v505 = vmul.f32 %v388, %v453
  %v506 = vmul.f32 %v393, %v453
  %v507 = vmul.f32 %v398, %v453
  %v508 = vmul.f32 %v403, %v453
  %v509 = vmul.f32 %v408, %v453
  %v510 = vmul.f32 %v413, %v453
  %v511 = vmul.f32 %v418, %v453
  %v512 = vmul.f32 %v423, %v453
  %v513 = vmul.f32 %v428, %v453
  %v514 = vmul.f32 %v433, %v453
  %v515 = vmul.f32 %v438, %v453
  %v516 = vmul.f32 %v443, %v453
  %v517 = vmul.f32 %v448, %v453
  %v518 = vadd.f32 %v454, 0.0
  %v519 = vadd.f32 %v455, 0.0
  %v520 = vadd.f32 %v456, 0.0
  %v521 = vadd.f32 %v457, 0.0
  %v522 = vadd.f32 %v458, 0.0
  %v523 = vadd.f32 %v459, 0.0
  %v524 = vadd.f32 %v460, 0.0
  %v525 = vadd.f32 %v461, 0.0
  %v526 = vadd.f32 %v462, 0.0
  %v527 = vadd.f32 %v463, 0.0
  %v528 = vadd.f32 %v464, 0.0
  %v529 = vadd.f32 %v465, 0.0
  %v530 = vadd.f32 %v466, 0.0
  %v531 = vadd.f32 %v467, 0.0
  %v532 = vadd.f32 %v468, 0.0
  %v533 = vadd.f32 %v469, 0.0
  %v534 = vadd.f32 %v470, 0.0
  %v535 = vadd.f32 %v471, 0.0
  %v536 = vadd.f32 %v472, 0.0
  %v537 = vadd.f32 %v473, 0.0
  %v538 = vadd.f32 %v474, 0.0
  %v539 = vadd.f32 %v475, 0.0
  %v540 = vadd.f32 %v476, 0.0
  %v541 = vadd.f32 %v477, 0.0
  %v542 = vadd.f32 %v478, 0.0
  %v543 = vadd.f32 %v479, 0.0
  %v544 = vadd.f32 %v480, 0.0
  %v545 = vadd.f32 %v481, 0.0
  %v546 = vadd.f32 %v482, 0.0
  %v547 = vadd.f32 %v483, 0.0
  %v548 = vadd.f32 %v484, 0.0
  %v549 = vadd.f32 %v485, 0.0
  %v550 = vadd.f32 %v486, 0.0
  %v551 = vadd.f32 %v487, 0.0
  %v552 = vadd.f32 %v488, 0.0
  %v553 = vadd.f32 %v489, 0.0
  %v554 = vadd.f32 %v490, 0.0
  %v555 = vadd.f32 %v491, 0.0
  %v556 = vadd.f32 %v492, 0.0
  %v557 = vadd.f32 %v493, 0.0
  %v558 = vadd.f32 %v494, 0.0
  %v559 = vadd.f32 %v495, 0.0
  %v560 = vadd.f32 %v496, 0.0
  %v561 = vadd.f32 %v497, 0.0
  %v562 = vadd.f32 %v498, 0.0
  %v563 = vadd.f32 %v499, 0.0
  %v564 = vadd.f32 %v500, 0.0
  %v565 = vadd.f32 %v501, 0.0
  %v566 = vadd.f32 %v502, 0.0
  %v567 = vadd.f32 %v503, 0.0
  %v568 = vadd.f32 %v504, 0.0
  %v569 = vadd.f32 %v505, 0.0
  %v570 = vadd.f32 %v506, 0.0
  %v571 = vadd.f32 %v507, 0.0
  %v572 = vadd.f32 %v508, 0.0
  %v573 = vadd.f32 %v509, 0.0
  %v574 = vadd.f32 %v510, 0.0
  %v575 = vadd.f32 %v511, 0.0
  %v576 = vadd.f32 %v512, 0.0
  %v577 = vadd.f32 %v513, 0.0
  %v578 = vadd.f32 %v514, 0.0
  %v579 = vadd.f32 %v515, 0.0
  %v580 = vadd.f32 %v516, 0.0
  %v581 = vadd.f32 %v517, 0.0
  %v582 = vld [vmem:[%s1 + $0x1] sm:$0x1]
  %584 = vset.pattern.permute.xlu0 0
  %585 = vperm.xlu0 %584, %v23
  %v586 = vpop.permute.xlu0 %585
  %589 = vset.pattern.permute.xlu0 0
  %590 = vperm.xlu0 %589, %v26
  %v591 = vpop.permute.xlu0 %590
  %594 = vset.pattern.permute.xlu0 0
  %595 = vperm.xlu0 %594, %v29
  %v596 = vpop.permute.xlu0 %595
  %599 = vset.pattern.permute.xlu0 0
  %600 = vperm.xlu0 %599, %v32
  %v601 = vpop.permute.xlu0 %600
  %604 = vset.pattern.permute.xlu0 0
  %605 = vperm.xlu0 %604, %v35
  %v606 = vpop.permute.xlu0 %605
  %609 = vset.pattern.permute.xlu0 0
  %610 = vperm.xlu0 %609, %v38
  %v611 = vpop.permute.xlu0 %610
  %614 = vset.pattern.permute.xlu0 0
  %615 = vperm.xlu0 %614, %v41
  %v616 = vpop.permute.xlu0 %615
  %619 = vset.pattern.permute.xlu0 0
  %620 = vperm.xlu0 %619, %v44
  %v621 = vpop.permute.xlu0 %620
  %624 = vset.pattern.permute.xlu0 0
  %625 = vperm.xlu0 %624, %v47
  %v626 = vpop.permute.xlu0 %625
  %629 = vset.pattern.permute.xlu0 0
  %630 = vperm.xlu0 %629, %v50
  %v631 = vpop.permute.xlu0 %630
  %634 = vset.pattern.permute.xlu0 0
  %635 = vperm.xlu0 %634, %v53
  %v636 = vpop.permute.xlu0 %635
  %639 = vset.pattern.permute.xlu0 0
  %640 = vperm.xlu0 %639, %v56
  %v641 = vpop.permute.xlu0 %640
  %644 = vset.pattern.permute.xlu0 0
  %645 = vperm.xlu0 %644, %v59
  %v646 = vpop.permute.xlu0 %645
  %649 = vset.pattern.permute.xlu0 0
  %650 = vperm.xlu0 %649, %v62
  %v651 = vpop.permute.xlu0 %650
  %654 = vset.pattern.permute.xlu0 0
  %655 = vperm.xlu0 %654, %v65
  %v656 = vpop.permute.xlu0 %655
  %659 = vset.pattern.permute.xlu0 0
  %660 = vperm.xlu0 %659, %v68
  %v661 = vpop.permute.xlu0 %660
  %664 = vset.pattern.permute.xlu0 0
  %665 = vperm.xlu0 %664, %v77
  %v666 = vpop.permute.xlu0 %665
  %669 = vset.pattern.permute.xlu0 0
  %670 = vperm.xlu0 %669, %v80
  %v671 = vpop.permute.xlu0 %670
  %674 = vset.pattern.permute.xlu0 0
  %675 = vperm.xlu0 %674, %v83
  %v676 = vpop.permute.xlu0 %675
  %679 = vset.pattern.permute.xlu0 0
  %680 = vperm.xlu0 %679, %v86
  %v681 = vpop.permute.xlu0 %680
  %684 = vset.pattern.permute.xlu0 0
  %685 = vperm.xlu0 %684, %v89
  %v686 = vpop.permute.xlu0 %685
  %689 = vset.pattern.permute.xlu0 0
  %690 = vperm.xlu0 %689, %v92
  %v691 = vpop.permute.xlu0 %690
  %694 = vset.pattern.permute.xlu0 0
  %695 = vperm.xlu0 %694, %v95
  %v696 = vpop.permute.xlu0 %695
  %699 = vset.pattern.permute.xlu0 0
  %700 = vperm.xlu0 %699, %v98
  %v701 = vpop.permute.xlu0 %700
  %704 = vset.pattern.permute.xlu0 0
  %705 = vperm.xlu0 %704, %v101
  %v706 = vpop.permute.xlu0 %705
  %709 = vset.pattern.permute.xlu0 0
  %710 = vperm.xlu0 %709, %v104
  %v711 = vpop.permute.xlu0 %710
  %714 = vset.pattern.permute.xlu0 0
  %715 = vperm.xlu0 %714, %v107
  %v716 = vpop.permute.xlu0 %715
  %719 = vset.pattern.permute.xlu0 0
  %720 = vperm.xlu0 %719, %v110
  %v721 = vpop.permute.xlu0 %720
  %724 = vset.pattern.permute.xlu0 0
  %725 = vperm.xlu0 %724, %v113
  %v726 = vpop.permute.xlu0 %725
  %729 = vset.pattern.permute.xlu0 0
  %730 = vperm.xlu0 %729, %v116
  %v731 = vpop.permute.xlu0 %730
  %734 = vset.pattern.permute.xlu0 0
  %735 = vperm.xlu0 %734, %v119
  %v736 = vpop.permute.xlu0 %735
  %739 = vset.pattern.permute.xlu0 0
  %740 = vperm.xlu0 %739, %v122
  %v741 = vpop.permute.xlu0 %740
  %v743 = vlaneseq
  %v744 = vshrl.u32 %v743, 7
  %v745 = vsub.s32 0, %v744
  %v746 = vrot.slane %v582, %v745
  %v747 = vmul.f32 %v133, %v746
  %v748 = vmul.f32 %v138, %v746
  %v749 = vmul.f32 %v586, %v746
  %v750 = vmul.f32 %v143, %v746
  %v751 = vmul.f32 %v148, %v746
  %v752 = vmul.f32 %v591, %v746
  %v753 = vmul.f32 %v153, %v746
  %v754 = vmul.f32 %v158, %v746
  %v755 = vmul.f32 %v596, %v746
  %v756 = vmul.f32 %v163, %v746
  %v757 = vmul.f32 %v168, %v746
  %v758 = vmul.f32 %v601, %v746
  %v759 = vmul.f32 %v173, %v746
  %v760 = vmul.f32 %v178, %v746
  %v761 = vmul.f32 %v606, %v746
  %v762 = vmul.f32 %v183, %v746
  %v763 = vmul.f32 %v188, %v746
  %v764 = vmul.f32 %v611, %v746
  %v765 = vmul.f32 %v193, %v746
  %v766 = vmul.f32 %v198, %v746
  %v767 = vmul.f32 %v616, %v746
  %v768 = vmul.f32 %v203, %v746
  %v769 = vmul.f32 %v208, %v746
  %v770 = vmul.f32 %v621, %v746
  %v771 = vmul.f32 %v213, %v746
  %v772 = vmul.f32 %v218, %v746
  %v773 = vmul.f32 %v626, %v746
  %v774 = vmul.f32 %v223, %v746
  %v775 = vmul.f32 %v228, %v746
  %v776 = vmul.f32 %v631, %v746
  %v777 = vmul.f32 %v233, %v746
  %v778 = vmul.f32 %v238, %v746
  %v779 = vmul.f32 %v636, %v746
  %v780 = vmul.f32 %v243, %v746
  %v781 = vmul.f32 %v248, %v746
  %v782 = vmul.f32 %v641, %v746
  %v783 = vmul.f32 %v253, %v746
  %v784 = vmul.f32 %v258, %v746
  %v785 = vmul.f32 %v646, %v746
  %v786 = vmul.f32 %v263, %v746
  %v787 = vmul.f32 %v268, %v746
  %v788 = vmul.f32 %v651, %v746
  %v789 = vmul.f32 %v273, %v746
  %v790 = vmul.f32 %v278, %v746
  %v791 = vmul.f32 %v656, %v746
  %v792 = vmul.f32 %v283, %v746
  %v793 = vmul.f32 %v288, %v746
  %v794 = vmul.f32 %v661, %v746
  %v795 = vmul.f32 %v293, %v746
  %v796 = vmul.f32 %v298, %v746
  %v797 = vmul.f32 %v666, %v746
  %v798 = vmul.f32 %v303, %v746
  %v799 = vmul.f32 %v308, %v746
  %v800 = vmul.f32 %v671, %v746
  %v801 = vmul.f32 %v313, %v746
  %v802 = vmul.f32 %v318, %v746
  %v803 = vmul.f32 %v676, %v746
  %v804 = vmul.f32 %v323, %v746
  %v805 = vmul.f32 %v328, %v746
  %v806 = vmul.f32 %v681, %v746
  %v807 = vmul.f32 %v333, %v746
  %v808 = vmul.f32 %v338, %v746
  %v809 = vmul.f32 %v686, %v746
  %v810 = vmul.f32 %v343, %v746
  %v811 = vmul.f32 %v348, %v746
  %v812 = vmul.f32 %v691, %v746
  %v813 = vmul.f32 %v353, %v746
  %v814 = vmul.f32 %v358, %v746
  %v815 = vmul.f32 %v696, %v746
  %v816 = vmul.f32 %v363, %v746
  %v817 = vmul.f32 %v368, %v746
  %v818 = vmul.f32 %v701, %v746
  %v819 = vmul.f32 %v373, %v746
  %v820 = vmul.f32 %v378, %v746
  %v821 = vmul.f32 %v706, %v746
  %v822 = vmul.f32 %v383, %v746
  %v823 = vmul.f32 %v388, %v746
  %v824 = vmul.f32 %v711, %v746
  %v825 = vmul.f32 %v393, %v746
  %v826 = vmul.f32 %v398, %v746
  %v827 = vmul.f32 %v716, %v746
  %v828 = vmul.f32 %v403, %v746
  %v829 = vmul.f32 %v408, %v746
  %v830 = vmul.f32 %v721, %v746
  %v831 = vmul.f32 %v413, %v746
  %v832 = vmul.f32 %v418, %v746
  %v833 = vmul.f32 %v726, %v746
  %v834 = vmul.f32 %v423, %v746
  %v835 = vmul.f32 %v428, %v746
  %v836 = vmul.f32 %v731, %v746
  %v837 = vmul.f32 %v433, %v746
  %v838 = vmul.f32 %v438, %v746
  %v839 = vmul.f32 %v736, %v746
  %v840 = vmul.f32 %v443, %v746
  %v841 = vmul.f32 %v448, %v746
  %v842 = vmul.f32 %v741, %v746
  %vm939 = vcmask 1046528
  %v940 = vrot.slane %v747, 1
  %v941 = vrot.slane %v748, 1
  %v942 = vsel %vm939, %v940, %v941
  %v943 = vrot.slane %v749, 1
  %v944 = vsel %vm939, %v941, %v943
  %v945 = vrot.slane %v750, 1
  %v946 = vrot.slane %v751, 1
  %v947 = vsel %vm939, %v945, %v946
  %v948 = vrot.slane %v752, 1
  %v949 = vsel %vm939, %v946, %v948
  %v950 = vrot.slane %v753, 1
  %v951 = vrot.slane %v754, 1
  %v952 = vsel %vm939, %v950, %v951
  %v953 = vrot.slane %v755, 1
  %v954 = vsel %vm939, %v951, %v953
  %v955 = vrot.slane %v756, 1
  %v956 = vrot.slane %v757, 1
  %v957 = vsel %vm939, %v955, %v956
  %v958 = vrot.slane %v758, 1
  %v959 = vsel %vm939, %v956, %v958
  %v960 = vrot.slane %v759, 1
  %v961 = vrot.slane %v760, 1
  %v962 = vsel %vm939, %v960, %v961
  %v963 = vrot.slane %v761, 1
  %v964 = vsel %vm939, %v961, %v963
  %v965 = vrot.slane %v762, 1
  %v966 = vrot.slane %v763, 1
  %v967 = vsel %vm939, %v965, %v966
  %v968 = vrot.slane %v764, 1
  %v969 = vsel %vm939, %v966, %v968
  %v970 = vrot.slane %v765, 1
  %v971 = vrot.slane %v766, 1
  %v972 = vsel %vm939, %v970, %v971
  %v973 = vrot.slane %v767, 1
  %v974 = vsel %vm939, %v971, %v973
  %v975 = vrot.slane %v768, 1
  %v976 = vrot.slane %v769, 1
  %v977 = vsel %vm939, %v975, %v976
  %v978 = vrot.slane %v770, 1
  %v979 = vsel %vm939, %v976, %v978
  %v980 = vrot.slane %v771, 1
  %v981 = vrot.slane %v772, 1
  %v982 = vsel %vm939, %v980, %v981
  %v983 = vrot.slane %v773, 1
  %v984 = vsel %vm939, %v981, %v983
  %v985 = vrot.slane %v774, 1
  %v986 = vrot.slane %v775, 1
  %v987 = vsel %vm939, %v985, %v986
  %v988 = vrot.slane %v776, 1
  %v989 = vsel %vm939, %v986, %v988
  %v990 = vrot.slane %v777, 1
  %v991 = vrot.slane %v778, 1
  %v992 = vsel %vm939, %v990, %v991
  %v993 = vrot.slane %v779, 1
  %v994 = vsel %vm939, %v991, %v993
  %v995 = vrot.slane %v780, 1
  %v996 = vrot.slane %v781, 1
  %v997 = vsel %vm939, %v995, %v996
  %v998 = vrot.slane %v782, 1
  %v999 = vsel %vm939, %v996, %v998
  %v1000 = vrot.slane %v783, 1
  %v1001 = vrot.slane %v784, 1
  %v1002 = vsel %vm939, %v1000, %v1001
  %v1003 = vrot.slane %v785, 1
  %v1004 = vsel %vm939, %v1001, %v1003
  %v1005 = vrot.slane %v786, 1
  %v1006 = vrot.slane %v787, 1
  %v1007 = vsel %vm939, %v1005, %v1006
  %v1008 = vrot.slane %v788, 1
  %v1009 = vsel %vm939, %v1006, %v1008
  %v1010 = vrot.slane %v789, 1
  %v1011 = vrot.slane %v790, 1
  %v1012 = vsel %vm939, %v1010, %v1011
  %v1013 = vrot.slane %v791, 1
  %v1014 = vsel %vm939, %v1011, %v1013
  %v1015 = vrot.slane %v792, 1
  %v1016 = vrot.slane %v793, 1
  %v1017 = vsel %vm939, %v1015, %v1016
  %v1018 = vrot.slane %v794, 1
  %v1019 = vsel %vm939, %v1016, %v1018
  %v1020 = vrot.slane %v795, 1
  %v1021 = vrot.slane %v796, 1
  %v1022 = vsel %vm939, %v1020, %v1021
  %v1023 = vrot.slane %v797, 1
  %v1024 = vsel %vm939, %v1021, %v1023
  %v1025 = vrot.slane %v798, 1
  %v1026 = vrot.slane %v799, 1
  %v1027 = vsel %vm939, %v1025, %v1026
  %v1028 = vrot.slane %v800, 1
  %v1029 = vsel %vm939, %v1026, %v1028
  %v1030 = vrot.slane %v801, 1
  %v1031 = vrot.slane %v802, 1
  %v1032 = vsel %vm939, %v1030, %v1031
  %v1033 = vrot.slane %v803, 1
  %v1034 = vsel %vm939, %v1031, %v1033
  %v1035 = vrot.slane %v804, 1
  %v1036 = vrot.slane %v805, 1
  %v1037 = vsel %vm939, %v1035, %v1036
  %v1038 = vrot.slane %v806, 1
  %v1039 = vsel %vm939, %v1036, %v1038
  %v1040 = vrot.slane %v807, 1
  %v1041 = vrot.slane %v808, 1
  %v1042 = vsel %vm939, %v1040, %v1041
  %v1043 = vrot.slane %v809, 1
  %v1044 = vsel %vm939, %v1041, %v1043
  %v1045 = vrot.slane %v810, 1
  %v1046 = vrot.slane %v811, 1
  %v1047 = vsel %vm939, %v1045, %v1046
  %v1048 = vrot.slane %v812, 1
  %v1049 = vsel %vm939, %v1046, %v1048
  %v1050 = vrot.slane %v813, 1
  %v1051 = vrot.slane %v814, 1
  %v1052 = vsel %vm939, %v1050, %v1051
  %v1053 = vrot.slane %v815, 1
  %v1054 = vsel %vm939, %v1051, %v1053
  %v1055 = vrot.slane %v816, 1
  %v1056 = vrot.slane %v817, 1
  %v1057 = vsel %vm939, %v1055, %v1056
  %v1058 = vrot.slane %v818, 1
  %v1059 = vsel %vm939, %v1056, %v1058
  %v1060 = vrot.slane %v819, 1
  %v1061 = vrot.slane %v820, 1
  %v1062 = vsel %vm939, %v1060, %v1061
  %v1063 = vrot.slane %v821, 1
  %v1064 = vsel %vm939, %v1061, %v1063
  %v1065 = vrot.slane %v822, 1
  %v1066 = vrot.slane %v823, 1
  %v1067 = vsel %vm939, %v1065, %v1066
  %v1068 = vrot.slane %v824, 1
  %v1069 = vsel %vm939, %v1066, %v1068
  %v1070 = vrot.slane %v825, 1
  %v1071 = vrot.slane %v826, 1
  %v1072 = vsel %vm939, %v1070, %v1071
  %v1073 = vrot.slane %v827, 1
  %v1074 = vsel %vm939, %v1071, %v1073
  %v1075 = vrot.slane %v828, 1
  %v1076 = vrot.slane %v829, 1
  %v1077 = vsel %vm939, %v1075, %v1076
  %v1078 = vrot.slane %v830, 1
  %v1079 = vsel %vm939, %v1076, %v1078
  %v1080 = vrot.slane %v831, 1
  %v1081 = vrot.slane %v832, 1
  %v1082 = vsel %vm939, %v1080, %v1081
  %v1083 = vrot.slane %v833, 1
  %v1084 = vsel %vm939, %v1081, %v1083
  %v1085 = vrot.slane %v834, 1
  %v1086 = vrot.slane %v835, 1
  %v1087 = vsel %vm939, %v1085, %v1086
  %v1088 = vrot.slane %v836, 1
  %v1089 = vsel %vm939, %v1086, %v1088
  %v1090 = vrot.slane %v837, 1
  %v1091 = vrot.slane %v838, 1
  %v1092 = vsel %vm939, %v1090, %v1091
  %v1093 = vrot.slane %v839, 1
  %v1094 = vsel %vm939, %v1091, %v1093
  %v1095 = vrot.slane %v840, 1
  %v1096 = vrot.slane %v841, 1
  %v1097 = vsel %vm939, %v1095, %v1096
  %v1098 = vrot.slane %v842, 1
  %v1099 = vsel %vm939, %v1096, %v1098
  %v1164 = vadd.f32 %v518, %v942
  %v1165 = vadd.f32 %v519, %v944
  %v1166 = vadd.f32 %v520, %v947
  %v1167 = vadd.f32 %v521, %v949
  %v1168 = vadd.f32 %v522, %v952
  %v1169 = vadd.f32 %v523, %v954
  %v1170 = vadd.f32 %v524, %v957
  %v1171 = vadd.f32 %v525, %v959
  %v1172 = vadd.f32 %v526, %v962
  %v1173 = vadd.f32 %v527, %v964
  %v1174 = vadd.f32 %v528, %v967
  %v1175 = vadd.f32 %v529, %v969
  %v1176 = vadd.f32 %v530, %v972
  %v1177 = vadd.f32 %v531, %v974
  %v1178 = vadd.f32 %v532, %v977
  %v1179 = vadd.f32 %v533, %v979
  %v1180 = vadd.f32 %v534, %v982
  %v1181 = vadd.f32 %v535, %v984
  %v1182 = vadd.f32 %v536, %v987
  %v1183 = vadd.f32 %v537, %v989
  %v1184 = vadd.f32 %v538, %v992
  %v1185 = vadd.f32 %v539, %v994
  %v1186 = vadd.f32 %v540, %v997
  %v1187 = vadd.f32 %v541, %v999
  %v1188 = vadd.f32 %v542, %v1002
  %v1189 = vadd.f32 %v543, %v1004
  %v1190 = vadd.f32 %v544, %v1007
  %v1191 = vadd.f32 %v545, %v1009
  %v1192 = vadd.f32 %v546, %v1012
  %v1193 = vadd.f32 %v547, %v1014
  %v1194 = vadd.f32 %v548, %v1017
  %v1195 = vadd.f32 %v549, %v1019
  %v1196 = vadd.f32 %v550, %v1022
  %v1197 = vadd.f32 %v551, %v1024
  %v1198 = vadd.f32 %v552, %v1027
  %v1199 = vadd.f32 %v553, %v1029
  %v1200 = vadd.f32 %v554, %v1032
  %v1201 = vadd.f32 %v555, %v1034
  %v1202 = vadd.f32 %v556, %v1037
  %v1203 = vadd.f32 %v557, %v1039
  %v1204 = vadd.f32 %v558, %v1042
  %v1205 = vadd.f32 %v559, %v1044
  %v1206 = vadd.f32 %v560, %v1047
  %v1207 = vadd.f32 %v561, %v1049
  %v1208 = vadd.f32 %v562, %v1052
  %v1209 = vadd.f32 %v563, %v1054
  %v1210 = vadd.f32 %v564, %v1057
  %v1211 = vadd.f32 %v565, %v1059
  %v1212 = vadd.f32 %v566, %v1062
  %v1213 = vadd.f32 %v567, %v1064
  %v1214 = vadd.f32 %v568, %v1067
  %v1215 = vadd.f32 %v569, %v1069
  %v1216 = vadd.f32 %v570, %v1072
  %v1217 = vadd.f32 %v571, %v1074
  %v1218 = vadd.f32 %v572, %v1077
  %v1219 = vadd.f32 %v573, %v1079
  %v1220 = vadd.f32 %v574, %v1082
  %v1221 = vadd.f32 %v575, %v1084
  %v1222 = vadd.f32 %v576, %v1087
  %v1223 = vadd.f32 %v577, %v1089
  %v1224 = vadd.f32 %v578, %v1092
  %v1225 = vadd.f32 %v579, %v1094
  %v1226 = vadd.f32 %v580, %v1097
  %v1227 = vadd.f32 %v581, %v1099
  %v1228 = vld [vmem:[%s1 + $0x2] sm:$0x1]
  %v1229 = vlaneseq
  %v1230 = vshrl.u32 %v1229, 7
  %v1231 = vsub.s32 0, %v1230
  %v1232 = vrot.slane %v1228, %v1231
  %v1233 = vmul.f32 %v133, %v1232
  %v1234 = vmul.f32 %v138, %v1232
  %v1235 = vmul.f32 %v586, %v1232
  %v1236 = vmul.f32 %v143, %v1232
  %v1237 = vmul.f32 %v148, %v1232
  %v1238 = vmul.f32 %v591, %v1232
  %v1239 = vmul.f32 %v153, %v1232
  %v1240 = vmul.f32 %v158, %v1232
  %v1241 = vmul.f32 %v596, %v1232
  %v1242 = vmul.f32 %v163, %v1232
  %v1243 = vmul.f32 %v168, %v1232
  %v1244 = vmul.f32 %v601, %v1232
  %v1245 = vmul.f32 %v173, %v1232
  %v1246 = vmul.f32 %v178, %v1232
  %v1247 = vmul.f32 %v606, %v1232
  %v1248 = vmul.f32 %v183, %v1232
  %v1249 = vmul.f32 %v188, %v1232
  %v1250 = vmul.f32 %v611, %v1232
  %v1251 = vmul.f32 %v193, %v1232
  %v1252 = vmul.f32 %v198, %v1232
  %v1253 = vmul.f32 %v616, %v1232
  %v1254 = vmul.f32 %v203, %v1232
  %v1255 = vmul.f32 %v208, %v1232
  %v1256 = vmul.f32 %v621, %v1232
  %v1257 = vmul.f32 %v213, %v1232
  %v1258 = vmul.f32 %v218, %v1232
  %v1259 = vmul.f32 %v626, %v1232
  %v1260 = vmul.f32 %v223, %v1232
  %v1261 = vmul.f32 %v228, %v1232
  %v1262 = vmul.f32 %v631, %v1232
  %v1263 = vmul.f32 %v233, %v1232
  %v1264 = vmul.f32 %v238, %v1232
  %v1265 = vmul.f32 %v636, %v1232
  %v1266 = vmul.f32 %v243, %v1232
  %v1267 = vmul.f32 %v248, %v1232
  %v1268 = vmul.f32 %v641, %v1232
  %v1269 = vmul.f32 %v253, %v1232
  %v1270 = vmul.f32 %v258, %v1232
  %v1271 = vmul.f32 %v646, %v1232
  %v1272 = vmul.f32 %v263, %v1232
  %v1273 = vmul.f32 %v268, %v1232
  %v1274 = vmul.f32 %v651, %v1232
  %v1275 = vmul.f32 %v273, %v1232
  %v1276 = vmul.f32 %v278, %v1232
  %v1277 = vmul.f32 %v656, %v1232
  %v1278 = vmul.f32 %v283, %v1232
  %v1279 = vmul.f32 %v288, %v1232
  %v1280 = vmul.f32 %v661, %v1232
  %v1281 = vmul.f32 %v293, %v1232
  %v1282 = vmul.f32 %v298, %v1232
  %v1283 = vmul.f32 %v666, %v1232
  %v1284 = vmul.f32 %v303, %v1232
  %v1285 = vmul.f32 %v308, %v1232
  %v1286 = vmul.f32 %v671, %v1232
  %v1287 = vmul.f32 %v313, %v1232
  %v1288 = vmul.f32 %v318, %v1232
  %v1289 = vmul.f32 %v676, %v1232
  %v1290 = vmul.f32 %v323, %v1232
  %v1291 = vmul.f32 %v328, %v1232
  %v1292 = vmul.f32 %v681, %v1232
  %v1293 = vmul.f32 %v333, %v1232
  %v1294 = vmul.f32 %v338, %v1232
  %v1295 = vmul.f32 %v686, %v1232
  %v1296 = vmul.f32 %v343, %v1232
  %v1297 = vmul.f32 %v348, %v1232
  %v1298 = vmul.f32 %v691, %v1232
  %v1299 = vmul.f32 %v353, %v1232
  %v1300 = vmul.f32 %v358, %v1232
  %v1301 = vmul.f32 %v696, %v1232
  %v1302 = vmul.f32 %v363, %v1232
  %v1303 = vmul.f32 %v368, %v1232
  %v1304 = vmul.f32 %v701, %v1232
  %v1305 = vmul.f32 %v373, %v1232
  %v1306 = vmul.f32 %v378, %v1232
  %v1307 = vmul.f32 %v706, %v1232
  %v1308 = vmul.f32 %v383, %v1232
  %v1309 = vmul.f32 %v388, %v1232
  %v1310 = vmul.f32 %v711, %v1232
  %v1311 = vmul.f32 %v393, %v1232
  %v1312 = vmul.f32 %v398, %v1232
  %v1313 = vmul.f32 %v716, %v1232
  %v1314 = vmul.f32 %v403, %v1232
  %v1315 = vmul.f32 %v408, %v1232
  %v1316 = vmul.f32 %v721, %v1232
  %v1317 = vmul.f32 %v413, %v1232
  %v1318 = vmul.f32 %v418, %v1232
  %v1319 = vmul.f32 %v726, %v1232
  %v1320 = vmul.f32 %v423, %v1232
  %v1321 = vmul.f32 %v428, %v1232
  %v1322 = vmul.f32 %v731, %v1232
  %v1323 = vmul.f32 %v433, %v1232
  %v1324 = vmul.f32 %v438, %v1232
  %v1325 = vmul.f32 %v736, %v1232
  %v1326 = vmul.f32 %v443, %v1232
  %v1327 = vmul.f32 %v448, %v1232
  %v1328 = vmul.f32 %v741, %v1232
  %vm1425 = vcmask 1045504
  %v1426 = vrot.slane %v1233, 2
  %v1427 = vrot.slane %v1234, 2
  %v1428 = vsel %vm1425, %v1426, %v1427
  %v1429 = vrot.slane %v1235, 2
  %v1430 = vsel %vm1425, %v1427, %v1429
  %v1431 = vrot.slane %v1236, 2
  %v1432 = vrot.slane %v1237, 2
  %v1433 = vsel %vm1425, %v1431, %v1432
  %v1434 = vrot.slane %v1238, 2
  %v1435 = vsel %vm1425, %v1432, %v1434
  %v1436 = vrot.slane %v1239, 2
  %v1437 = vrot.slane %v1240, 2
  %v1438 = vsel %vm1425, %v1436, %v1437
  %v1439 = vrot.slane %v1241, 2
  %v1440 = vsel %vm1425, %v1437, %v1439
  %v1441 = vrot.slane %v1242, 2
  %v1442 = vrot.slane %v1243, 2
  %v1443 = vsel %vm1425, %v1441, %v1442
  %v1444 = vrot.slane %v1244, 2
  %v1445 = vsel %vm1425, %v1442, %v1444
  %v1446 = vrot.slane %v1245, 2
  %v1447 = vrot.slane %v1246, 2
  %v1448 = vsel %vm1425, %v1446, %v1447
  %v1449 = vrot.slane %v1247, 2
  %v1450 = vsel %vm1425, %v1447, %v1449
  %v1451 = vrot.slane %v1248, 2
  %v1452 = vrot.slane %v1249, 2
  %v1453 = vsel %vm1425, %v1451, %v1452
  %v1454 = vrot.slane %v1250, 2
  %v1455 = vsel %vm1425, %v1452, %v1454
  %v1456 = vrot.slane %v1251, 2
  %v1457 = vrot.slane %v1252, 2
  %v1458 = vsel %vm1425, %v1456, %v1457
  %v1459 = vrot.slane %v1253, 2
  %v1460 = vsel %vm1425, %v1457, %v1459
  %v1461 = vrot.slane %v1254, 2
  %v1462 = vrot.slane %v1255, 2
  %v1463 = vsel %vm1425, %v1461, %v1462
  %v1464 = vrot.slane %v1256, 2
  %v1465 = vsel %vm1425, %v1462, %v1464
  %v1466 = vrot.slane %v1257, 2
  %v1467 = vrot.slane %v1258, 2
  %v1468 = vsel %vm1425, %v1466, %v1467
  %v1469 = vrot.slane %v1259, 2
  %v1470 = vsel %vm1425, %v1467, %v1469
  %v1471 = vrot.slane %v1260, 2
  %v1472 = vrot.slane %v1261, 2
  %v1473 = vsel %vm1425, %v1471, %v1472
  %v1474 = vrot.slane %v1262, 2
  %v1475 = vsel %vm1425, %v1472, %v1474
  %v1476 = vrot.slane %v1263, 2
  %v1477 = vrot.slane %v1264, 2
  %v1478 = vsel %vm1425, %v1476, %v1477
  %v1479 = vrot.slane %v1265, 2
  %v1480 = vsel %vm1425, %v1477, %v1479
  %v1481 = vrot.slane %v1266, 2
  %v1482 = vrot.slane %v1267, 2
  %v1483 = vsel %vm1425, %v1481, %v1482
  %v1484 = vrot.slane %v1268, 2
  %v1485 = vsel %vm1425, %v1482, %v1484
  %v1486 = vrot.slane %v1269, 2
  %v1487 = vrot.slane %v1270, 2
  %v1488 = vsel %vm1425, %v1486, %v1487
  %v1489 = vrot.slane %v1271, 2
  %v1490 = vsel %vm1425, %v1487, %v1489
  %v1491 = vrot.slane %v1272, 2
  %v1492 = vrot.slane %v1273, 2
  %v1493 = vsel %vm1425, %v1491, %v1492
  %v1494 = vrot.slane %v1274, 2
  %v1495 = vsel %vm1425, %v1492, %v1494
  %v1496 = vrot.slane %v1275, 2
  %v1497 = vrot.slane %v1276, 2
  %v1498 = vsel %vm1425, %v1496, %v1497
  %v1499 = vrot.slane %v1277, 2
  %v1500 = vsel %vm1425, %v1497, %v1499
  %v1501 = vrot.slane %v1278, 2
  %v1502 = vrot.slane %v1279, 2
  %v1503 = vsel %vm1425, %v1501, %v1502
  %v1504 = vrot.slane %v1280, 2
  %v1505 = vsel %vm1425, %v1502, %v1504
  %v1506 = vrot.slane %v1281, 2
  %v1507 = vrot.slane %v1282, 2
  %v1508 = vsel %vm1425, %v1506, %v1507
  %v1509 = vrot.slane %v1283, 2
  %v1510 = vsel %vm1425, %v1507, %v1509
  %v1511 = vrot.slane %v1284, 2
  %v1512 = vrot.slane %v1285, 2
  %v1513 = vsel %vm1425, %v1511, %v1512
  %v1514 = vrot.slane %v1286, 2
  %v1515 = vsel %vm1425, %v1512, %v1514
  %v1516 = vrot.slane %v1287, 2
  %v1517 = vrot.slane %v1288, 2
  %v1518 = vsel %vm1425, %v1516, %v1517
  %v1519 = vrot.slane %v1289, 2
  %v1520 = vsel %vm1425, %v1517, %v1519
  %v1521 = vrot.slane %v1290, 2
  %v1522 = vrot.slane %v1291, 2
  %v1523 = vsel %vm1425, %v1521, %v1522
  %v1524 = vrot.slane %v1292, 2
  %v1525 = vsel %vm1425, %v1522, %v1524
  %v1526 = vrot.slane %v1293, 2
  %v1527 = vrot.slane %v1294, 2
  %v1528 = vsel %vm1425, %v1526, %v1527
  %v1529 = vrot.slane %v1295, 2
  %v1530 = vsel %vm1425, %v1527, %v1529
  %v1531 = vrot.slane %v1296, 2
  %v1532 = vrot.slane %v1297, 2
  %v1533 = vsel %vm1425, %v1531, %v1532
  %v1534 = vrot.slane %v1298, 2
  %v1535 = vsel %vm1425, %v1532, %v1534
  %v1536 = vrot.slane %v1299, 2
  %v1537 = vrot.slane %v1300, 2
  %v1538 = vsel %vm1425, %v1536, %v1537
  %v1539 = vrot.slane %v1301, 2
  %v1540 = vsel %vm1425, %v1537, %v1539
  %v1541 = vrot.slane %v1302, 2
  %v1542 = vrot.slane %v1303, 2
  %v1543 = vsel %vm1425, %v1541, %v1542
  %v1544 = vrot.slane %v1304, 2
  %v1545 = vsel %vm1425, %v1542, %v1544
  %v1546 = vrot.slane %v1305, 2
  %v1547 = vrot.slane %v1306, 2
  %v1548 = vsel %vm1425, %v1546, %v1547
  %v1549 = vrot.slane %v1307, 2
  %v1550 = vsel %vm1425, %v1547, %v1549
  %v1551 = vrot.slane %v1308, 2
  %v1552 = vrot.slane %v1309, 2
  %v1553 = vsel %vm1425, %v1551, %v1552
  %v1554 = vrot.slane %v1310, 2
  %v1555 = vsel %vm1425, %v1552, %v1554
  %v1556 = vrot.slane %v1311, 2
  %v1557 = vrot.slane %v1312, 2
  %v1558 = vsel %vm1425, %v1556, %v1557
  %v1559 = vrot.slane %v1313, 2
  %v1560 = vsel %vm1425, %v1557, %v1559
  %v1561 = vrot.slane %v1314, 2
  %v1562 = vrot.slane %v1315, 2
  %v1563 = vsel %vm1425, %v1561, %v1562
  %v1564 = vrot.slane %v1316, 2
  %v1565 = vsel %vm1425, %v1562, %v1564
  %v1566 = vrot.slane %v1317, 2
  %v1567 = vrot.slane %v1318, 2
  %v1568 = vsel %vm1425, %v1566, %v1567
  %v1569 = vrot.slane %v1319, 2
  %v1570 = vsel %vm1425, %v1567, %v1569
  %v1571 = vrot.slane %v1320, 2
  %v1572 = vrot.slane %v1321, 2
  %v1573 = vsel %vm1425, %v1571, %v1572
  %v1574 = vrot.slane %v1322, 2
  %v1575 = vsel %vm1425, %v1572, %v1574
  %v1576 = vrot.slane %v1323, 2
  %v1577 = vrot.slane %v1324, 2
  %v1578 = vsel %vm1425, %v1576, %v1577
  %v1579 = vrot.slane %v1325, 2
  %v1580 = vsel %vm1425, %v1577, %v1579
  %v1581 = vrot.slane %v1326, 2
  %v1582 = vrot.slane %v1327, 2
  %v1583 = vsel %vm1425, %v1581, %v1582
  %v1584 = vrot.slane %v1328, 2
  %v1585 = vsel %vm1425, %v1582, %v1584
  %v1650 = vadd.f32 %v1164, %v1428
  %v1651 = vadd.f32 %v1165, %v1430
  %v1652 = vadd.f32 %v1166, %v1433
  %v1653 = vadd.f32 %v1167, %v1435
  %v1654 = vadd.f32 %v1168, %v1438
  %v1655 = vadd.f32 %v1169, %v1440
  %v1656 = vadd.f32 %v1170, %v1443
  %v1657 = vadd.f32 %v1171, %v1445
  %v1658 = vadd.f32 %v1172, %v1448
  %v1659 = vadd.f32 %v1173, %v1450
  %v1660 = vadd.f32 %v1174, %v1453
  %v1661 = vadd.f32 %v1175, %v1455
  %v1662 = vadd.f32 %v1176, %v1458
  %v1663 = vadd.f32 %v1177, %v1460
  %v1664 = vadd.f32 %v1178, %v1463
  %v1665 = vadd.f32 %v1179, %v1465
  %v1666 = vadd.f32 %v1180, %v1468
  %v1667 = vadd.f32 %v1181, %v1470
  %v1668 = vadd.f32 %v1182, %v1473
  %v1669 = vadd.f32 %v1183, %v1475
  %v1670 = vadd.f32 %v1184, %v1478
  %v1671 = vadd.f32 %v1185, %v1480
  %v1672 = vadd.f32 %v1186, %v1483
  %v1673 = vadd.f32 %v1187, %v1485
  %v1674 = vadd.f32 %v1188, %v1488
  %v1675 = vadd.f32 %v1189, %v1490
  %v1676 = vadd.f32 %v1190, %v1493
  %v1677 = vadd.f32 %v1191, %v1495
  %v1678 = vadd.f32 %v1192, %v1498
  %v1679 = vadd.f32 %v1193, %v1500
  %v1680 = vadd.f32 %v1194, %v1503
  %v1681 = vadd.f32 %v1195, %v1505
  %v1682 = vadd.f32 %v1196, %v1508
  %v1683 = vadd.f32 %v1197, %v1510
  %v1684 = vadd.f32 %v1198, %v1513
  %v1685 = vadd.f32 %v1199, %v1515
  %v1686 = vadd.f32 %v1200, %v1518
  %v1687 = vadd.f32 %v1201, %v1520
  %v1688 = vadd.f32 %v1202, %v1523
  %v1689 = vadd.f32 %v1203, %v1525
  %v1690 = vadd.f32 %v1204, %v1528
  %v1691 = vadd.f32 %v1205, %v1530
  %v1692 = vadd.f32 %v1206, %v1533
  %v1693 = vadd.f32 %v1207, %v1535
  %v1694 = vadd.f32 %v1208, %v1538
  %v1695 = vadd.f32 %v1209, %v1540
  %v1696 = vadd.f32 %v1210, %v1543
  %v1697 = vadd.f32 %v1211, %v1545
  %v1698 = vadd.f32 %v1212, %v1548
  %v1699 = vadd.f32 %v1213, %v1550
  %v1700 = vadd.f32 %v1214, %v1553
  %v1701 = vadd.f32 %v1215, %v1555
  %v1702 = vadd.f32 %v1216, %v1558
  %v1703 = vadd.f32 %v1217, %v1560
  %v1704 = vadd.f32 %v1218, %v1563
  %v1705 = vadd.f32 %v1219, %v1565
  %v1706 = vadd.f32 %v1220, %v1568
  %v1707 = vadd.f32 %v1221, %v1570
  %v1708 = vadd.f32 %v1222, %v1573
  %v1709 = vadd.f32 %v1223, %v1575
  %v1710 = vadd.f32 %v1224, %v1578
  %v1711 = vadd.f32 %v1225, %v1580
  %v1712 = vadd.f32 %v1226, %v1583
  %v1713 = vadd.f32 %v1227, %v1585
  %v1714 = vld [vmem:[%s1 + $0x3] sm:$0x1]
  %1716 = vset.pattern.permute.xlu0 0
  %1717 = vperm.xlu0 %1716, %v69
  %v1718 = vpop.permute.xlu0 %1717
  %1721 = vset.pattern.permute.xlu0 0
  %1722 = vperm.xlu0 %1721, %v70
  %v1723 = vpop.permute.xlu0 %1722
  %1726 = vset.pattern.permute.xlu0 0
  %1727 = vperm.xlu0 %1726, %v123
  %v1728 = vpop.permute.xlu0 %1727
  %1731 = vset.pattern.permute.xlu0 0
  %1732 = vperm.xlu0 %1731, %v124
  %v1733 = vpop.permute.xlu0 %1732
  %v1735 = vlaneseq
  %v1736 = vshrl.u32 %v1735, 7
  %v1737 = vsub.s32 0, %v1736
  %v1738 = vrot.slane %v1714, %v1737
  %v1739 = vmul.f32 %v143, %v1738
  %v1740 = vmul.f32 %v148, %v1738
  %v1741 = vmul.f32 %v153, %v1738
  %v1742 = vmul.f32 %v158, %v1738
  %v1743 = vmul.f32 %v163, %v1738
  %v1744 = vmul.f32 %v168, %v1738
  %v1745 = vmul.f32 %v173, %v1738
  %v1746 = vmul.f32 %v178, %v1738
  %v1747 = vmul.f32 %v183, %v1738
  %v1748 = vmul.f32 %v188, %v1738
  %v1749 = vmul.f32 %v193, %v1738
  %v1750 = vmul.f32 %v198, %v1738
  %v1751 = vmul.f32 %v203, %v1738
  %v1752 = vmul.f32 %v208, %v1738
  %v1753 = vmul.f32 %v213, %v1738
  %v1754 = vmul.f32 %v218, %v1738
  %v1755 = vmul.f32 %v223, %v1738
  %v1756 = vmul.f32 %v228, %v1738
  %v1757 = vmul.f32 %v233, %v1738
  %v1758 = vmul.f32 %v238, %v1738
  %v1759 = vmul.f32 %v243, %v1738
  %v1760 = vmul.f32 %v248, %v1738
  %v1761 = vmul.f32 %v253, %v1738
  %v1762 = vmul.f32 %v258, %v1738
  %v1763 = vmul.f32 %v263, %v1738
  %v1764 = vmul.f32 %v268, %v1738
  %v1765 = vmul.f32 %v273, %v1738
  %v1766 = vmul.f32 %v278, %v1738
  %v1767 = vmul.f32 %v283, %v1738
  %v1768 = vmul.f32 %v288, %v1738
  %v1769 = vmul.f32 %v1718, %v1738
  %v1770 = vmul.f32 %v1723, %v1738
  %v1771 = vmul.f32 %v303, %v1738
  %v1772 = vmul.f32 %v308, %v1738
  %v1773 = vmul.f32 %v313, %v1738
  %v1774 = vmul.f32 %v318, %v1738
  %v1775 = vmul.f32 %v323, %v1738
  %v1776 = vmul.f32 %v328, %v1738
  %v1777 = vmul.f32 %v333, %v1738
  %v1778 = vmul.f32 %v338, %v1738
  %v1779 = vmul.f32 %v343, %v1738
  %v1780 = vmul.f32 %v348, %v1738
  %v1781 = vmul.f32 %v353, %v1738
  %v1782 = vmul.f32 %v358, %v1738
  %v1783 = vmul.f32 %v363, %v1738
  %v1784 = vmul.f32 %v368, %v1738
  %v1785 = vmul.f32 %v373, %v1738
  %v1786 = vmul.f32 %v378, %v1738
  %v1787 = vmul.f32 %v383, %v1738
  %v1788 = vmul.f32 %v388, %v1738
  %v1789 = vmul.f32 %v393, %v1738
  %v1790 = vmul.f32 %v398, %v1738
  %v1791 = vmul.f32 %v403, %v1738
  %v1792 = vmul.f32 %v408, %v1738
  %v1793 = vmul.f32 %v413, %v1738
  %v1794 = vmul.f32 %v418, %v1738
  %v1795 = vmul.f32 %v423, %v1738
  %v1796 = vmul.f32 %v428, %v1738
  %v1797 = vmul.f32 %v433, %v1738
  %v1798 = vmul.f32 %v438, %v1738
  %v1799 = vmul.f32 %v443, %v1738
  %v1800 = vmul.f32 %v448, %v1738
  %v1801 = vmul.f32 %v1728, %v1738
  %v1802 = vmul.f32 %v1733, %v1738
  %v1803 = vadd.f32 %v1650, %v1739
  %v1804 = vadd.f32 %v1651, %v1740
  %v1805 = vadd.f32 %v1652, %v1741
  %v1806 = vadd.f32 %v1653, %v1742
  %v1807 = vadd.f32 %v1654, %v1743
  %v1808 = vadd.f32 %v1655, %v1744
  %v1809 = vadd.f32 %v1656, %v1745
  %v1810 = vadd.f32 %v1657, %v1746
  %v1811 = vadd.f32 %v1658, %v1747
  %v1812 = vadd.f32 %v1659, %v1748
  %v1813 = vadd.f32 %v1660, %v1749
  %v1814 = vadd.f32 %v1661, %v1750
  %v1815 = vadd.f32 %v1662, %v1751
  %v1816 = vadd.f32 %v1663, %v1752
  %v1817 = vadd.f32 %v1664, %v1753
  %v1818 = vadd.f32 %v1665, %v1754
  %v1819 = vadd.f32 %v1666, %v1755
  %v1820 = vadd.f32 %v1667, %v1756
  %v1821 = vadd.f32 %v1668, %v1757
  %v1822 = vadd.f32 %v1669, %v1758
  %v1823 = vadd.f32 %v1670, %v1759
  %v1824 = vadd.f32 %v1671, %v1760
  %v1825 = vadd.f32 %v1672, %v1761
  %v1826 = vadd.f32 %v1673, %v1762
  %v1827 = vadd.f32 %v1674, %v1763
  %v1828 = vadd.f32 %v1675, %v1764
  %v1829 = vadd.f32 %v1676, %v1765
  %v1830 = vadd.f32 %v1677, %v1766
  %v1831 = vadd.f32 %v1678, %v1767
  %v1832 = vadd.f32 %v1679, %v1768
  %v1833 = vadd.f32 %v1680, %v1769
  %v1834 = vadd.f32 %v1681, %v1770
  %v1835 = vadd.f32 %v1682, %v1771
  %v1836 = vadd.f32 %v1683, %v1772
  %v1837 = vadd.f32 %v1684, %v1773
  %v1838 = vadd.f32 %v1685, %v1774
  %v1839 = vadd.f32 %v1686, %v1775
  %v1840 = vadd.f32 %v1687, %v1776
  %v1841 = vadd.f32 %v1688, %v1777
  %v1842 = vadd.f32 %v1689, %v1778
  %v1843 = vadd.f32 %v1690, %v1779
  %v1844 = vadd.f32 %v1691, %v1780
  %v1845 = vadd.f32 %v1692, %v1781
  %v1846 = vadd.f32 %v1693, %v1782
  %v1847 = vadd.f32 %v1694, %v1783
  %v1848 = vadd.f32 %v1695, %v1784
  %v1849 = vadd.f32 %v1696, %v1785
  %v1850 = vadd.f32 %v1697, %v1786
  %v1851 = vadd.f32 %v1698, %v1787
  %v1852 = vadd.f32 %v1699, %v1788
  %v1853 = vadd.f32 %v1700, %v1789
  %v1854 = vadd.f32 %v1701, %v1790
  %v1855 = vadd.f32 %v1702, %v1791
  %v1856 = vadd.f32 %v1703, %v1792
  %v1857 = vadd.f32 %v1704, %v1793
  %v1858 = vadd.f32 %v1705, %v1794
  %v1859 = vadd.f32 %v1706, %v1795
  %v1860 = vadd.f32 %v1707, %v1796
  %v1861 = vadd.f32 %v1708, %v1797
  %v1862 = vadd.f32 %v1709, %v1798
  %v1863 = vadd.f32 %v1710, %v1799
  %v1864 = vadd.f32 %v1711, %v1800
  %v1865 = vadd.f32 %v1712, %v1801
  %v1866 = vadd.f32 %v1713, %v1802
  %v1867 = vld [vmem:[%s1 + $0x4] sm:$0x1]
  %1869 = vset.pattern.permute.xlu0 0
  %1870 = vperm.xlu0 %1869, %v71
  %v1871 = vpop.permute.xlu0 %1870
  %1874 = vset.pattern.permute.xlu0 0
  %1875 = vperm.xlu0 %1874, %v125
  %v1876 = vpop.permute.xlu0 %1875
  %v1878 = vlaneseq
  %v1879 = vshrl.u32 %v1878, 7
  %v1880 = vsub.s32 0, %v1879
  %v1881 = vrot.slane %v1867, %v1880
  %v1882 = vmul.f32 %v143, %v1881
  %v1883 = vmul.f32 %v148, %v1881
  %v1884 = vmul.f32 %v591, %v1881
  %v1885 = vmul.f32 %v153, %v1881
  %v1886 = vmul.f32 %v158, %v1881
  %v1887 = vmul.f32 %v596, %v1881
  %v1888 = vmul.f32 %v163, %v1881
  %v1889 = vmul.f32 %v168, %v1881
  %v1890 = vmul.f32 %v601, %v1881
  %v1891 = vmul.f32 %v173, %v1881
  %v1892 = vmul.f32 %v178, %v1881
  %v1893 = vmul.f32 %v606, %v1881
  %v1894 = vmul.f32 %v183, %v1881
  %v1895 = vmul.f32 %v188, %v1881
  %v1896 = vmul.f32 %v611, %v1881
  %v1897 = vmul.f32 %v193, %v1881
  %v1898 = vmul.f32 %v198, %v1881
  %v1899 = vmul.f32 %v616, %v1881
  %v1900 = vmul.f32 %v203, %v1881
  %v1901 = vmul.f32 %v208, %v1881
  %v1902 = vmul.f32 %v621, %v1881
  %v1903 = vmul.f32 %v213, %v1881
  %v1904 = vmul.f32 %v218, %v1881
  %v1905 = vmul.f32 %v626, %v1881
  %v1906 = vmul.f32 %v223, %v1881
  %v1907 = vmul.f32 %v228, %v1881
  %v1908 = vmul.f32 %v631, %v1881
  %v1909 = vmul.f32 %v233, %v1881
  %v1910 = vmul.f32 %v238, %v1881
  %v1911 = vmul.f32 %v636, %v1881
  %v1912 = vmul.f32 %v243, %v1881
  %v1913 = vmul.f32 %v248, %v1881
  %v1914 = vmul.f32 %v641, %v1881
  %v1915 = vmul.f32 %v253, %v1881
  %v1916 = vmul.f32 %v258, %v1881
  %v1917 = vmul.f32 %v646, %v1881
  %v1918 = vmul.f32 %v263, %v1881
  %v1919 = vmul.f32 %v268, %v1881
  %v1920 = vmul.f32 %v651, %v1881
  %v1921 = vmul.f32 %v273, %v1881
  %v1922 = vmul.f32 %v278, %v1881
  %v1923 = vmul.f32 %v656, %v1881
  %v1924 = vmul.f32 %v283, %v1881
  %v1925 = vmul.f32 %v288, %v1881
  %v1926 = vmul.f32 %v661, %v1881
  %v1927 = vmul.f32 %v1718, %v1881
  %v1928 = vmul.f32 %v1723, %v1881
  %v1929 = vmul.f32 %v1871, %v1881
  %v1930 = vmul.f32 %v303, %v1881
  %v1931 = vmul.f32 %v308, %v1881
  %v1932 = vmul.f32 %v671, %v1881
  %v1933 = vmul.f32 %v313, %v1881
  %v1934 = vmul.f32 %v318, %v1881
  %v1935 = vmul.f32 %v676, %v1881
  %v1936 = vmul.f32 %v323, %v1881
  %v1937 = vmul.f32 %v328, %v1881
  %v1938 = vmul.f32 %v681, %v1881
  %v1939 = vmul.f32 %v333, %v1881
  %v1940 = vmul.f32 %v338, %v1881
  %v1941 = vmul.f32 %v686, %v1881
  %v1942 = vmul.f32 %v343, %v1881
  %v1943 = vmul.f32 %v348, %v1881
  %v1944 = vmul.f32 %v691, %v1881
  %v1945 = vmul.f32 %v353, %v1881
  %v1946 = vmul.f32 %v358, %v1881
  %v1947 = vmul.f32 %v696, %v1881
  %v1948 = vmul.f32 %v363, %v1881
  %v1949 = vmul.f32 %v368, %v1881
  %v1950 = vmul.f32 %v701, %v1881
  %v1951 = vmul.f32 %v373, %v1881
  %v1952 = vmul.f32 %v378, %v1881
  %v1953 = vmul.f32 %v706, %v1881
  %v1954 = vmul.f32 %v383, %v1881
  %v1955 = vmul.f32 %v388, %v1881
  %v1956 = vmul.f32 %v711, %v1881
  %v1957 = vmul.f32 %v393, %v1881
  %v1958 = vmul.f32 %v398, %v1881
  %v1959 = vmul.f32 %v716, %v1881
  %v1960 = vmul.f32 %v403, %v1881
  %v1961 = vmul.f32 %v408, %v1881
  %v1962 = vmul.f32 %v721, %v1881
  %v1963 = vmul.f32 %v413, %v1881
  %v1964 = vmul.f32 %v418, %v1881
  %v1965 = vmul.f32 %v726, %v1881
  %v1966 = vmul.f32 %v423, %v1881
  %v1967 = vmul.f32 %v428, %v1881
  %v1968 = vmul.f32 %v731, %v1881
  %v1969 = vmul.f32 %v433, %v1881
  %v1970 = vmul.f32 %v438, %v1881
  %v1971 = vmul.f32 %v736, %v1881
  %v1972 = vmul.f32 %v443, %v1881
  %v1973 = vmul.f32 %v448, %v1881
  %v1974 = vmul.f32 %v741, %v1881
  %v1975 = vmul.f32 %v1728, %v1881
  %v1976 = vmul.f32 %v1733, %v1881
  %v1977 = vmul.f32 %v1876, %v1881
  %v2074 = vrot.slane %v1882, 1
  %v2075 = vrot.slane %v1883, 1
  %v2076 = vsel %vm939, %v2074, %v2075
  %v2077 = vrot.slane %v1884, 1
  %v2078 = vsel %vm939, %v2075, %v2077
  %v2079 = vrot.slane %v1885, 1
  %v2080 = vrot.slane %v1886, 1
  %v2081 = vsel %vm939, %v2079, %v2080
  %v2082 = vrot.slane %v1887, 1
  %v2083 = vsel %vm939, %v2080, %v2082
  %v2084 = vrot.slane %v1888, 1
  %v2085 = vrot.slane %v1889, 1
  %v2086 = vsel %vm939, %v2084, %v2085
  %v2087 = vrot.slane %v1890, 1
  %v2088 = vsel %vm939, %v2085, %v2087
  %v2089 = vrot.slane %v1891, 1
  %v2090 = vrot.slane %v1892, 1
  %v2091 = vsel %vm939, %v2089, %v2090
  %v2092 = vrot.slane %v1893, 1
  %v2093 = vsel %vm939, %v2090, %v2092
  %v2094 = vrot.slane %v1894, 1
  %v2095 = vrot.slane %v1895, 1
  %v2096 = vsel %vm939, %v2094, %v2095
  %v2097 = vrot.slane %v1896, 1
  %v2098 = vsel %vm939, %v2095, %v2097
  %v2099 = vrot.slane %v1897, 1
  %v2100 = vrot.slane %v1898, 1
  %v2101 = vsel %vm939, %v2099, %v2100
  %v2102 = vrot.slane %v1899, 1
  %v2103 = vsel %vm939, %v2100, %v2102
  %v2104 = vrot.slane %v1900, 1
  %v2105 = vrot.slane %v1901, 1
  %v2106 = vsel %vm939, %v2104, %v2105
  %v2107 = vrot.slane %v1902, 1
  %v2108 = vsel %vm939, %v2105, %v2107
  %v2109 = vrot.slane %v1903, 1
  %v2110 = vrot.slane %v1904, 1
  %v2111 = vsel %vm939, %v2109, %v2110
  %v2112 = vrot.slane %v1905, 1
  %v2113 = vsel %vm939, %v2110, %v2112
  %v2114 = vrot.slane %v1906, 1
  %v2115 = vrot.slane %v1907, 1
  %v2116 = vsel %vm939, %v2114, %v2115
  %v2117 = vrot.slane %v1908, 1
  %v2118 = vsel %vm939, %v2115, %v2117
  %v2119 = vrot.slane %v1909, 1
  %v2120 = vrot.slane %v1910, 1
  %v2121 = vsel %vm939, %v2119, %v2120
  %v2122 = vrot.slane %v1911, 1
  %v2123 = vsel %vm939, %v2120, %v2122
  %v2124 = vrot.slane %v1912, 1
  %v2125 = vrot.slane %v1913, 1
  %v2126 = vsel %vm939, %v2124, %v2125
  %v2127 = vrot.slane %v1914, 1
  %v2128 = vsel %vm939, %v2125, %v2127
  %v2129 = vrot.slane %v1915, 1
  %v2130 = vrot.slane %v1916, 1
  %v2131 = vsel %vm939, %v2129, %v2130
  %v2132 = vrot.slane %v1917, 1
  %v2133 = vsel %vm939, %v2130, %v2132
  %v2134 = vrot.slane %v1918, 1
  %v2135 = vrot.slane %v1919, 1
  %v2136 = vsel %vm939, %v2134, %v2135
  %v2137 = vrot.slane %v1920, 1
  %v2138 = vsel %vm939, %v2135, %v2137
  %v2139 = vrot.slane %v1921, 1
  %v2140 = vrot.slane %v1922, 1
  %v2141 = vsel %vm939, %v2139, %v2140
  %v2142 = vrot.slane %v1923, 1
  %v2143 = vsel %vm939, %v2140, %v2142
  %v2144 = vrot.slane %v1924, 1
  %v2145 = vrot.slane %v1925, 1
  %v2146 = vsel %vm939, %v2144, %v2145
  %v2147 = vrot.slane %v1926, 1
  %v2148 = vsel %vm939, %v2145, %v2147
  %v2149 = vrot.slane %v1927, 1
  %v2150 = vrot.slane %v1928, 1
  %v2151 = vsel %vm939, %v2149, %v2150
  %v2152 = vrot.slane %v1929, 1
  %v2153 = vsel %vm939, %v2150, %v2152
  %v2154 = vrot.slane %v1930, 1
  %v2155 = vrot.slane %v1931, 1
  %v2156 = vsel %vm939, %v2154, %v2155
  %v2157 = vrot.slane %v1932, 1
  %v2158 = vsel %vm939, %v2155, %v2157
  %v2159 = vrot.slane %v1933, 1
  %v2160 = vrot.slane %v1934, 1
  %v2161 = vsel %vm939, %v2159, %v2160
  %v2162 = vrot.slane %v1935, 1
  %v2163 = vsel %vm939, %v2160, %v2162
  %v2164 = vrot.slane %v1936, 1
  %v2165 = vrot.slane %v1937, 1
  %v2166 = vsel %vm939, %v2164, %v2165
  %v2167 = vrot.slane %v1938, 1
  %v2168 = vsel %vm939, %v2165, %v2167
  %v2169 = vrot.slane %v1939, 1
  %v2170 = vrot.slane %v1940, 1
  %v2171 = vsel %vm939, %v2169, %v2170
  %v2172 = vrot.slane %v1941, 1
  %v2173 = vsel %vm939, %v2170, %v2172
  %v2174 = vrot.slane %v1942, 1
  %v2175 = vrot.slane %v1943, 1
  %v2176 = vsel %vm939, %v2174, %v2175
  %v2177 = vrot.slane %v1944, 1
  %v2178 = vsel %vm939, %v2175, %v2177
  %v2179 = vrot.slane %v1945, 1
  %v2180 = vrot.slane %v1946, 1
  %v2181 = vsel %vm939, %v2179, %v2180
  %v2182 = vrot.slane %v1947, 1
  %v2183 = vsel %vm939, %v2180, %v2182
  %v2184 = vrot.slane %v1948, 1
  %v2185 = vrot.slane %v1949, 1
  %v2186 = vsel %vm939, %v2184, %v2185
  %v2187 = vrot.slane %v1950, 1
  %v2188 = vsel %vm939, %v2185, %v2187
  %v2189 = vrot.slane %v1951, 1
  %v2190 = vrot.slane %v1952, 1
  %v2191 = vsel %vm939, %v2189, %v2190
  %v2192 = vrot.slane %v1953, 1
  %v2193 = vsel %vm939, %v2190, %v2192
  %v2194 = vrot.slane %v1954, 1
  %v2195 = vrot.slane %v1955, 1
  %v2196 = vsel %vm939, %v2194, %v2195
  %v2197 = vrot.slane %v1956, 1
  %v2198 = vsel %vm939, %v2195, %v2197
  %v2199 = vrot.slane %v1957, 1
  %v2200 = vrot.slane %v1958, 1
  %v2201 = vsel %vm939, %v2199, %v2200
  %v2202 = vrot.slane %v1959, 1
  %v2203 = vsel %vm939, %v2200, %v2202
  %v2204 = vrot.slane %v1960, 1
  %v2205 = vrot.slane %v1961, 1
  %v2206 = vsel %vm939, %v2204, %v2205
  %v2207 = vrot.slane %v1962, 1
  %v2208 = vsel %vm939, %v2205, %v2207
  %v2209 = vrot.slane %v1963, 1
  %v2210 = vrot.slane %v1964, 1
  %v2211 = vsel %vm939, %v2209, %v2210
  %v2212 = vrot.slane %v1965, 1
  %v2213 = vsel %vm939, %v2210, %v2212
  %v2214 = vrot.slane %v1966, 1
  %v2215 = vrot.slane %v1967, 1
  %v2216 = vsel %vm939, %v2214, %v2215
  %v2217 = vrot.slane %v1968, 1
  %v2218 = vsel %vm939, %v2215, %v2217
  %v2219 = vrot.slane %v1969, 1
  %v2220 = vrot.slane %v1970, 1
  %v2221 = vsel %vm939, %v2219, %v2220
  %v2222 = vrot.slane %v1971, 1
  %v2223 = vsel %vm939, %v2220, %v2222
  %v2224 = vrot.slane %v1972, 1
  %v2225 = vrot.slane %v1973, 1
  %v2226 = vsel %vm939, %v2224, %v2225
  %v2227 = vrot.slane %v1974, 1
  %v2228 = vsel %vm939, %v2225, %v2227
  %v2229 = vrot.slane %v1975, 1
  %v2230 = vrot.slane %v1976, 1
  %v2231 = vsel %vm939, %v2229, %v2230
  %v2232 = vrot.slane %v1977, 1
  %v2233 = vsel %vm939, %v2230, %v2232
  %v2298 = vadd.f32 %v1803, %v2076
  %v2299 = vadd.f32 %v1804, %v2078
  %v2300 = vadd.f32 %v1805, %v2081
  %v2301 = vadd.f32 %v1806, %v2083
  %v2302 = vadd.f32 %v1807, %v2086
  %v2303 = vadd.f32 %v1808, %v2088
  %v2304 = vadd.f32 %v1809, %v2091
  %v2305 = vadd.f32 %v1810, %v2093
  %v2306 = vadd.f32 %v1811, %v2096
  %v2307 = vadd.f32 %v1812, %v2098
  %v2308 = vadd.f32 %v1813, %v2101
  %v2309 = vadd.f32 %v1814, %v2103
  %v2310 = vadd.f32 %v1815, %v2106
  %v2311 = vadd.f32 %v1816, %v2108
  %v2312 = vadd.f32 %v1817, %v2111
  %v2313 = vadd.f32 %v1818, %v2113
  %v2314 = vadd.f32 %v1819, %v2116
  %v2315 = vadd.f32 %v1820, %v2118
  %v2316 = vadd.f32 %v1821, %v2121
  %v2317 = vadd.f32 %v1822, %v2123
  %v2318 = vadd.f32 %v1823, %v2126
  %v2319 = vadd.f32 %v1824, %v2128
  %v2320 = vadd.f32 %v1825, %v2131
  %v2321 = vadd.f32 %v1826, %v2133
  %v2322 = vadd.f32 %v1827, %v2136
  %v2323 = vadd.f32 %v1828, %v2138
  %v2324 = vadd.f32 %v1829, %v2141
  %v2325 = vadd.f32 %v1830, %v2143
  %v2326 = vadd.f32 %v1831, %v2146
  %v2327 = vadd.f32 %v1832, %v2148
  %v2328 = vadd.f32 %v1833, %v2151
  %v2329 = vadd.f32 %v1834, %v2153
  %v2330 = vadd.f32 %v1835, %v2156
  %v2331 = vadd.f32 %v1836, %v2158
  %v2332 = vadd.f32 %v1837, %v2161
  %v2333 = vadd.f32 %v1838, %v2163
  %v2334 = vadd.f32 %v1839, %v2166
  %v2335 = vadd.f32 %v1840, %v2168
  %v2336 = vadd.f32 %v1841, %v2171
  %v2337 = vadd.f32 %v1842, %v2173
  %v2338 = vadd.f32 %v1843, %v2176
  %v2339 = vadd.f32 %v1844, %v2178
  %v2340 = vadd.f32 %v1845, %v2181
  %v2341 = vadd.f32 %v1846, %v2183
  %v2342 = vadd.f32 %v1847, %v2186
  %v2343 = vadd.f32 %v1848, %v2188
  %v2344 = vadd.f32 %v1849, %v2191
  %v2345 = vadd.f32 %v1850, %v2193
  %v2346 = vadd.f32 %v1851, %v2196
  %v2347 = vadd.f32 %v1852, %v2198
  %v2348 = vadd.f32 %v1853, %v2201
  %v2349 = vadd.f32 %v1854, %v2203
  %v2350 = vadd.f32 %v1855, %v2206
  %v2351 = vadd.f32 %v1856, %v2208
  %v2352 = vadd.f32 %v1857, %v2211
  %v2353 = vadd.f32 %v1858, %v2213
  %v2354 = vadd.f32 %v1859, %v2216
  %v2355 = vadd.f32 %v1860, %v2218
  %v2356 = vadd.f32 %v1861, %v2221
  %v2357 = vadd.f32 %v1862, %v2223
  %v2358 = vadd.f32 %v1863, %v2226
  %v2359 = vadd.f32 %v1864, %v2228
  %v2360 = vadd.f32 %v1865, %v2231
  %v2361 = vadd.f32 %v1866, %v2233
  %v2362 = vld [vmem:[%s1 + $0x5] sm:$0x1]
  %v2363 = vlaneseq
  %v2364 = vshrl.u32 %v2363, 7
  %v2365 = vsub.s32 0, %v2364
  %v2366 = vrot.slane %v2362, %v2365
  %v2367 = vmul.f32 %v143, %v2366
  %v2368 = vmul.f32 %v148, %v2366
  %v2369 = vmul.f32 %v591, %v2366
  %v2370 = vmul.f32 %v153, %v2366
  %v2371 = vmul.f32 %v158, %v2366
  %v2372 = vmul.f32 %v596, %v2366
  %v2373 = vmul.f32 %v163, %v2366
  %v2374 = vmul.f32 %v168, %v2366
  %v2375 = vmul.f32 %v601, %v2366
  %v2376 = vmul.f32 %v173, %v2366
  %v2377 = vmul.f32 %v178, %v2366
  %v2378 = vmul.f32 %v606, %v2366
  %v2379 = vmul.f32 %v183, %v2366
  %v2380 = vmul.f32 %v188, %v2366
  %v2381 = vmul.f32 %v611, %v2366
  %v2382 = vmul.f32 %v193, %v2366
  %v2383 = vmul.f32 %v198, %v2366
  %v2384 = vmul.f32 %v616, %v2366
  %v2385 = vmul.f32 %v203, %v2366
  %v2386 = vmul.f32 %v208, %v2366
  %v2387 = vmul.f32 %v621, %v2366
  %v2388 = vmul.f32 %v213, %v2366
  %v2389 = vmul.f32 %v218, %v2366
  %v2390 = vmul.f32 %v626, %v2366
  %v2391 = vmul.f32 %v223, %v2366
  %v2392 = vmul.f32 %v228, %v2366
  %v2393 = vmul.f32 %v631, %v2366
  %v2394 = vmul.f32 %v233, %v2366
  %v2395 = vmul.f32 %v238, %v2366
  %v2396 = vmul.f32 %v636, %v2366
  %v2397 = vmul.f32 %v243, %v2366
  %v2398 = vmul.f32 %v248, %v2366
  %v2399 = vmul.f32 %v641, %v2366
  %v2400 = vmul.f32 %v253, %v2366
  %v2401 = vmul.f32 %v258, %v2366
  %v2402 = vmul.f32 %v646, %v2366
  %v2403 = vmul.f32 %v263, %v2366
  %v2404 = vmul.f32 %v268, %v2366
  %v2405 = vmul.f32 %v651, %v2366
  %v2406 = vmul.f32 %v273, %v2366
  %v2407 = vmul.f32 %v278, %v2366
  %v2408 = vmul.f32 %v656, %v2366
  %v2409 = vmul.f32 %v283, %v2366
  %v2410 = vmul.f32 %v288, %v2366
  %v2411 = vmul.f32 %v661, %v2366
  %v2412 = vmul.f32 %v1718, %v2366
  %v2413 = vmul.f32 %v1723, %v2366
  %v2414 = vmul.f32 %v1871, %v2366
  %v2415 = vmul.f32 %v303, %v2366
  %v2416 = vmul.f32 %v308, %v2366
  %v2417 = vmul.f32 %v671, %v2366
  %v2418 = vmul.f32 %v313, %v2366
  %v2419 = vmul.f32 %v318, %v2366
  %v2420 = vmul.f32 %v676, %v2366
  %v2421 = vmul.f32 %v323, %v2366
  %v2422 = vmul.f32 %v328, %v2366
  %v2423 = vmul.f32 %v681, %v2366
  %v2424 = vmul.f32 %v333, %v2366
  %v2425 = vmul.f32 %v338, %v2366
  %v2426 = vmul.f32 %v686, %v2366
  %v2427 = vmul.f32 %v343, %v2366
  %v2428 = vmul.f32 %v348, %v2366
  %v2429 = vmul.f32 %v691, %v2366
  %v2430 = vmul.f32 %v353, %v2366
  %v2431 = vmul.f32 %v358, %v2366
  %v2432 = vmul.f32 %v696, %v2366
  %v2433 = vmul.f32 %v363, %v2366
  %v2434 = vmul.f32 %v368, %v2366
  %v2435 = vmul.f32 %v701, %v2366
  %v2436 = vmul.f32 %v373, %v2366
  %v2437 = vmul.f32 %v378, %v2366
  %v2438 = vmul.f32 %v706, %v2366
  %v2439 = vmul.f32 %v383, %v2366
  %v2440 = vmul.f32 %v388, %v2366
  %v2441 = vmul.f32 %v711, %v2366
  %v2442 = vmul.f32 %v393, %v2366
  %v2443 = vmul.f32 %v398, %v2366
  %v2444 = vmul.f32 %v716, %v2366
  %v2445 = vmul.f32 %v403, %v2366
  %v2446 = vmul.f32 %v408, %v2366
  %v2447 = vmul.f32 %v721, %v2366
  %v2448 = vmul.f32 %v413, %v2366
  %v2449 = vmul.f32 %v418, %v2366
  %v2450 = vmul.f32 %v726, %v2366
  %v2451 = vmul.f32 %v423, %v2366
  %v2452 = vmul.f32 %v428, %v2366
  %v2453 = vmul.f32 %v731, %v2366
  %v2454 = vmul.f32 %v433, %v2366
  %v2455 = vmul.f32 %v438, %v2366
  %v2456 = vmul.f32 %v736, %v2366
  %v2457 = vmul.f32 %v443, %v2366
  %v2458 = vmul.f32 %v448, %v2366
  %v2459 = vmul.f32 %v741, %v2366
  %v2460 = vmul.f32 %v1728, %v2366
  %v2461 = vmul.f32 %v1733, %v2366
  %v2462 = vmul.f32 %v1876, %v2366
  %v2559 = vrot.slane %v2367, 2
  %v2560 = vrot.slane %v2368, 2
  %v2561 = vsel %vm1425, %v2559, %v2560
  %v2562 = vrot.slane %v2369, 2
  %v2563 = vsel %vm1425, %v2560, %v2562
  %v2564 = vrot.slane %v2370, 2
  %v2565 = vrot.slane %v2371, 2
  %v2566 = vsel %vm1425, %v2564, %v2565
  %v2567 = vrot.slane %v2372, 2
  %v2568 = vsel %vm1425, %v2565, %v2567
  %v2569 = vrot.slane %v2373, 2
  %v2570 = vrot.slane %v2374, 2
  %v2571 = vsel %vm1425, %v2569, %v2570
  %v2572 = vrot.slane %v2375, 2
  %v2573 = vsel %vm1425, %v2570, %v2572
  %v2574 = vrot.slane %v2376, 2
  %v2575 = vrot.slane %v2377, 2
  %v2576 = vsel %vm1425, %v2574, %v2575
  %v2577 = vrot.slane %v2378, 2
  %v2578 = vsel %vm1425, %v2575, %v2577
  %v2579 = vrot.slane %v2379, 2
  %v2580 = vrot.slane %v2380, 2
  %v2581 = vsel %vm1425, %v2579, %v2580
  %v2582 = vrot.slane %v2381, 2
  %v2583 = vsel %vm1425, %v2580, %v2582
  %v2584 = vrot.slane %v2382, 2
  %v2585 = vrot.slane %v2383, 2
  %v2586 = vsel %vm1425, %v2584, %v2585
  %v2587 = vrot.slane %v2384, 2
  %v2588 = vsel %vm1425, %v2585, %v2587
  %v2589 = vrot.slane %v2385, 2
  %v2590 = vrot.slane %v2386, 2
  %v2591 = vsel %vm1425, %v2589, %v2590
  %v2592 = vrot.slane %v2387, 2
  %v2593 = vsel %vm1425, %v2590, %v2592
  %v2594 = vrot.slane %v2388, 2
  %v2595 = vrot.slane %v2389, 2
  %v2596 = vsel %vm1425, %v2594, %v2595
  %v2597 = vrot.slane %v2390, 2
  %v2598 = vsel %vm1425, %v2595, %v2597
  %v2599 = vrot.slane %v2391, 2
  %v2600 = vrot.slane %v2392, 2
  %v2601 = vsel %vm1425, %v2599, %v2600
  %v2602 = vrot.slane %v2393, 2
  %v2603 = vsel %vm1425, %v2600, %v2602
  %v2604 = vrot.slane %v2394, 2
  %v2605 = vrot.slane %v2395, 2
  %v2606 = vsel %vm1425, %v2604, %v2605
  %v2607 = vrot.slane %v2396, 2
  %v2608 = vsel %vm1425, %v2605, %v2607
  %v2609 = vrot.slane %v2397, 2
  %v2610 = vrot.slane %v2398, 2
  %v2611 = vsel %vm1425, %v2609, %v2610
  %v2612 = vrot.slane %v2399, 2
  %v2613 = vsel %vm1425, %v2610, %v2612
  %v2614 = vrot.slane %v2400, 2
  %v2615 = vrot.slane %v2401, 2
  %v2616 = vsel %vm1425, %v2614, %v2615
  %v2617 = vrot.slane %v2402, 2
  %v2618 = vsel %vm1425, %v2615, %v2617
  %v2619 = vrot.slane %v2403, 2
  %v2620 = vrot.slane %v2404, 2
  %v2621 = vsel %vm1425, %v2619, %v2620
  %v2622 = vrot.slane %v2405, 2
  %v2623 = vsel %vm1425, %v2620, %v2622
  %v2624 = vrot.slane %v2406, 2
  %v2625 = vrot.slane %v2407, 2
  %v2626 = vsel %vm1425, %v2624, %v2625
  %v2627 = vrot.slane %v2408, 2
  %v2628 = vsel %vm1425, %v2625, %v2627
  %v2629 = vrot.slane %v2409, 2
  %v2630 = vrot.slane %v2410, 2
  %v2631 = vsel %vm1425, %v2629, %v2630
  %v2632 = vrot.slane %v2411, 2
  %v2633 = vsel %vm1425, %v2630, %v2632
  %v2634 = vrot.slane %v2412, 2
  %v2635 = vrot.slane %v2413, 2
  %v2636 = vsel %vm1425, %v2634, %v2635
  %v2637 = vrot.slane %v2414, 2
  %v2638 = vsel %vm1425, %v2635, %v2637
  %v2639 = vrot.slane %v2415, 2
  %v2640 = vrot.slane %v2416, 2
  %v2641 = vsel %vm1425, %v2639, %v2640
  %v2642 = vrot.slane %v2417, 2
  %v2643 = vsel %vm1425, %v2640, %v2642
  %v2644 = vrot.slane %v2418, 2
  %v2645 = vrot.slane %v2419, 2
  %v2646 = vsel %vm1425, %v2644, %v2645
  %v2647 = vrot.slane %v2420, 2
  %v2648 = vsel %vm1425, %v2645, %v2647
  %v2649 = vrot.slane %v2421, 2
  %v2650 = vrot.slane %v2422, 2
  %v2651 = vsel %vm1425, %v2649, %v2650
  %v2652 = vrot.slane %v2423, 2
  %v2653 = vsel %vm1425, %v2650, %v2652
  %v2654 = vrot.slane %v2424, 2
  %v2655 = vrot.slane %v2425, 2
  %v2656 = vsel %vm1425, %v2654, %v2655
  %v2657 = vrot.slane %v2426, 2
  %v2658 = vsel %vm1425, %v2655, %v2657
  %v2659 = vrot.slane %v2427, 2
  %v2660 = vrot.slane %v2428, 2
  %v2661 = vsel %vm1425, %v2659, %v2660
  %v2662 = vrot.slane %v2429, 2
  %v2663 = vsel %vm1425, %v2660, %v2662
  %v2664 = vrot.slane %v2430, 2
  %v2665 = vrot.slane %v2431, 2
  %v2666 = vsel %vm1425, %v2664, %v2665
  %v2667 = vrot.slane %v2432, 2
  %v2668 = vsel %vm1425, %v2665, %v2667
  %v2669 = vrot.slane %v2433, 2
  %v2670 = vrot.slane %v2434, 2
  %v2671 = vsel %vm1425, %v2669, %v2670
  %v2672 = vrot.slane %v2435, 2
  %v2673 = vsel %vm1425, %v2670, %v2672
  %v2674 = vrot.slane %v2436, 2
  %v2675 = vrot.slane %v2437, 2
  %v2676 = vsel %vm1425, %v2674, %v2675
  %v2677 = vrot.slane %v2438, 2
  %v2678 = vsel %vm1425, %v2675, %v2677
  %v2679 = vrot.slane %v2439, 2
  %v2680 = vrot.slane %v2440, 2
  %v2681 = vsel %vm1425, %v2679, %v2680
  %v2682 = vrot.slane %v2441, 2
  %v2683 = vsel %vm1425, %v2680, %v2682
  %v2684 = vrot.slane %v2442, 2
  %v2685 = vrot.slane %v2443, 2
  %v2686 = vsel %vm1425, %v2684, %v2685
  %v2687 = vrot.slane %v2444, 2
  %v2688 = vsel %vm1425, %v2685, %v2687
  %v2689 = vrot.slane %v2445, 2
  %v2690 = vrot.slane %v2446, 2
  %v2691 = vsel %vm1425, %v2689, %v2690
  %v2692 = vrot.slane %v2447, 2
  %v2693 = vsel %vm1425, %v2690, %v2692
  %v2694 = vrot.slane %v2448, 2
  %v2695 = vrot.slane %v2449, 2
  %v2696 = vsel %vm1425, %v2694, %v2695
  %v2697 = vrot.slane %v2450, 2
  %v2698 = vsel %vm1425, %v2695, %v2697
  %v2699 = vrot.slane %v2451, 2
  %v2700 = vrot.slane %v2452, 2
  %v2701 = vsel %vm1425, %v2699, %v2700
  %v2702 = vrot.slane %v2453, 2
  %v2703 = vsel %vm1425, %v2700, %v2702
  %v2704 = vrot.slane %v2454, 2
  %v2705 = vrot.slane %v2455, 2
  %v2706 = vsel %vm1425, %v2704, %v2705
  %v2707 = vrot.slane %v2456, 2
  %v2708 = vsel %vm1425, %v2705, %v2707
  %v2709 = vrot.slane %v2457, 2
  %v2710 = vrot.slane %v2458, 2
  %v2711 = vsel %vm1425, %v2709, %v2710
  %v2712 = vrot.slane %v2459, 2
  %v2713 = vsel %vm1425, %v2710, %v2712
  %v2714 = vrot.slane %v2460, 2
  %v2715 = vrot.slane %v2461, 2
  %v2716 = vsel %vm1425, %v2714, %v2715
  %v2717 = vrot.slane %v2462, 2
  %v2718 = vsel %vm1425, %v2715, %v2717
  %v2783 = vadd.f32 %v2298, %v2561
  %v2784 = vadd.f32 %v2299, %v2563
  %v2785 = vadd.f32 %v2300, %v2566
  %v2786 = vadd.f32 %v2301, %v2568
  %v2787 = vadd.f32 %v2302, %v2571
  %v2788 = vadd.f32 %v2303, %v2573
  %v2789 = vadd.f32 %v2304, %v2576
  %v2790 = vadd.f32 %v2305, %v2578
  %v2791 = vadd.f32 %v2306, %v2581
  %v2792 = vadd.f32 %v2307, %v2583
  %v2793 = vadd.f32 %v2308, %v2586
  %v2794 = vadd.f32 %v2309, %v2588
  %v2795 = vadd.f32 %v2310, %v2591
  %v2796 = vadd.f32 %v2311, %v2593
  %v2797 = vadd.f32 %v2312, %v2596
  %v2798 = vadd.f32 %v2313, %v2598
  %v2799 = vadd.f32 %v2314, %v2601
  %v2800 = vadd.f32 %v2315, %v2603
  %v2801 = vadd.f32 %v2316, %v2606
  %v2802 = vadd.f32 %v2317, %v2608
  %v2803 = vadd.f32 %v2318, %v2611
  %v2804 = vadd.f32 %v2319, %v2613
  %v2805 = vadd.f32 %v2320, %v2616
  %v2806 = vadd.f32 %v2321, %v2618
  %v2807 = vadd.f32 %v2322, %v2621
  %v2808 = vadd.f32 %v2323, %v2623
  %v2809 = vadd.f32 %v2324, %v2626
  %v2810 = vadd.f32 %v2325, %v2628
  %v2811 = vadd.f32 %v2326, %v2631
  %v2812 = vadd.f32 %v2327, %v2633
  %v2813 = vadd.f32 %v2328, %v2636
  %v2814 = vadd.f32 %v2329, %v2638
  %v2815 = vadd.f32 %v2330, %v2641
  %v2816 = vadd.f32 %v2331, %v2643
  %v2817 = vadd.f32 %v2332, %v2646
  %v2818 = vadd.f32 %v2333, %v2648
  %v2819 = vadd.f32 %v2334, %v2651
  %v2820 = vadd.f32 %v2335, %v2653
  %v2821 = vadd.f32 %v2336, %v2656
  %v2822 = vadd.f32 %v2337, %v2658
  %v2823 = vadd.f32 %v2338, %v2661
  %v2824 = vadd.f32 %v2339, %v2663
  %v2825 = vadd.f32 %v2340, %v2666
  %v2826 = vadd.f32 %v2341, %v2668
  %v2827 = vadd.f32 %v2342, %v2671
  %v2828 = vadd.f32 %v2343, %v2673
  %v2829 = vadd.f32 %v2344, %v2676
  %v2830 = vadd.f32 %v2345, %v2678
  %v2831 = vadd.f32 %v2346, %v2681
  %v2832 = vadd.f32 %v2347, %v2683
  %v2833 = vadd.f32 %v2348, %v2686
  %v2834 = vadd.f32 %v2349, %v2688
  %v2835 = vadd.f32 %v2350, %v2691
  %v2836 = vadd.f32 %v2351, %v2693
  %v2837 = vadd.f32 %v2352, %v2696
  %v2838 = vadd.f32 %v2353, %v2698
  %v2839 = vadd.f32 %v2354, %v2701
  %v2840 = vadd.f32 %v2355, %v2703
  %v2841 = vadd.f32 %v2356, %v2706
  %v2842 = vadd.f32 %v2357, %v2708
  %v2843 = vadd.f32 %v2358, %v2711
  %v2844 = vadd.f32 %v2359, %v2713
  %v2845 = vadd.f32 %v2360, %v2716
  %v2846 = vadd.f32 %v2361, %v2718
  %v2847 = vld [vmem:[%s1 + $0x6] sm:$0x1]
  %2849 = vset.pattern.permute.xlu0 0
  %2850 = vperm.xlu0 %2849, %v72
  %v2851 = vpop.permute.xlu0 %2850
  %2854 = vset.pattern.permute.xlu0 0
  %2855 = vperm.xlu0 %2854, %v73
  %v2856 = vpop.permute.xlu0 %2855
  %2859 = vset.pattern.permute.xlu0 0
  %2860 = vperm.xlu0 %2859, %v126
  %v2861 = vpop.permute.xlu0 %2860
  %2864 = vset.pattern.permute.xlu0 0
  %2865 = vperm.xlu0 %2864, %v127
  %v2866 = vpop.permute.xlu0 %2865
  %v2868 = vlaneseq
  %v2869 = vshrl.u32 %v2868, 7
  %v2870 = vsub.s32 0, %v2869
  %v2871 = vrot.slane %v2847, %v2870
  %v2872 = vmul.f32 %v153, %v2871
  %v2873 = vmul.f32 %v158, %v2871
  %v2874 = vmul.f32 %v163, %v2871
  %v2875 = vmul.f32 %v168, %v2871
  %v2876 = vmul.f32 %v173, %v2871
  %v2877 = vmul.f32 %v178, %v2871
  %v2878 = vmul.f32 %v183, %v2871
  %v2879 = vmul.f32 %v188, %v2871
  %v2880 = vmul.f32 %v193, %v2871
  %v2881 = vmul.f32 %v198, %v2871
  %v2882 = vmul.f32 %v203, %v2871
  %v2883 = vmul.f32 %v208, %v2871
  %v2884 = vmul.f32 %v213, %v2871
  %v2885 = vmul.f32 %v218, %v2871
  %v2886 = vmul.f32 %v223, %v2871
  %v2887 = vmul.f32 %v228, %v2871
  %v2888 = vmul.f32 %v233, %v2871
  %v2889 = vmul.f32 %v238, %v2871
  %v2890 = vmul.f32 %v243, %v2871
  %v2891 = vmul.f32 %v248, %v2871
  %v2892 = vmul.f32 %v253, %v2871
  %v2893 = vmul.f32 %v258, %v2871
  %v2894 = vmul.f32 %v263, %v2871
  %v2895 = vmul.f32 %v268, %v2871
  %v2896 = vmul.f32 %v273, %v2871
  %v2897 = vmul.f32 %v278, %v2871
  %v2898 = vmul.f32 %v283, %v2871
  %v2899 = vmul.f32 %v288, %v2871
  %v2900 = vmul.f32 %v1718, %v2871
  %v2901 = vmul.f32 %v1723, %v2871
  %v2902 = vmul.f32 %v2851, %v2871
  %v2903 = vmul.f32 %v2856, %v2871
  %v2904 = vmul.f32 %v313, %v2871
  %v2905 = vmul.f32 %v318, %v2871
  %v2906 = vmul.f32 %v323, %v2871
  %v2907 = vmul.f32 %v328, %v2871
  %v2908 = vmul.f32 %v333, %v2871
  %v2909 = vmul.f32 %v338, %v2871
  %v2910 = vmul.f32 %v343, %v2871
  %v2911 = vmul.f32 %v348, %v2871
  %v2912 = vmul.f32 %v353, %v2871
  %v2913 = vmul.f32 %v358, %v2871
  %v2914 = vmul.f32 %v363, %v2871
  %v2915 = vmul.f32 %v368, %v2871
  %v2916 = vmul.f32 %v373, %v2871
  %v2917 = vmul.f32 %v378, %v2871
  %v2918 = vmul.f32 %v383, %v2871
  %v2919 = vmul.f32 %v388, %v2871
  %v2920 = vmul.f32 %v393, %v2871
  %v2921 = vmul.f32 %v398, %v2871
  %v2922 = vmul.f32 %v403, %v2871
  %v2923 = vmul.f32 %v408, %v2871
  %v2924 = vmul.f32 %v413, %v2871
  %v2925 = vmul.f32 %v418, %v2871
  %v2926 = vmul.f32 %v423, %v2871
  %v2927 = vmul.f32 %v428, %v2871
  %v2928 = vmul.f32 %v433, %v2871
  %v2929 = vmul.f32 %v438, %v2871
  %v2930 = vmul.f32 %v443, %v2871
  %v2931 = vmul.f32 %v448, %v2871
  %v2932 = vmul.f32 %v1728, %v2871
  %v2933 = vmul.f32 %v1733, %v2871
  %v2934 = vmul.f32 %v2861, %v2871
  %v2935 = vmul.f32 %v2866, %v2871
  %v2936 = vadd.f32 %v2783, %v2872
  %v2937 = vadd.f32 %v2784, %v2873
  %v2938 = vadd.f32 %v2785, %v2874
  %v2939 = vadd.f32 %v2786, %v2875
  %v2940 = vadd.f32 %v2787, %v2876
  %v2941 = vadd.f32 %v2788, %v2877
  %v2942 = vadd.f32 %v2789, %v2878
  %v2943 = vadd.f32 %v2790, %v2879
  %v2944 = vadd.f32 %v2791, %v2880
  %v2945 = vadd.f32 %v2792, %v2881
  %v2946 = vadd.f32 %v2793, %v2882
  %v2947 = vadd.f32 %v2794, %v2883
  %v2948 = vadd.f32 %v2795, %v2884
  %v2949 = vadd.f32 %v2796, %v2885
  %v2950 = vadd.f32 %v2797, %v2886
  %v2951 = vadd.f32 %v2798, %v2887
  %v2952 = vadd.f32 %v2799, %v2888
  %v2953 = vadd.f32 %v2800, %v2889
  %v2954 = vadd.f32 %v2801, %v2890
  %v2955 = vadd.f32 %v2802, %v2891
  %v2956 = vadd.f32 %v2803, %v2892
  %v2957 = vadd.f32 %v2804, %v2893
  %v2958 = vadd.f32 %v2805, %v2894
  %v2959 = vadd.f32 %v2806, %v2895
  %v2960 = vadd.f32 %v2807, %v2896
  %v2961 = vadd.f32 %v2808, %v2897
  %v2962 = vadd.f32 %v2809, %v2898
  %v2963 = vadd.f32 %v2810, %v2899
  %v2964 = vadd.f32 %v2811, %v2900
  %v2965 = vadd.f32 %v2812, %v2901
  %v2966 = vadd.f32 %v2813, %v2902
  %v2967 = vadd.f32 %v2814, %v2903
  %v2968 = vadd.f32 %v2815, %v2904
  %v2969 = vadd.f32 %v2816, %v2905
  %v2970 = vadd.f32 %v2817, %v2906
  %v2971 = vadd.f32 %v2818, %v2907
  %v2972 = vadd.f32 %v2819, %v2908
  %v2973 = vadd.f32 %v2820, %v2909
  %v2974 = vadd.f32 %v2821, %v2910
  %v2975 = vadd.f32 %v2822, %v2911
  %v2976 = vadd.f32 %v2823, %v2912
  %v2977 = vadd.f32 %v2824, %v2913
  %v2978 = vadd.f32 %v2825, %v2914
  %v2979 = vadd.f32 %v2826, %v2915
  %v2980 = vadd.f32 %v2827, %v2916
  %v2981 = vadd.f32 %v2828, %v2917
  %v2982 = vadd.f32 %v2829, %v2918
  %v2983 = vadd.f32 %v2830, %v2919
  %v2984 = vadd.f32 %v2831, %v2920
  %v2985 = vadd.f32 %v2832, %v2921
  %v2986 = vadd.f32 %v2833, %v2922
  %v2987 = vadd.f32 %v2834, %v2923
  %v2988 = vadd.f32 %v2835, %v2924
  %v2989 = vadd.f32 %v2836, %v2925
  %v2990 = vadd.f32 %v2837, %v2926
  %v2991 = vadd.f32 %v2838, %v2927
  %v2992 = vadd.f32 %v2839, %v2928
  %v2993 = vadd.f32 %v2840, %v2929
  %v2994 = vadd.f32 %v2841, %v2930
  %v2995 = vadd.f32 %v2842, %v2931
  %v2996 = vadd.f32 %v2843, %v2932
  %v2997 = vadd.f32 %v2844, %v2933
  %v2998 = vadd.f32 %v2845, %v2934
  %v2999 = vadd.f32 %v2846, %v2935
  %v3000 = vld [vmem:[%s1 + $0x7] sm:$0x1]
  %3002 = vset.pattern.permute.xlu0 0
  %3003 = vperm.xlu0 %3002, %v74
  %v3004 = vpop.permute.xlu0 %3003
  %3007 = vset.pattern.permute.xlu0 0
  %3008 = vperm.xlu0 %3007, %v128
  %v3009 = vpop.permute.xlu0 %3008
  %v3011 = vlaneseq
  %v3012 = vshrl.u32 %v3011, 7
  %v3013 = vsub.s32 0, %v3012
  %v3014 = vrot.slane %v3000, %v3013
  %v3015 = vmul.f32 %v153, %v3014
  %v3016 = vmul.f32 %v158, %v3014
  %v3017 = vmul.f32 %v596, %v3014
  %v3018 = vmul.f32 %v163, %v3014
  %v3019 = vmul.f32 %v168, %v3014
  %v3020 = vmul.f32 %v601, %v3014
  %v3021 = vmul.f32 %v173, %v3014
  %v3022 = vmul.f32 %v178, %v3014
  %v3023 = vmul.f32 %v606, %v3014
  %v3024 = vmul.f32 %v183, %v3014
  %v3025 = vmul.f32 %v188, %v3014
  %v3026 = vmul.f32 %v611, %v3014
  %v3027 = vmul.f32 %v193, %v3014
  %v3028 = vmul.f32 %v198, %v3014
  %v3029 = vmul.f32 %v616, %v3014
  %v3030 = vmul.f32 %v203, %v3014
  %v3031 = vmul.f32 %v208, %v3014
  %v3032 = vmul.f32 %v621, %v3014
  %v3033 = vmul.f32 %v213, %v3014
  %v3034 = vmul.f32 %v218, %v3014
  %v3035 = vmul.f32 %v626, %v3014
  %v3036 = vmul.f32 %v223, %v3014
  %v3037 = vmul.f32 %v228, %v3014
  %v3038 = vmul.f32 %v631, %v3014
  %v3039 = vmul.f32 %v233, %v3014
  %v3040 = vmul.f32 %v238, %v3014
  %v3041 = vmul.f32 %v636, %v3014
  %v3042 = vmul.f32 %v243, %v3014
  %v3043 = vmul.f32 %v248, %v3014
  %v3044 = vmul.f32 %v641, %v3014
  %v3045 = vmul.f32 %v253, %v3014
  %v3046 = vmul.f32 %v258, %v3014
  %v3047 = vmul.f32 %v646, %v3014
  %v3048 = vmul.f32 %v263, %v3014
  %v3049 = vmul.f32 %v268, %v3014
  %v3050 = vmul.f32 %v651, %v3014
  %v3051 = vmul.f32 %v273, %v3014
  %v3052 = vmul.f32 %v278, %v3014
  %v3053 = vmul.f32 %v656, %v3014
  %v3054 = vmul.f32 %v283, %v3014
  %v3055 = vmul.f32 %v288, %v3014
  %v3056 = vmul.f32 %v661, %v3014
  %v3057 = vmul.f32 %v1718, %v3014
  %v3058 = vmul.f32 %v1723, %v3014
  %v3059 = vmul.f32 %v1871, %v3014
  %v3060 = vmul.f32 %v2851, %v3014
  %v3061 = vmul.f32 %v2856, %v3014
  %v3062 = vmul.f32 %v3004, %v3014
  %v3063 = vmul.f32 %v313, %v3014
  %v3064 = vmul.f32 %v318, %v3014
  %v3065 = vmul.f32 %v676, %v3014
  %v3066 = vmul.f32 %v323, %v3014
  %v3067 = vmul.f32 %v328, %v3014
  %v3068 = vmul.f32 %v681, %v3014
  %v3069 = vmul.f32 %v333, %v3014
  %v3070 = vmul.f32 %v338, %v3014
  %v3071 = vmul.f32 %v686, %v3014
  %v3072 = vmul.f32 %v343, %v3014
  %v3073 = vmul.f32 %v348, %v3014
  %v3074 = vmul.f32 %v691, %v3014
  %v3075 = vmul.f32 %v353, %v3014
  %v3076 = vmul.f32 %v358, %v3014
  %v3077 = vmul.f32 %v696, %v3014
  %v3078 = vmul.f32 %v363, %v3014
  %v3079 = vmul.f32 %v368, %v3014
  %v3080 = vmul.f32 %v701, %v3014
  %v3081 = vmul.f32 %v373, %v3014
  %v3082 = vmul.f32 %v378, %v3014
  %v3083 = vmul.f32 %v706, %v3014
  %v3084 = vmul.f32 %v383, %v3014
  %v3085 = vmul.f32 %v388, %v3014
  %v3086 = vmul.f32 %v711, %v3014
  %v3087 = vmul.f32 %v393, %v3014
  %v3088 = vmul.f32 %v398, %v3014
  %v3089 = vmul.f32 %v716, %v3014
  %v3090 = vmul.f32 %v403, %v3014
  %v3091 = vmul.f32 %v408, %v3014
  %v3092 = vmul.f32 %v721, %v3014
  %v3093 = vmul.f32 %v413, %v3014
  %v3094 = vmul.f32 %v418, %v3014
  %v3095 = vmul.f32 %v726, %v3014
  %v3096 = vmul.f32 %v423, %v3014
  %v3097 = vmul.f32 %v428, %v3014
  %v3098 = vmul.f32 %v731, %v3014
  %v3099 = vmul.f32 %v433, %v3014
  %v3100 = vmul.f32 %v438, %v3014
  %v3101 = vmul.f32 %v736, %v3014
  %v3102 = vmul.f32 %v443, %v3014
  %v3103 = vmul.f32 %v448, %v3014
  %v3104 = vmul.f32 %v741, %v3014
  %v3105 = vmul.f32 %v1728, %v3014
  %v3106 = vmul.f32 %v1733, %v3014
  %v3107 = vmul.f32 %v1876, %v3014
  %v3108 = vmul.f32 %v2861, %v3014
  %v3109 = vmul.f32 %v2866, %v3014
  %v3110 = vmul.f32 %v3009, %v3014
  %v3207 = vrot.slane %v3015, 1
  %v3208 = vrot.slane %v3016, 1
  %v3209 = vsel %vm939, %v3207, %v3208
  %v3210 = vrot.slane %v3017, 1
  %v3211 = vsel %vm939, %v3208, %v3210
  %v3212 = vrot.slane %v3018, 1
  %v3213 = vrot.slane %v3019, 1
  %v3214 = vsel %vm939, %v3212, %v3213
  %v3215 = vrot.slane %v3020, 1
  %v3216 = vsel %vm939, %v3213, %v3215
  %v3217 = vrot.slane %v3021, 1
  %v3218 = vrot.slane %v3022, 1
  %v3219 = vsel %vm939, %v3217, %v3218
  %v3220 = vrot.slane %v3023, 1
  %v3221 = vsel %vm939, %v3218, %v3220
  %v3222 = vrot.slane %v3024, 1
  %v3223 = vrot.slane %v3025, 1
  %v3224 = vsel %vm939, %v3222, %v3223
  %v3225 = vrot.slane %v3026, 1
  %v3226 = vsel %vm939, %v3223, %v3225
  %v3227 = vrot.slane %v3027, 1
  %v3228 = vrot.slane %v3028, 1
  %v3229 = vsel %vm939, %v3227, %v3228
  %v3230 = vrot.slane %v3029, 1
  %v3231 = vsel %vm939, %v3228, %v3230
  %v3232 = vrot.slane %v3030, 1
  %v3233 = vrot.slane %v3031, 1
  %v3234 = vsel %vm939, %v3232, %v3233
  %v3235 = vrot.slane %v3032, 1
  %v3236 = vsel %vm939, %v3233, %v3235
  %v3237 = vrot.slane %v3033, 1
  %v3238 = vrot.slane %v3034, 1
  %v3239 = vsel %vm939, %v3237, %v3238
  %v3240 = vrot.slane %v3035, 1
  %v3241 = vsel %vm939, %v3238, %v3240
  %v3242 = vrot.slane %v3036, 1
  %v3243 = vrot.slane %v3037, 1
  %v3244 = vsel %vm939, %v3242, %v3243
  %v3245 = vrot.slane %v3038, 1
  %v3246 = vsel %vm939, %v3243, %v3245
  %v3247 = vrot.slane %v3039, 1
  %v3248 = vrot.slane %v3040, 1
  %v3249 = vsel %vm939, %v3247, %v3248
  %v3250 = vrot.slane %v3041, 1
  %v3251 = vsel %vm939, %v3248, %v3250
  %v3252 = vrot.slane %v3042, 1
  %v3253 = vrot.slane %v3043, 1
  %v3254 = vsel %vm939, %v3252, %v3253
  %v3255 = vrot.slane %v3044, 1
  %v3256 = vsel %vm939, %v3253, %v3255
  %v3257 = vrot.slane %v3045, 1
  %v3258 = vrot.slane %v3046, 1
  %v3259 = vsel %vm939, %v3257, %v3258
  %v3260 = vrot.slane %v3047, 1
  %v3261 = vsel %vm939, %v3258, %v3260
  %v3262 = vrot.slane %v3048, 1
  %v3263 = vrot.slane %v3049, 1
  %v3264 = vsel %vm939, %v3262, %v3263
  %v3265 = vrot.slane %v3050, 1
  %v3266 = vsel %vm939, %v3263, %v3265
  %v3267 = vrot.slane %v3051, 1
  %v3268 = vrot.slane %v3052, 1
  %v3269 = vsel %vm939, %v3267, %v3268
  %v3270 = vrot.slane %v3053, 1
  %v3271 = vsel %vm939, %v3268, %v3270
  %v3272 = vrot.slane %v3054, 1
  %v3273 = vrot.slane %v3055, 1
  %v3274 = vsel %vm939, %v3272, %v3273
  %v3275 = vrot.slane %v3056, 1
  %v3276 = vsel %vm939, %v3273, %v3275
  %v3277 = vrot.slane %v3057, 1
  %v3278 = vrot.slane %v3058, 1
  %v3279 = vsel %vm939, %v3277, %v3278
  %v3280 = vrot.slane %v3059, 1
  %v3281 = vsel %vm939, %v3278, %v3280
  %v3282 = vrot.slane %v3060, 1
  %v3283 = vrot.slane %v3061, 1
  %v3284 = vsel %vm939, %v3282, %v3283
  %v3285 = vrot.slane %v3062, 1
  %v3286 = vsel %vm939, %v3283, %v3285
  %v3287 = vrot.slane %v3063, 1
  %v3288 = vrot.slane %v3064, 1
  %v3289 = vsel %vm939, %v3287, %v3288
  %v3290 = vrot.slane %v3065, 1
  %v3291 = vsel %vm939, %v3288, %v3290
  %v3292 = vrot.slane %v3066, 1
  %v3293 = vrot.slane %v3067, 1
  %v3294 = vsel %vm939, %v3292, %v3293
  %v3295 = vrot.slane %v3068, 1
  %v3296 = vsel %vm939, %v3293, %v3295
  %v3297 = vrot.slane %v3069, 1
  %v3298 = vrot.slane %v3070, 1
  %v3299 = vsel %vm939, %v3297, %v3298
  %v3300 = vrot.slane %v3071, 1
  %v3301 = vsel %vm939, %v3298, %v3300
  %v3302 = vrot.slane %v3072, 1
  %v3303 = vrot.slane %v3073, 1
  %v3304 = vsel %vm939, %v3302, %v3303
  %v3305 = vrot.slane %v3074, 1
  %v3306 = vsel %vm939, %v3303, %v3305
  %v3307 = vrot.slane %v3075, 1
  %v3308 = vrot.slane %v3076, 1
  %v3309 = vsel %vm939, %v3307, %v3308
  %v3310 = vrot.slane %v3077, 1
  %v3311 = vsel %vm939, %v3308, %v3310
  %v3312 = vrot.slane %v3078, 1
  %v3313 = vrot.slane %v3079, 1
  %v3314 = vsel %vm939, %v3312, %v3313
  %v3315 = vrot.slane %v3080, 1
  %v3316 = vsel %vm939, %v3313, %v3315
  %v3317 = vrot.slane %v3081, 1
  %v3318 = vrot.slane %v3082, 1
  %v3319 = vsel %vm939, %v3317, %v3318
  %v3320 = vrot.slane %v3083, 1
  %v3321 = vsel %vm939, %v3318, %v3320
  %v3322 = vrot.slane %v3084, 1
  %v3323 = vrot.slane %v3085, 1
  %v3324 = vsel %vm939, %v3322, %v3323
  %v3325 = vrot.slane %v3086, 1
  %v3326 = vsel %vm939, %v3323, %v3325
  %v3327 = vrot.slane %v3087, 1
  %v3328 = vrot.slane %v3088, 1
  %v3329 = vsel %vm939, %v3327, %v3328
  %v3330 = vrot.slane %v3089, 1
  %v3331 = vsel %vm939, %v3328, %v3330
  %v3332 = vrot.slane %v3090, 1
  %v3333 = vrot.slane %v3091, 1
  %v3334 = vsel %vm939, %v3332, %v3333
  %v3335 = vrot.slane %v3092, 1
  %v3336 = vsel %vm939, %v3333, %v3335
  %v3337 = vrot.slane %v3093, 1
  %v3338 = vrot.slane %v3094, 1
  %v3339 = vsel %vm939, %v3337, %v3338
  %v3340 = vrot.slane %v3095, 1
  %v3341 = vsel %vm939, %v3338, %v3340
  %v3342 = vrot.slane %v3096, 1
  %v3343 = vrot.slane %v3097, 1
  %v3344 = vsel %vm939, %v3342, %v3343
  %v3345 = vrot.slane %v3098, 1
  %v3346 = vsel %vm939, %v3343, %v3345
  %v3347 = vrot.slane %v3099, 1
  %v3348 = vrot.slane %v3100, 1
  %v3349 = vsel %vm939, %v3347, %v3348
  %v3350 = vrot.slane %v3101, 1
  %v3351 = vsel %vm939, %v3348, %v3350
  %v3352 = vrot.slane %v3102, 1
  %v3353 = vrot.slane %v3103, 1
  %v3354 = vsel %vm939, %v3352, %v3353
  %v3355 = vrot.slane %v3104, 1
  %v3356 = vsel %vm939, %v3353, %v3355
  %v3357 = vrot.slane %v3105, 1
  %v3358 = vrot.slane %v3106, 1
  %v3359 = vsel %vm939, %v3357, %v3358
  %v3360 = vrot.slane %v3107, 1
  %v3361 = vsel %vm939, %v3358, %v3360
  %v3362 = vrot.slane %v3108, 1
  %v3363 = vrot.slane %v3109, 1
  %v3364 = vsel %vm939, %v3362, %v3363
  %v3365 = vrot.slane %v3110, 1
  %v3366 = vsel %vm939, %v3363, %v3365
  %v3431 = vadd.f32 %v2936, %v3209
  %v3432 = vadd.f32 %v2937, %v3211
  %v3433 = vadd.f32 %v2938, %v3214
  %v3434 = vadd.f32 %v2939, %v3216
  %v3435 = vadd.f32 %v2940, %v3219
  %v3436 = vadd.f32 %v2941, %v3221
  %v3437 = vadd.f32 %v2942, %v3224
  %v3438 = vadd.f32 %v2943, %v3226
  %v3439 = vadd.f32 %v2944, %v3229
  %v3440 = vadd.f32 %v2945, %v3231
  %v3441 = vadd.f32 %v2946, %v3234
  %v3442 = vadd.f32 %v2947, %v3236
  %v3443 = vadd.f32 %v2948, %v3239
  %v3444 = vadd.f32 %v2949, %v3241
  %v3445 = vadd.f32 %v2950, %v3244
  %v3446 = vadd.f32 %v2951, %v3246
  %v3447 = vadd.f32 %v2952, %v3249
  %v3448 = vadd.f32 %v2953, %v3251
  %v3449 = vadd.f32 %v2954, %v3254
  %v3450 = vadd.f32 %v2955, %v3256
  %v3451 = vadd.f32 %v2956, %v3259
  %v3452 = vadd.f32 %v2957, %v3261
  %v3453 = vadd.f32 %v2958, %v3264
  %v3454 = vadd.f32 %v2959, %v3266
  %v3455 = vadd.f32 %v2960, %v3269
  %v3456 = vadd.f32 %v2961, %v3271
  %v3457 = vadd.f32 %v2962, %v3274
  %v3458 = vadd.f32 %v2963, %v3276
  %v3459 = vadd.f32 %v2964, %v3279
  %v3460 = vadd.f32 %v2965, %v3281
  %v3461 = vadd.f32 %v2966, %v3284
  %v3462 = vadd.f32 %v2967, %v3286
  %v3463 = vadd.f32 %v2968, %v3289
  %v3464 = vadd.f32 %v2969, %v3291
  %v3465 = vadd.f32 %v2970, %v3294
  %v3466 = vadd.f32 %v2971, %v3296
  %v3467 = vadd.f32 %v2972, %v3299
  %v3468 = vadd.f32 %v2973, %v3301
  %v3469 = vadd.f32 %v2974, %v3304
  %v3470 = vadd.f32 %v2975, %v3306
  %v3471 = vadd.f32 %v2976, %v3309
  %v3472 = vadd.f32 %v2977, %v3311
  %v3473 = vadd.f32 %v2978, %v3314
  %v3474 = vadd.f32 %v2979, %v3316
  %v3475 = vadd.f32 %v2980, %v3319
  %v3476 = vadd.f32 %v2981, %v3321
  %v3477 = vadd.f32 %v2982, %v3324
  %v3478 = vadd.f32 %v2983, %v3326
  %v3479 = vadd.f32 %v2984, %v3329
  %v3480 = vadd.f32 %v2985, %v3331
  %v3481 = vadd.f32 %v2986, %v3334
  %v3482 = vadd.f32 %v2987, %v3336
  %v3483 = vadd.f32 %v2988, %v3339
  %v3484 = vadd.f32 %v2989, %v3341
  %v3485 = vadd.f32 %v2990, %v3344
  %v3486 = vadd.f32 %v2991, %v3346
  %v3487 = vadd.f32 %v2992, %v3349
  %v3488 = vadd.f32 %v2993, %v3351
  %v3489 = vadd.f32 %v2994, %v3354
  %v3490 = vadd.f32 %v2995, %v3356
  %v3491 = vadd.f32 %v2996, %v3359
  %v3492 = vadd.f32 %v2997, %v3361
  %v3493 = vadd.f32 %v2998, %v3364
  %v3494 = vadd.f32 %v2999, %v3366
  %v3495 = vld [vmem:[%s1 + $0x8] sm:$0x1]
  %v3496 = vlaneseq
  %v3497 = vshrl.u32 %v3496, 7
  %v3498 = vsub.s32 0, %v3497
  %v3499 = vrot.slane %v3495, %v3498
  %v3500 = vmul.f32 %v153, %v3499
  %v3501 = vmul.f32 %v158, %v3499
  %v3502 = vmul.f32 %v596, %v3499
  %v3503 = vmul.f32 %v163, %v3499
  %v3504 = vmul.f32 %v168, %v3499
  %v3505 = vmul.f32 %v601, %v3499
  %v3506 = vmul.f32 %v173, %v3499
  %v3507 = vmul.f32 %v178, %v3499
  %v3508 = vmul.f32 %v606, %v3499
  %v3509 = vmul.f32 %v183, %v3499
  %v3510 = vmul.f32 %v188, %v3499
  %v3511 = vmul.f32 %v611, %v3499
  %v3512 = vmul.f32 %v193, %v3499
  %v3513 = vmul.f32 %v198, %v3499
  %v3514 = vmul.f32 %v616, %v3499
  %v3515 = vmul.f32 %v203, %v3499
  %v3516 = vmul.f32 %v208, %v3499
  %v3517 = vmul.f32 %v621, %v3499
  %v3518 = vmul.f32 %v213, %v3499
  %v3519 = vmul.f32 %v218, %v3499
  %v3520 = vmul.f32 %v626, %v3499
  %v3521 = vmul.f32 %v223, %v3499
  %v3522 = vmul.f32 %v228, %v3499
  %v3523 = vmul.f32 %v631, %v3499
  %v3524 = vmul.f32 %v233, %v3499
  %v3525 = vmul.f32 %v238, %v3499
  %v3526 = vmul.f32 %v636, %v3499
  %v3527 = vmul.f32 %v243, %v3499
  %v3528 = vmul.f32 %v248, %v3499
  %v3529 = vmul.f32 %v641, %v3499
  %v3530 = vmul.f32 %v253, %v3499
  %v3531 = vmul.f32 %v258, %v3499
  %v3532 = vmul.f32 %v646, %v3499
  %v3533 = vmul.f32 %v263, %v3499
  %v3534 = vmul.f32 %v268, %v3499
  %v3535 = vmul.f32 %v651, %v3499
  %v3536 = vmul.f32 %v273, %v3499
  %v3537 = vmul.f32 %v278, %v3499
  %v3538 = vmul.f32 %v656, %v3499
  %v3539 = vmul.f32 %v283, %v3499
  %v3540 = vmul.f32 %v288, %v3499
  %v3541 = vmul.f32 %v661, %v3499
  %v3542 = vmul.f32 %v1718, %v3499
  %v3543 = vmul.f32 %v1723, %v3499
  %v3544 = vmul.f32 %v1871, %v3499
  %v3545 = vmul.f32 %v2851, %v3499
  %v3546 = vmul.f32 %v2856, %v3499
  %v3547 = vmul.f32 %v3004, %v3499
  %v3548 = vmul.f32 %v313, %v3499
  %v3549 = vmul.f32 %v318, %v3499
  %v3550 = vmul.f32 %v676, %v3499
  %v3551 = vmul.f32 %v323, %v3499
  %v3552 = vmul.f32 %v328, %v3499
  %v3553 = vmul.f32 %v681, %v3499
  %v3554 = vmul.f32 %v333, %v3499
  %v3555 = vmul.f32 %v338, %v3499
  %v3556 = vmul.f32 %v686, %v3499
  %v3557 = vmul.f32 %v343, %v3499
  %v3558 = vmul.f32 %v348, %v3499
  %v3559 = vmul.f32 %v691, %v3499
  %v3560 = vmul.f32 %v353, %v3499
  %v3561 = vmul.f32 %v358, %v3499
  %v3562 = vmul.f32 %v696, %v3499
  %v3563 = vmul.f32 %v363, %v3499
  %v3564 = vmul.f32 %v368, %v3499
  %v3565 = vmul.f32 %v701, %v3499
  %v3566 = vmul.f32 %v373, %v3499
  %v3567 = vmul.f32 %v378, %v3499
  %v3568 = vmul.f32 %v706, %v3499
  %v3569 = vmul.f32 %v383, %v3499
  %v3570 = vmul.f32 %v388, %v3499
  %v3571 = vmul.f32 %v711, %v3499
  %v3572 = vmul.f32 %v393, %v3499
  %v3573 = vmul.f32 %v398, %v3499
  %v3574 = vmul.f32 %v716, %v3499
  %v3575 = vmul.f32 %v403, %v3499
  %v3576 = vmul.f32 %v408, %v3499
  %v3577 = vmul.f32 %v721, %v3499
  %v3578 = vmul.f32 %v413, %v3499
  %v3579 = vmul.f32 %v418, %v3499
  %v3580 = vmul.f32 %v726, %v3499
  %v3581 = vmul.f32 %v423, %v3499
  %v3582 = vmul.f32 %v428, %v3499
  %v3583 = vmul.f32 %v731, %v3499
  %v3584 = vmul.f32 %v433, %v3499
  %v3585 = vmul.f32 %v438, %v3499
  %v3586 = vmul.f32 %v736, %v3499
  %v3587 = vmul.f32 %v443, %v3499
  %v3588 = vmul.f32 %v448, %v3499
  %v3589 = vmul.f32 %v741, %v3499
  %v3590 = vmul.f32 %v1728, %v3499
  %v3591 = vmul.f32 %v1733, %v3499
  %v3592 = vmul.f32 %v1876, %v3499
  %v3593 = vmul.f32 %v2861, %v3499
  %v3594 = vmul.f32 %v2866, %v3499
  %v3595 = vmul.f32 %v3009, %v3499
  %v3692 = vrot.slane %v3500, 2
  %v3693 = vrot.slane %v3501, 2
  %v3694 = vsel %vm1425, %v3692, %v3693
  %v3695 = vrot.slane %v3502, 2
  %v3696 = vsel %vm1425, %v3693, %v3695
  %v3697 = vrot.slane %v3503, 2
  %v3698 = vrot.slane %v3504, 2
  %v3699 = vsel %vm1425, %v3697, %v3698
  %v3700 = vrot.slane %v3505, 2
  %v3701 = vsel %vm1425, %v3698, %v3700
  %v3702 = vrot.slane %v3506, 2
  %v3703 = vrot.slane %v3507, 2
  %v3704 = vsel %vm1425, %v3702, %v3703
  %v3705 = vrot.slane %v3508, 2
  %v3706 = vsel %vm1425, %v3703, %v3705
  %v3707 = vrot.slane %v3509, 2
  %v3708 = vrot.slane %v3510, 2
  %v3709 = vsel %vm1425, %v3707, %v3708
  %v3710 = vrot.slane %v3511, 2
  %v3711 = vsel %vm1425, %v3708, %v3710
  %v3712 = vrot.slane %v3512, 2
  %v3713 = vrot.slane %v3513, 2
  %v3714 = vsel %vm1425, %v3712, %v3713
  %v3715 = vrot.slane %v3514, 2
  %v3716 = vsel %vm1425, %v3713, %v3715
  %v3717 = vrot.slane %v3515, 2
  %v3718 = vrot.slane %v3516, 2
  %v3719 = vsel %vm1425, %v3717, %v3718
  %v3720 = vrot.slane %v3517, 2
  %v3721 = vsel %vm1425, %v3718, %v3720
  %v3722 = vrot.slane %v3518, 2
  %v3723 = vrot.slane %v3519, 2
  %v3724 = vsel %vm1425, %v3722, %v3723
  %v3725 = vrot.slane %v3520, 2
  %v3726 = vsel %vm1425, %v3723, %v3725
  %v3727 = vrot.slane %v3521, 2
  %v3728 = vrot.slane %v3522, 2
  %v3729 = vsel %vm1425, %v3727, %v3728
  %v3730 = vrot.slane %v3523, 2
  %v3731 = vsel %vm1425, %v3728, %v3730
  %v3732 = vrot.slane %v3524, 2
  %v3733 = vrot.slane %v3525, 2
  %v3734 = vsel %vm1425, %v3732, %v3733
  %v3735 = vrot.slane %v3526, 2
  %v3736 = vsel %vm1425, %v3733, %v3735
  %v3737 = vrot.slane %v3527, 2
  %v3738 = vrot.slane %v3528, 2
  %v3739 = vsel %vm1425, %v3737, %v3738
  %v3740 = vrot.slane %v3529, 2
  %v3741 = vsel %vm1425, %v3738, %v3740
  %v3742 = vrot.slane %v3530, 2
  %v3743 = vrot.slane %v3531, 2
  %v3744 = vsel %vm1425, %v3742, %v3743
  %v3745 = vrot.slane %v3532, 2
  %v3746 = vsel %vm1425, %v3743, %v3745
  %v3747 = vrot.slane %v3533, 2
  %v3748 = vrot.slane %v3534, 2
  %v3749 = vsel %vm1425, %v3747, %v3748
  %v3750 = vrot.slane %v3535, 2
  %v3751 = vsel %vm1425, %v3748, %v3750
  %v3752 = vrot.slane %v3536, 2
  %v3753 = vrot.slane %v3537, 2
  %v3754 = vsel %vm1425, %v3752, %v3753
  %v3755 = vrot.slane %v3538, 2
  %v3756 = vsel %vm1425, %v3753, %v3755
  %v3757 = vrot.slane %v3539, 2
  %v3758 = vrot.slane %v3540, 2
  %v3759 = vsel %vm1425, %v3757, %v3758
  %v3760 = vrot.slane %v3541, 2
  %v3761 = vsel %vm1425, %v3758, %v3760
  %v3762 = vrot.slane %v3542, 2
  %v3763 = vrot.slane %v3543, 2
  %v3764 = vsel %vm1425, %v3762, %v3763
  %v3765 = vrot.slane %v3544, 2
  %v3766 = vsel %vm1425, %v3763, %v3765
  %v3767 = vrot.slane %v3545, 2
  %v3768 = vrot.slane %v3546, 2
  %v3769 = vsel %vm1425, %v3767, %v3768
  %v3770 = vrot.slane %v3547, 2
  %v3771 = vsel %vm1425, %v3768, %v3770
  %v3772 = vrot.slane %v3548, 2
  %v3773 = vrot.slane %v3549, 2
  %v3774 = vsel %vm1425, %v3772, %v3773
  %v3775 = vrot.slane %v3550, 2
  %v3776 = vsel %vm1425, %v3773, %v3775
  %v3777 = vrot.slane %v3551, 2
  %v3778 = vrot.slane %v3552, 2
  %v3779 = vsel %vm1425, %v3777, %v3778
  %v3780 = vrot.slane %v3553, 2
  %v3781 = vsel %vm1425, %v3778, %v3780
  %v3782 = vrot.slane %v3554, 2
  %v3783 = vrot.slane %v3555, 2
  %v3784 = vsel %vm1425, %v3782, %v3783
  %v3785 = vrot.slane %v3556, 2
  %v3786 = vsel %vm1425, %v3783, %v3785
  %v3787 = vrot.slane %v3557, 2
  %v3788 = vrot.slane %v3558, 2
  %v3789 = vsel %vm1425, %v3787, %v3788
  %v3790 = vrot.slane %v3559, 2
  %v3791 = vsel %vm1425, %v3788, %v3790
  %v3792 = vrot.slane %v3560, 2
  %v3793 = vrot.slane %v3561, 2
  %v3794 = vsel %vm1425, %v3792, %v3793
  %v3795 = vrot.slane %v3562, 2
  %v3796 = vsel %vm1425, %v3793, %v3795
  %v3797 = vrot.slane %v3563, 2
  %v3798 = vrot.slane %v3564, 2
  %v3799 = vsel %vm1425, %v3797, %v3798
  %v3800 = vrot.slane %v3565, 2
  %v3801 = vsel %vm1425, %v3798, %v3800
  %v3802 = vrot.slane %v3566, 2
  %v3803 = vrot.slane %v3567, 2
  %v3804 = vsel %vm1425, %v3802, %v3803
  %v3805 = vrot.slane %v3568, 2
  %v3806 = vsel %vm1425, %v3803, %v3805
  %v3807 = vrot.slane %v3569, 2
  %v3808 = vrot.slane %v3570, 2
  %v3809 = vsel %vm1425, %v3807, %v3808
  %v3810 = vrot.slane %v3571, 2
  %v3811 = vsel %vm1425, %v3808, %v3810
  %v3812 = vrot.slane %v3572, 2
  %v3813 = vrot.slane %v3573, 2
  %v3814 = vsel %vm1425, %v3812, %v3813
  %v3815 = vrot.slane %v3574, 2
  %v3816 = vsel %vm1425, %v3813, %v3815
  %v3817 = vrot.slane %v3575, 2
  %v3818 = vrot.slane %v3576, 2
  %v3819 = vsel %vm1425, %v3817, %v3818
  %v3820 = vrot.slane %v3577, 2
  %v3821 = vsel %vm1425, %v3818, %v3820
  %v3822 = vrot.slane %v3578, 2
  %v3823 = vrot.slane %v3579, 2
  %v3824 = vsel %vm1425, %v3822, %v3823
  %v3825 = vrot.slane %v3580, 2
  %v3826 = vsel %vm1425, %v3823, %v3825
  %v3827 = vrot.slane %v3581, 2
  %v3828 = vrot.slane %v3582, 2
  %v3829 = vsel %vm1425, %v3827, %v3828
  %v3830 = vrot.slane %v3583, 2
  %v3831 = vsel %vm1425, %v3828, %v3830
  %v3832 = vrot.slane %v3584, 2
  %v3833 = vrot.slane %v3585, 2
  %v3834 = vsel %vm1425, %v3832, %v3833
  %v3835 = vrot.slane %v3586, 2
  %v3836 = vsel %vm1425, %v3833, %v3835
  %v3837 = vrot.slane %v3587, 2
  %v3838 = vrot.slane %v3588, 2
  %v3839 = vsel %vm1425, %v3837, %v3838
  %v3840 = vrot.slane %v3589, 2
  %v3841 = vsel %vm1425, %v3838, %v3840
  %v3842 = vrot.slane %v3590, 2
  %v3843 = vrot.slane %v3591, 2
  %v3844 = vsel %vm1425, %v3842, %v3843
  %v3845 = vrot.slane %v3592, 2
  %v3846 = vsel %vm1425, %v3843, %v3845
  %v3847 = vrot.slane %v3593, 2
  %v3848 = vrot.slane %v3594, 2
  %v3849 = vsel %vm1425, %v3847, %v3848
  %v3850 = vrot.slane %v3595, 2
  %v3851 = vsel %vm1425, %v3848, %v3850
  %v3916 = vadd.f32 %v3431, %v3694
  %v3917 = vadd.f32 %v3432, %v3696
  %v3918 = vadd.f32 %v3433, %v3699
  %v3919 = vadd.f32 %v3434, %v3701
  %v3920 = vadd.f32 %v3435, %v3704
  %v3921 = vadd.f32 %v3436, %v3706
  %v3922 = vadd.f32 %v3437, %v3709
  %v3923 = vadd.f32 %v3438, %v3711
  %v3924 = vadd.f32 %v3439, %v3714
  %v3925 = vadd.f32 %v3440, %v3716
  %v3926 = vadd.f32 %v3441, %v3719
  %v3927 = vadd.f32 %v3442, %v3721
  %v3928 = vadd.f32 %v3443, %v3724
  %v3929 = vadd.f32 %v3444, %v3726
  %v3930 = vadd.f32 %v3445, %v3729
  %v3931 = vadd.f32 %v3446, %v3731
  %v3932 = vadd.f32 %v3447, %v3734
  %v3933 = vadd.f32 %v3448, %v3736
  %v3934 = vadd.f32 %v3449, %v3739
  %v3935 = vadd.f32 %v3450, %v3741
  %v3936 = vadd.f32 %v3451, %v3744
  %v3937 = vadd.f32 %v3452, %v3746
  %v3938 = vadd.f32 %v3453, %v3749
  %v3939 = vadd.f32 %v3454, %v3751
  %v3940 = vadd.f32 %v3455, %v3754
  %v3941 = vadd.f32 %v3456, %v3756
  %v3942 = vadd.f32 %v3457, %v3759
  %v3943 = vadd.f32 %v3458, %v3761
  %v3944 = vadd.f32 %v3459, %v3764
  %v3945 = vadd.f32 %v3460, %v3766
  %v3946 = vadd.f32 %v3461, %v3769
  %v3947 = vadd.f32 %v3462, %v3771
  %v3948 = vadd.f32 %v3463, %v3774
  %v3949 = vadd.f32 %v3464, %v3776
  %v3950 = vadd.f32 %v3465, %v3779
  %v3951 = vadd.f32 %v3466, %v3781
  %v3952 = vadd.f32 %v3467, %v3784
  %v3953 = vadd.f32 %v3468, %v3786
  %v3954 = vadd.f32 %v3469, %v3789
  %v3955 = vadd.f32 %v3470, %v3791
  %v3956 = vadd.f32 %v3471, %v3794
  %v3957 = vadd.f32 %v3472, %v3796
  %v3958 = vadd.f32 %v3473, %v3799
  %v3959 = vadd.f32 %v3474, %v3801
  %v3960 = vadd.f32 %v3475, %v3804
  %v3961 = vadd.f32 %v3476, %v3806
  %v3962 = vadd.f32 %v3477, %v3809
  %v3963 = vadd.f32 %v3478, %v3811
  %v3964 = vadd.f32 %v3479, %v3814
  %v3965 = vadd.f32 %v3480, %v3816
  %v3966 = vadd.f32 %v3481, %v3819
  %v3967 = vadd.f32 %v3482, %v3821
  %v3968 = vadd.f32 %v3483, %v3824
  %v3969 = vadd.f32 %v3484, %v3826
  %v3970 = vadd.f32 %v3485, %v3829
  %v3971 = vadd.f32 %v3486, %v3831
  %v3972 = vadd.f32 %v3487, %v3834
  %v3973 = vadd.f32 %v3488, %v3836
  %v3974 = vadd.f32 %v3489, %v3839
  %v3975 = vadd.f32 %v3490, %v3841
  %v3976 = vadd.f32 %v3491, %v3844
  %v3977 = vadd.f32 %v3492, %v3846
  %v3978 = vadd.f32 %v3493, %v3849
  %v3979 = vadd.f32 %v3494, %v3851
  %v3980 = vld [vmem:[%s2] sm:$0x1]
  %v3982 = vlaneseq
  %v3983 = vshrl.u32 %v3982, 7
  %v3984 = vsub.s32 0, %v3983
  %v3985 = vrot.slane %v3980, %v3984
  %v3987 = vadd.f32 %v3916, %v3985
  %v3988 = vadd.f32 %v3917, %v3985
  %v3989 = vadd.f32 %v3918, %v3985
  %v3990 = vadd.f32 %v3919, %v3985
  %v3991 = vadd.f32 %v3920, %v3985
  %v3992 = vadd.f32 %v3921, %v3985
  %v3993 = vadd.f32 %v3922, %v3985
  %v3994 = vadd.f32 %v3923, %v3985
  %v3995 = vadd.f32 %v3924, %v3985
  %v3996 = vadd.f32 %v3925, %v3985
  %v3997 = vadd.f32 %v3926, %v3985
  %v3998 = vadd.f32 %v3927, %v3985
  %v3999 = vadd.f32 %v3928, %v3985
  %v4000 = vadd.f32 %v3929, %v3985
  %v4001 = vadd.f32 %v3930, %v3985
  %v4002 = vadd.f32 %v3931, %v3985
  %v4003 = vadd.f32 %v3932, %v3985
  %v4004 = vadd.f32 %v3933, %v3985
  %v4005 = vadd.f32 %v3934, %v3985
  %v4006 = vadd.f32 %v3935, %v3985
  %v4007 = vadd.f32 %v3936, %v3985
  %v4008 = vadd.f32 %v3937, %v3985
  %v4009 = vadd.f32 %v3938, %v3985
  %v4010 = vadd.f32 %v3939, %v3985
  %v4011 = vadd.f32 %v3940, %v3985
  %v4012 = vadd.f32 %v3941, %v3985
  %v4013 = vadd.f32 %v3942, %v3985
  %v4014 = vadd.f32 %v3943, %v3985
  %v4015 = vadd.f32 %v3944, %v3985
  %v4016 = vadd.f32 %v3945, %v3985
  %v4017 = vadd.f32 %v3946, %v3985
  %v4018 = vadd.f32 %v3947, %v3985
  %v4019 = vadd.f32 %v3948, %v3985
  %v4020 = vadd.f32 %v3949, %v3985
  %v4021 = vadd.f32 %v3950, %v3985
  %v4022 = vadd.f32 %v3951, %v3985
  %v4023 = vadd.f32 %v3952, %v3985
  %v4024 = vadd.f32 %v3953, %v3985
  %v4025 = vadd.f32 %v3954, %v3985
  %v4026 = vadd.f32 %v3955, %v3985
  %v4027 = vadd.f32 %v3956, %v3985
  %v4028 = vadd.f32 %v3957, %v3985
  %v4029 = vadd.f32 %v3958, %v3985
  %v4030 = vadd.f32 %v3959, %v3985
  %v4031 = vadd.f32 %v3960, %v3985
  %v4032 = vadd.f32 %v3961, %v3985
  %v4033 = vadd.f32 %v3962, %v3985
  %v4034 = vadd.f32 %v3963, %v3985
  %v4035 = vadd.f32 %v3964, %v3985
  %v4036 = vadd.f32 %v3965, %v3985
  %v4037 = vadd.f32 %v3966, %v3985
  %v4038 = vadd.f32 %v3967, %v3985
  %v4039 = vadd.f32 %v3968, %v3985
  %v4040 = vadd.f32 %v3969, %v3985
  %v4041 = vadd.f32 %v3970, %v3985
  %v4042 = vadd.f32 %v3971, %v3985
  %v4043 = vadd.f32 %v3972, %v3985
  %v4044 = vadd.f32 %v3973, %v3985
  %v4045 = vadd.f32 %v3974, %v3985
  %v4046 = vadd.f32 %v3975, %v3985
  %v4047 = vadd.f32 %v3976, %v3985
  %v4048 = vadd.f32 %v3977, %v3985
  %v4049 = vadd.f32 %v3978, %v3985
  %v4050 = vadd.f32 %v3979, %v3985
  %v4051 = vmax.f32 %v3987, 0.0
  %v4052 = vmax.f32 %v3988, 0.0
  %v4053 = vmax.f32 %v3989, 0.0
  %v4054 = vmax.f32 %v3990, 0.0
  %v4055 = vmax.f32 %v3991, 0.0
  %v4056 = vmax.f32 %v3992, 0.0
  %v4057 = vmax.f32 %v3993, 0.0
  %v4058 = vmax.f32 %v3994, 0.0
  %v4059 = vmax.f32 %v3995, 0.0
  %v4060 = vmax.f32 %v3996, 0.0
  %v4061 = vmax.f32 %v3997, 0.0
  %v4062 = vmax.f32 %v3998, 0.0
  %v4063 = vmax.f32 %v3999, 0.0
  %v4064 = vmax.f32 %v4000, 0.0
  %v4065 = vmax.f32 %v4001, 0.0
  %v4066 = vmax.f32 %v4002, 0.0
  %v4067 = vmax.f32 %v4003, 0.0
  %v4068 = vmax.f32 %v4004, 0.0
  %v4069 = vmax.f32 %v4005, 0.0
  %v4070 = vmax.f32 %v4006, 0.0
  %v4071 = vmax.f32 %v4007, 0.0
  %v4072 = vmax.f32 %v4008, 0.0
  %v4073 = vmax.f32 %v4009, 0.0
  %v4074 = vmax.f32 %v4010, 0.0
  %v4075 = vmax.f32 %v4011, 0.0
  %v4076 = vmax.f32 %v4012, 0.0
  %v4077 = vmax.f32 %v4013, 0.0
  %v4078 = vmax.f32 %v4014, 0.0
  %v4079 = vmax.f32 %v4015, 0.0
  %v4080 = vmax.f32 %v4016, 0.0
  %v4081 = vmax.f32 %v4017, 0.0
  %v4082 = vmax.f32 %v4018, 0.0
  %v4083 = vmax.f32 %v4019, 0.0
  %v4084 = vmax.f32 %v4020, 0.0
  %v4085 = vmax.f32 %v4021, 0.0
  %v4086 = vmax.f32 %v4022, 0.0
  %v4087 = vmax.f32 %v4023, 0.0
  %v4088 = vmax.f32 %v4024, 0.0
  %v4089 = vmax.f32 %v4025, 0.0
  %v4090 = vmax.f32 %v4026, 0.0
  %v4091 = vmax.f32 %v4027, 0.0
  %v4092 = vmax.f32 %v4028, 0.0
  %v4093 = vmax.f32 %v4029, 0.0
  %v4094 = vmax.f32 %v4030, 0.0
  %v4095 = vmax.f32 %v4031, 0.0
  %v4096 = vmax.f32 %v4032, 0.0
  %v4097 = vmax.f32 %v4033, 0.0
  %v4098 = vmax.f32 %v4034, 0.0
  %v4099 = vmax.f32 %v4035, 0.0
  %v4100 = vmax.f32 %v4036, 0.0
  %v4101 = vmax.f32 %v4037, 0.0
  %v4102 = vmax.f32 %v4038, 0.0
  %v4103 = vmax.f32 %v4039, 0.0
  %v4104 = vmax.f32 %v4040, 0.0
  %v4105 = vmax.f32 %v4041, 0.0
  %v4106 = vmax.f32 %v4042, 0.0
  %v4107 = vmax.f32 %v4043, 0.0
  %v4108 = vmax.f32 %v4044, 0.0
  %v4109 = vmax.f32 %v4045, 0.0
  %v4110 = vmax.f32 %v4046, 0.0
  %v4111 = vmax.f32 %v4047, 0.0
  %v4112 = vmax.f32 %v4048, 0.0
  %v4113 = vmax.f32 %v4049, 0.0
  %v4114 = vmax.f32 %v4050, 0.0
  %v4115 = vmax.f32 %v4051, %v4053
  %v4116 = vmax.f32 %v4052, %v4054
  %v4117 = vmax.f32 %v4055, %v4057
  %v4118 = vmax.f32 %v4056, %v4058
  %v4119 = vmax.f32 %v4059, %v4061
  %v4120 = vmax.f32 %v4060, %v4062
  %v4121 = vmax.f32 %v4063, %v4065
  %v4122 = vmax.f32 %v4064, %v4066
  %v4123 = vmax.f32 %v4067, %v4069
  %v4124 = vmax.f32 %v4068, %v4070
  %v4125 = vmax.f32 %v4071, %v4073
  %v4126 = vmax.f32 %v4072, %v4074
  %v4127 = vmax.f32 %v4075, %v4077
  %v4128 = vmax.f32 %v4076, %v4078
  %v4129 = vmax.f32 %v4079, %v4081
  %v4130 = vmax.f32 %v4080, %v4082
  %v4131 = vmax.f32 %v4083, %v4085
  %v4132 = vmax.f32 %v4084, %v4086
  %v4133 = vmax.f32 %v4087, %v4089
  %v4134 = vmax.f32 %v4088, %v4090
  %v4135 = vmax.f32 %v4091, %v4093
  %v4136 = vmax.f32 %v4092, %v4094
  %v4137 = vmax.f32 %v4095, %v4097
  %v4138 = vmax.f32 %v4096, %v4098
  %v4139 = vmax.f32 %v4099, %v4101
  %v4140 = vmax.f32 %v4100, %v4102
  %v4141 = vmax.f32 %v4103, %v4105
  %v4142 = vmax.f32 %v4104, %v4106
  %v4143 = vmax.f32 %v4107, %v4109
  %v4144 = vmax.f32 %v4108, %v4110
  %v4145 = vmax.f32 %v4111, %v4113
  %v4146 = vmax.f32 %v4112, %v4114
  %vm4147 = vcmask 523264
  %4148 = vst.msk [vmem:[#allocation2] sm:$0xff] %vm4147, %v4115
  %4149 = vst.msk [vmem:[#allocation2 + $0x8] sm:$0xff] %vm4147, %v4116
  %4150 = vst.msk [vmem:[#allocation2 + $0x10] sm:$0xff] %vm4147, %v4117
  %4151 = vst.msk [vmem:[#allocation2 + $0x18] sm:$0xff] %vm4147, %v4118
  %4152 = vst.msk [vmem:[#allocation2 + $0x20] sm:$0xff] %vm4147, %v4119
  %4153 = vst.msk [vmem:[#allocation2 + $0x28] sm:$0xff] %vm4147, %v4120
  %4154 = vst.msk [vmem:[#allocation2 + $0x30] sm:$0xff] %vm4147, %v4121
  %4155 = vst.msk [vmem:[#allocation2 + $0x38] sm:$0xff] %vm4147, %v4122
  %4156 = vst.msk [vmem:[#allocation2 + $0x40] sm:$0xff] %vm4147, %v4123
  %4157 = vst.msk [vmem:[#allocation2 + $0x48] sm:$0xff] %vm4147, %v4124
  %4158 = vst.msk [vmem:[#allocation2 + $0x50] sm:$0xff] %vm4147, %v4125
  %4159 = vst.msk [vmem:[#allocation2 + $0x58] sm:$0xff] %vm4147, %v4126
  %4160 = vst.msk [vmem:[#allocation2 + $0x60] sm:$0xff] %vm4147, %v4127
  %4161 = vst.msk [vmem:[#allocation2 + $0x68] sm:$0xff] %vm4147, %v4128
  %4162 = vst.msk [vmem:[#allocation2 + $0x70] sm:$0xff] %vm4147, %v4129
  %4163 = vst.msk [vmem:[#allocation2 + $0x78] sm:$0xff] %vm4147, %v4130
  %4164 = vst.msk [vmem:[#allocation2 + $0x80] sm:$0xff] %vm4147, %v4131
  %4165 = vst.msk [vmem:[#allocation2 + $0x88] sm:$0xff] %vm4147, %v4132
  %4166 = vst.msk [vmem:[#allocation2 + $0x90] sm:$0xff] %vm4147, %v4133
  %4167 = vst.msk [vmem:[#allocation2 + $0x98] sm:$0xff] %vm4147, %v4134
  %4168 = vst.msk [vmem:[#allocation2 + $0xa0] sm:$0xff] %vm4147, %v4135
  %4169 = vst.msk [vmem:[#allocation2 + $0xa8] sm:$0xff] %vm4147, %v4136
  %4170 = vst.msk [vmem:[#allocation2 + $0xb0] sm:$0xff] %vm4147, %v4137
  %4171 = vst.msk [vmem:[#allocation2 + $0xb8] sm:$0xff] %vm4147, %v4138
  %4172 = vst.msk [vmem:[#allocation2 + $0xc0] sm:$0xff] %vm4147, %v4139
  %4173 = vst.msk [vmem:[#allocation2 + $0xc8] sm:$0xff] %vm4147, %v4140
  %4174 = vst.msk [vmem:[#allocation2 + $0xd0] sm:$0xff] %vm4147, %v4141
  %4175 = vst.msk [vmem:[#allocation2 + $0xd8] sm:$0xff] %vm4147, %v4142
  %4176 = vst.msk [vmem:[#allocation2 + $0xe0] sm:$0xff] %vm4147, %v4143
  %4177 = vst.msk [vmem:[#allocation2 + $0xe8] sm:$0xff] %vm4147, %v4144
  %4178 = vst.msk [vmem:[#allocation2 + $0xf0] sm:$0xff] %vm4147, %v4145
  %4179 = vst.msk [vmem:[#allocation2 + $0xf8] sm:$0xff] %vm4147, %v4146
  %v4180 = vld [vmem:[#allocation2] ss:$2 sm:$0xff]
  %s4181 = scalar_lea.vmem [#allocation2], 16
  %v4182 = vld [vmem:[%s4181] ss:$2 sm:$0xff]
  %s4183 = scalar_lea.vmem [#allocation2], 32
  %v4184 = vld [vmem:[%s4183] ss:$2 sm:$0xff]
  %s4185 = scalar_lea.vmem [#allocation2], 48
  %v4186 = vld [vmem:[%s4185] ss:$2 sm:$0xff]
  %s4187 = scalar_lea.vmem [#allocation2], 64
  %v4188 = vld [vmem:[%s4187] ss:$2 sm:$0xff]
  %s4189 = scalar_lea.vmem [#allocation2], 80
  %v4190 = vld [vmem:[%s4189] ss:$2 sm:$0xff]
  %s4191 = scalar_lea.vmem [#allocation2], 96
  %v4192 = vld [vmem:[%s4191] ss:$2 sm:$0xff]
  %s4193 = scalar_lea.vmem [#allocation2], 112
  %v4194 = vld [vmem:[%s4193] ss:$2 sm:$0xff]
  %s4195 = scalar_lea.vmem [#allocation2], 128
  %v4196 = vld [vmem:[%s4195] ss:$2 sm:$0xff]
  %s4197 = scalar_lea.vmem [#allocation2], 144
  %v4198 = vld [vmem:[%s4197] ss:$2 sm:$0xff]
  %s4199 = scalar_lea.vmem [#allocation2], 160
  %v4200 = vld [vmem:[%s4199] ss:$2 sm:$0xff]
  %s4201 = scalar_lea.vmem [#allocation2], 176
  %v4202 = vld [vmem:[%s4201] ss:$2 sm:$0xff]
  %s4203 = scalar_lea.vmem [#allocation2], 192
  %v4204 = vld [vmem:[%s4203] ss:$2 sm:$0xff]
  %s4205 = scalar_lea.vmem [#allocation2], 208
  %v4206 = vld [vmem:[%s4205] ss:$2 sm:$0xff]
  %s4207 = scalar_lea.vmem [#allocation2], 224
  %v4208 = vld [vmem:[%s4207] ss:$2 sm:$0xff]
  %s4209 = scalar_lea.vmem [#allocation2], 240
  %v4210 = vld [vmem:[%s4209] ss:$2 sm:$0xff]
  %s4211 = scalar_lea.vmem [#allocation2], 1
  %v4212 = vld [vmem:[%s4211] ss:$2 sm:$0xff]
  %s4213 = scalar_lea.vmem [#allocation2], 17
  %v4214 = vld [vmem:[%s4213] ss:$2 sm:$0xff]
  %s4215 = scalar_lea.vmem [#allocation2], 33
  %v4216 = vld [vmem:[%s4215] ss:$2 sm:$0xff]
  %s4217 = scalar_lea.vmem [#allocation2], 49
  %v4218 = vld [vmem:[%s4217] ss:$2 sm:$0xff]
  %s4219 = scalar_lea.vmem [#allocation2], 65
  %v4220 = vld [vmem:[%s4219] ss:$2 sm:$0xff]
  %s4221 = scalar_lea.vmem [#allocation2], 81
  %v4222 = vld [vmem:[%s4221] ss:$2 sm:$0xff]
  %s4223 = scalar_lea.vmem [#allocation2], 97
  %v4224 = vld [vmem:[%s4223] ss:$2 sm:$0xff]
  %s4225 = scalar_lea.vmem [#allocation2], 113
  %v4226 = vld [vmem:[%s4225] ss:$2 sm:$0xff]
  %s4227 = scalar_lea.vmem [#allocation2], 129
  %v4228 = vld [vmem:[%s4227] ss:$2 sm:$0xff]
  %s4229 = scalar_lea.vmem [#allocation2], 145
  %v4230 = vld [vmem:[%s4229] ss:$2 sm:$0xff]
  %s4231 = scalar_lea.vmem [#allocation2], 161
  %v4232 = vld [vmem:[%s4231] ss:$2 sm:$0xff]
  %s4233 = scalar_lea.vmem [#allocation2], 177
  %v4234 = vld [vmem:[%s4233] ss:$2 sm:$0xff]
  %s4235 = scalar_lea.vmem [#allocation2], 193
  %v4236 = vld [vmem:[%s4235] ss:$2 sm:$0xff]
  %s4237 = scalar_lea.vmem [#allocation2], 209
  %v4238 = vld [vmem:[%s4237] ss:$2 sm:$0xff]
  %s4239 = scalar_lea.vmem [#allocation2], 225
  %v4240 = vld [vmem:[%s4239] ss:$2 sm:$0xff]
  %s4241 = scalar_lea.vmem [#allocation2], 241
  %v4242 = vld [vmem:[%s4241] ss:$2 sm:$0xff]
  %v4243 = vmax.f32 %v4180, %v4212
  %v4244 = vmax.f32 %v4182, %v4214
  %v4245 = vmax.f32 %v4184, %v4216
  %v4246 = vmax.f32 %v4186, %v4218
  %v4247 = vmax.f32 %v4188, %v4220
  %v4248 = vmax.f32 %v4190, %v4222
  %v4249 = vmax.f32 %v4192, %v4224
  %v4250 = vmax.f32 %v4194, %v4226
  %v4251 = vmax.f32 %v4196, %v4228
  %v4252 = vmax.f32 %v4198, %v4230
  %v4253 = vmax.f32 %v4200, %v4232
  %v4254 = vmax.f32 %v4202, %v4234
  %v4255 = vmax.f32 %v4204, %v4236
  %v4256 = vmax.f32 %v4206, %v4238
  %v4257 = vmax.f32 %v4208, %v4240
  %v4258 = vmax.f32 %v4210, %v4242
  %4259 = vst.msk [vmem:[#allocation3] sm:$0xff] %vm4147, 0.0
  %vm4260 = vcmask 517120
  %4261 = vst.msk [vmem:[#allocation3 + $0x8] sm:$0x3] %vm4260, 0.0
  %4262 = vst.msk [vmem:[#allocation3 + $0xa0] sm:$0xff] %vm4147, 0.0
  %4263 = vst.msk [vmem:[#allocation3 + $0xa8] sm:$0x3] %vm4260, 0.0
  %s4264 = scalar_lea.vmem [#allocation3], 144
  %4265 = vst.msk [vmem:[%s4264] sm:$0xff] %vm4147, 0.0
  %4266 = vst.msk [vmem:[%s4264 + $0x8] sm:$0x3] %vm4260, 0.0
  %4267 = vst.msk [vmem:[%s4264 + $0xa0] sm:$0xff] %vm4147, 0.0
  %4268 = vst.msk [vmem:[%s4264 + $0xa8] sm:$0x3] %vm4260, 0.0
  %vm4269 = vcmask 516096
  %4270 = vst.msk [vmem:[#allocation3] sm:$0x1] %vm4269, 0.0
  %4271 = vst.msk [vmem:[#allocation3 + $0x10] sm:$0x1] %vm4269, 0.0
  %4272 = vst.msk [vmem:[#allocation3 + $0x20] sm:$0x1] %vm4269, 0.0
  %4273 = vst.msk [vmem:[#allocation3 + $0x30] sm:$0x1] %vm4269, 0.0
  %4274 = vst.msk [vmem:[#allocation3 + $0x40] sm:$0x1] %vm4269, 0.0
  %4275 = vst.msk [vmem:[#allocation3 + $0x50] sm:$0x1] %vm4269, 0.0
  %4276 = vst.msk [vmem:[#allocation3 + $0x60] sm:$0x1] %vm4269, 0.0
  %4277 = vst.msk [vmem:[#allocation3 + $0x70] sm:$0x1] %vm4269, 0.0
  %4278 = vst.msk [vmem:[#allocation3 + $0x80] sm:$0x1] %vm4269, 0.0
  %4279 = vst.msk [vmem:[#allocation3 + $0x90] sm:$0x1] %vm4269, 0.0
  %4280 = vst.msk [vmem:[#allocation3 + $0xa0] sm:$0x1] %vm4269, 0.0
  %4281 = vst.msk [vmem:[#allocation3 + $0xb0] sm:$0x1] %vm4269, 0.0
  %4282 = vst.msk [vmem:[#allocation3 + $0xc0] sm:$0x1] %vm4269, 0.0
  %4283 = vst.msk [vmem:[#allocation3 + $0xd0] sm:$0x1] %vm4269, 0.0
  %4284 = vst.msk [vmem:[#allocation3 + $0xe0] sm:$0x1] %vm4269, 0.0
  %4285 = vst.msk [vmem:[#allocation3 + $0xf0] sm:$0x1] %vm4269, 0.0
  %4286 = vst.msk [vmem:[#allocation3 + $0x100] sm:$0x1] %vm4269, 0.0
  %4287 = vst.msk [vmem:[#allocation3 + $0x110] sm:$0x1] %vm4269, 0.0
  %4288 = vst.msk [vmem:[#allocation3 + $0x120] sm:$0x1] %vm4269, 0.0
  %4289 = vst.msk [vmem:[#allocation3 + $0x130] sm:$0x1] %vm4269, 0.0
  %4290 = vst.msk [vmem:[#allocation3 + $0x9] sm:$0x1] %vm4269, 0.0
  %4291 = vst.msk [vmem:[#allocation3 + $0x19] sm:$0x1] %vm4269, 0.0
  %4292 = vst.msk [vmem:[#allocation3 + $0x29] sm:$0x1] %vm4269, 0.0
  %4293 = vst.msk [vmem:[#allocation3 + $0x39] sm:$0x1] %vm4269, 0.0
  %4294 = vst.msk [vmem:[#allocation3 + $0x49] sm:$0x1] %vm4269, 0.0
  %4295 = vst.msk [vmem:[#allocation3 + $0x59] sm:$0x1] %vm4269, 0.0
  %4296 = vst.msk [vmem:[#allocation3 + $0x69] sm:$0x1] %vm4269, 0.0
  %4297 = vst.msk [vmem:[#allocation3 + $0x79] sm:$0x1] %vm4269, 0.0
  %4298 = vst.msk [vmem:[#allocation3 + $0x89] sm:$0x1] %vm4269, 0.0
  %4299 = vst.msk [vmem:[#allocation3 + $0x99] sm:$0x1] %vm4269, 0.0
  %4300 = vst.msk [vmem:[#allocation3 + $0xa9] sm:$0x1] %vm4269, 0.0
  %4301 = vst.msk [vmem:[#allocation3 + $0xb9] sm:$0x1] %vm4269, 0.0
  %4302 = vst.msk [vmem:[#allocation3 + $0xc9] sm:$0x1] %vm4269, 0.0
  %4303 = vst.msk [vmem:[#allocation3 + $0xd9] sm:$0x1] %vm4269, 0.0
  %4304 = vst.msk [vmem:[#allocation3 + $0xe9] sm:$0x1] %vm4269, 0.0
  %4305 = vst.msk [vmem:[#allocation3 + $0xf9] sm:$0x1] %vm4269, 0.0
  %4306 = vst.msk [vmem:[#allocation3 + $0x109] sm:$0x1] %vm4269, 0.0
  %4307 = vst.msk [vmem:[#allocation3 + $0x119] sm:$0x1] %vm4269, 0.0
  %4308 = vst.msk [vmem:[#allocation3 + $0x129] sm:$0x1] %vm4269, 0.0
  %4309 = vst.msk [vmem:[#allocation3 + $0x139] sm:$0x1] %vm4269, 0.0
  %s4310 = scalar_lea.vmem [#allocation3], 16
  %4311 = vst.msk [vmem:[%s4310 + $0x1] sm:$0xff] %vm4147, %v4243
  %4312 = vst.msk [vmem:[%s4310 + $0x11] sm:$0xff] %vm4147, %v4244
  %4313 = vst.msk [vmem:[%s4310 + $0x21] sm:$0xff] %vm4147, %v4245
  %4314 = vst.msk [vmem:[%s4310 + $0x31] sm:$0xff] %vm4147, %v4246
  %4315 = vst.msk [vmem:[%s4310 + $0x41] sm:$0xff] %vm4147, %v4247
  %4316 = vst.msk [vmem:[%s4310 + $0x51] sm:$0xff] %vm4147, %v4248
  %4317 = vst.msk [vmem:[%s4310 + $0x61] sm:$0xff] %vm4147, %v4249
  %4318 = vst.msk [vmem:[%s4310 + $0x71] sm:$0xff] %vm4147, %v4250
  %4319 = vst.msk [vmem:[%s4310 + $0xa1] sm:$0xff] %vm4147, %v4251
  %4320 = vst.msk [vmem:[%s4310 + $0xb1] sm:$0xff] %vm4147, %v4252
  %4321 = vst.msk [vmem:[%s4310 + $0xc1] sm:$0xff] %vm4147, %v4253
  %4322 = vst.msk [vmem:[%s4310 + $0xd1] sm:$0xff] %vm4147, %v4254
  %4323 = vst.msk [vmem:[%s4310 + $0xe1] sm:$0xff] %vm4147, %v4255
  %4324 = vst.msk [vmem:[%s4310 + $0xf1] sm:$0xff] %vm4147, %v4256
  %4325 = vst.msk [vmem:[%s4310 + $0x101] sm:$0xff] %vm4147, %v4257
  %4326 = vst.msk [vmem:[%s4310 + $0x111] sm:$0xff] %vm4147, %v4258
  %v4327 = vld [vmem:[#allocation3] sm:$0xff]
  %v4328 = vld [vmem:[#allocation3 + $0x10] sm:$0xff]
  %v4329 = vld [vmem:[#allocation3 + $0x20] sm:$0xff]
  %v4330 = vld [vmem:[#allocation3 + $0x30] sm:$0xff]
  %v4331 = vld [vmem:[#allocation3 + $0x40] sm:$0xff]
  %v4332 = vld [vmem:[#allocation3 + $0x50] sm:$0xff]
  %v4333 = vld [vmem:[#allocation3 + $0x60] sm:$0xff]
  %v4334 = vld [vmem:[#allocation3 + $0x70] sm:$0xff]
  %v4335 = vld [vmem:[#allocation3 + $0xa0] sm:$0xff]
  %v4336 = vld [vmem:[#allocation3 + $0xb0] sm:$0xff]
  %v4337 = vld [vmem:[#allocation3 + $0xc0] sm:$0xff]
  %v4338 = vld [vmem:[#allocation3 + $0xd0] sm:$0xff]
  %v4339 = vld [vmem:[#allocation3 + $0xe0] sm:$0xff]
  %v4340 = vld [vmem:[#allocation3 + $0xf0] sm:$0xff]
  %v4341 = vld [vmem:[#allocation3 + $0x100] sm:$0xff]
  %v4342 = vld [vmem:[#allocation3 + $0x110] sm:$0xff]
  %v4343 = vld [vmem:[#allocation3 + $0x1] sm:$0xff]
  %v4344 = vld [vmem:[#allocation3 + $0x11] sm:$0xff]
  %v4345 = vld [vmem:[#allocation3 + $0x21] sm:$0xff]
  %v4346 = vld [vmem:[#allocation3 + $0x31] sm:$0xff]
  %v4347 = vld [vmem:[#allocation3 + $0x41] sm:$0xff]
  %v4348 = vld [vmem:[#allocation3 + $0x51] sm:$0xff]
  %v4349 = vld [vmem:[#allocation3 + $0x61] sm:$0xff]
  %v4350 = vld [vmem:[#allocation3 + $0x71] sm:$0xff]
  %v4351 = vld [vmem:[#allocation3 + $0xa1] sm:$0xff]
  %v4352 = vld [vmem:[#allocation3 + $0xb1] sm:$0xff]
  %v4353 = vld [vmem:[#allocation3 + $0xc1] sm:$0xff]
  %v4354 = vld [vmem:[#allocation3 + $0xd1] sm:$0xff]
  %v4355 = vld [vmem:[#allocation3 + $0xe1] sm:$0xff]
  %v4356 = vld [vmem:[#allocation3 + $0xf1] sm:$0xff]
  %v4357 = vld [vmem:[#allocation3 + $0x101] sm:$0xff]
  %v4358 = vld [vmem:[#allocation3 + $0x111] sm:$0xff]
  %v4359 = vld [vmem:[%s4310] sm:$0xff]
  %v4360 = vld [vmem:[%s4310 + $0x10] sm:$0xff]
  %v4361 = vld [vmem:[%s4310 + $0x20] sm:$0xff]
  %v4362 = vld [vmem:[%s4310 + $0x30] sm:$0xff]
  %v4363 = vld [vmem:[%s4310 + $0x40] sm:$0xff]
  %v4364 = vld [vmem:[%s4310 + $0x50] sm:$0xff]
  %v4365 = vld [vmem:[%s4310 + $0x60] sm:$0xff]
  %v4366 = vld [vmem:[%s4310 + $0x70] sm:$0xff]
  %v4367 = vld [vmem:[%s4310 + $0xa0] sm:$0xff]
  %v4368 = vld [vmem:[%s4310 + $0xb0] sm:$0xff]
  %v4369 = vld [vmem:[%s4310 + $0xc0] sm:$0xff]
  %v4370 = vld [vmem:[%s4310 + $0xd0] sm:$0xff]
  %v4371 = vld [vmem:[%s4310 + $0xe0] sm:$0xff]
  %v4372 = vld [vmem:[%s4310 + $0xf0] sm:$0xff]
  %v4373 = vld [vmem:[%s4310 + $0x100] sm:$0xff]
  %v4374 = vld [vmem:[%s4310 + $0x110] sm:$0xff]
  %v4375 = vld [vmem:[%s4310 + $0x1] sm:$0xff]
  %v4376 = vld [vmem:[%s4310 + $0x11] sm:$0xff]
  %v4377 = vld [vmem:[%s4310 + $0x21] sm:$0xff]
  %v4378 = vld [vmem:[%s4310 + $0x31] sm:$0xff]
  %v4379 = vld [vmem:[%s4310 + $0x41] sm:$0xff]
  %v4380 = vld [vmem:[%s4310 + $0x51] sm:$0xff]
  %v4381 = vld [vmem:[%s4310 + $0x61] sm:$0xff]
  %v4382 = vld [vmem:[%s4310 + $0x71] sm:$0xff]
  %v4383 = vld [vmem:[%s4310 + $0xa1] sm:$0xff]
  %v4384 = vld [vmem:[%s4310 + $0xb1] sm:$0xff]
  %v4385 = vld [vmem:[%s4310 + $0xc1] sm:$0xff]
  %v4386 = vld [vmem:[%s4310 + $0xd1] sm:$0xff]
  %v4387 = vld [vmem:[%s4310 + $0xe1] sm:$0xff]
  %v4388 = vld [vmem:[%s4310 + $0xf1] sm:$0xff]
  %v4389 = vld [vmem:[%s4310 + $0x101] sm:$0xff]
  %v4390 = vld [vmem:[%s4310 + $0x111] sm:$0xff]
  %4407 = vrot.lane.b32.xlu0 %v4343, 64
  %v4408 = vpop.permute.xlu0 %4407
  %4409 = vrot.lane.b32.xlu0 %v4344, 64
  %v4410 = vpop.permute.xlu0 %4409
  %4411 = vrot.lane.b32.xlu0 %v4345, 64
  %v4412 = vpop.permute.xlu0 %4411
  %4413 = vrot.lane.b32.xlu0 %v4346, 64
  %v4414 = vpop.permute.xlu0 %4413
  %4415 = vrot.lane.b32.xlu0 %v4347, 64
  %v4416 = vpop.permute.xlu0 %4415
  %4417 = vrot.lane.b32.xlu0 %v4348, 64
  %v4418 = vpop.permute.xlu0 %4417
  %4419 = vrot.lane.b32.xlu0 %v4349, 64
  %v4420 = vpop.permute.xlu0 %4419
  %4421 = vrot.lane.b32.xlu0 %v4350, 64
  %v4422 = vpop.permute.xlu0 %4421
  %4423 = vrot.lane.b32.xlu0 %v4351, 64
  %v4424 = vpop.permute.xlu0 %4423
  %4425 = vrot.lane.b32.xlu0 %v4352, 64
  %v4426 = vpop.permute.xlu0 %4425
  %4427 = vrot.lane.b32.xlu0 %v4353, 64
  %v4428 = vpop.permute.xlu0 %4427
  %4429 = vrot.lane.b32.xlu0 %v4354, 64
  %v4430 = vpop.permute.xlu0 %4429
  %4431 = vrot.lane.b32.xlu0 %v4355, 64
  %v4432 = vpop.permute.xlu0 %4431
  %4433 = vrot.lane.b32.xlu0 %v4356, 64
  %v4434 = vpop.permute.xlu0 %4433
  %4435 = vrot.lane.b32.xlu0 %v4357, 64
  %v4436 = vpop.permute.xlu0 %4435
  %4437 = vrot.lane.b32.xlu0 %v4358, 64
  %v4438 = vpop.permute.xlu0 %4437
  %4471 = vrot.lane.b32.xlu0 %v4375, 64
  %v4472 = vpop.permute.xlu0 %4471
  %4473 = vrot.lane.b32.xlu0 %v4376, 64
  %v4474 = vpop.permute.xlu0 %4473
  %4475 = vrot.lane.b32.xlu0 %v4377, 64
  %v4476 = vpop.permute.xlu0 %4475
  %4477 = vrot.lane.b32.xlu0 %v4378, 64
  %v4478 = vpop.permute.xlu0 %4477
  %4479 = vrot.lane.b32.xlu0 %v4379, 64
  %v4480 = vpop.permute.xlu0 %4479
  %4481 = vrot.lane.b32.xlu0 %v4380, 64
  %v4482 = vpop.permute.xlu0 %4481
  %4483 = vrot.lane.b32.xlu0 %v4381, 64
  %v4484 = vpop.permute.xlu0 %4483
  %4485 = vrot.lane.b32.xlu0 %v4382, 64
  %v4486 = vpop.permute.xlu0 %4485
  %4487 = vrot.lane.b32.xlu0 %v4383, 64
  %v4488 = vpop.permute.xlu0 %4487
  %4489 = vrot.lane.b32.xlu0 %v4384, 64
  %v4490 = vpop.permute.xlu0 %4489
  %4491 = vrot.lane.b32.xlu0 %v4385, 64
  %v4492 = vpop.permute.xlu0 %4491
  %4493 = vrot.lane.b32.xlu0 %v4386, 64
  %v4494 = vpop.permute.xlu0 %4493
  %4495 = vrot.lane.b32.xlu0 %v4387, 64
  %v4496 = vpop.permute.xlu0 %4495
  %4497 = vrot.lane.b32.xlu0 %v4388, 64
  %v4498 = vpop.permute.xlu0 %4497
  %4499 = vrot.lane.b32.xlu0 %v4389, 64
  %v4500 = vpop.permute.xlu0 %4499
  %4501 = vrot.lane.b32.xlu0 %v4390, 64
  %v4502 = vpop.permute.xlu0 %4501
  %v4519 = vsel %vm4147, %v4327, %v4408
  %v4520 = vsel %vm4147, %v4328, %v4410
  %v4521 = vsel %vm4147, %v4329, %v4412
  %v4522 = vsel %vm4147, %v4330, %v4414
  %v4523 = vsel %vm4147, %v4331, %v4416
  %v4524 = vsel %vm4147, %v4332, %v4418
  %v4525 = vsel %vm4147, %v4333, %v4420
  %v4526 = vsel %vm4147, %v4334, %v4422
  %v4527 = vsel %vm4147, %v4335, %v4424
  %v4528 = vsel %vm4147, %v4336, %v4426
  %v4529 = vsel %vm4147, %v4337, %v4428
  %v4530 = vsel %vm4147, %v4338, %v4430
  %v4531 = vsel %vm4147, %v4339, %v4432
  %v4532 = vsel %vm4147, %v4340, %v4434
  %v4533 = vsel %vm4147, %v4341, %v4436
  %v4534 = vsel %vm4147, %v4342, %v4438
  %v4535 = vsel %vm4147, %v4359, %v4472
  %v4536 = vsel %vm4147, %v4360, %v4474
  %v4537 = vsel %vm4147, %v4361, %v4476
  %v4538 = vsel %vm4147, %v4362, %v4478
  %v4539 = vsel %vm4147, %v4363, %v4480
  %v4540 = vsel %vm4147, %v4364, %v4482
  %v4541 = vsel %vm4147, %v4365, %v4484
  %v4542 = vsel %vm4147, %v4366, %v4486
  %v4543 = vsel %vm4147, %v4367, %v4488
  %v4544 = vsel %vm4147, %v4368, %v4490
  %v4545 = vsel %vm4147, %v4369, %v4492
  %v4546 = vsel %vm4147, %v4370, %v4494
  %v4547 = vsel %vm4147, %v4371, %v4496
  %v4548 = vsel %vm4147, %v4372, %v4498
  %v4549 = vsel %vm4147, %v4373, %v4500
  %v4550 = vsel %vm4147, %v4374, %v4502
  %v4551 = vpack.c.bf16 %v4520, %v4519
  %v4552 = vpack.c.bf16 %v4536, %v4535
  %v4553 = vpack.c.bf16 %v4522, %v4521
  %v4554 = vpack.c.bf16 %v4538, %v4537
  %v4555 = vpack.c.bf16 %v4524, %v4523
  %v4556 = vpack.c.bf16 %v4540, %v4539
  %v4557 = vpack.c.bf16 %v4526, %v4525
  %v4558 = vpack.c.bf16 %v4542, %v4541
  %v4559 = vpack.c.bf16 %v4528, %v4527
  %v4560 = vpack.c.bf16 %v4544, %v4543
  %v4561 = vpack.c.bf16 %v4530, %v4529
  %v4562 = vpack.c.bf16 %v4546, %v4545
  %v4563 = vpack.c.bf16 %v4532, %v4531
  %v4564 = vpack.c.bf16 %v4548, %v4547
  %v4565 = vpack.c.bf16 %v4534, %v4533
  %v4566 = vpack.c.bf16 %v4550, %v4549
  %v4567 = vld [vmem:[%s3] sm:$0xf]
  %v4568 = vld [vmem:[%s3 + $0x4] sm:$0xf]
  %v4569 = vld [vmem:[%s3 + $0x8] sm:$0xf]
  %v4570 = vld [vmem:[%s3 + $0xc] sm:$0xf]
  %v4571 = vld [vmem:[%s3 + $0x10] sm:$0xf]
  %v4572 = vld [vmem:[%s3 + $0x14] sm:$0xf]
  %v4573 = vld [vmem:[%s3 + $0x18] sm:$0xf]
  %v4574 = vld [vmem:[%s3 + $0x1c] sm:$0xf]
  %v4575 = vld [vmem:[%s3 + $0x20] sm:$0xf]
  %v4576 = vld [vmem:[%s3 + $0x24] sm:$0xf]
  %v4577 = vld [vmem:[%s3 + $0x28] sm:$0xf]
  %v4578 = vld [vmem:[%s3 + $0x2c] sm:$0xf]
  %v4579 = vld [vmem:[%s3 + $0x30] sm:$0xf]
  %v4580 = vld [vmem:[%s3 + $0x34] sm:$0xf]
  %v4581 = vld [vmem:[%s3 + $0x38] sm:$0xf]
  %v4582 = vld [vmem:[%s3 + $0x3c] sm:$0xf]
  %v4583 = vld [vmem:[%s3 + $0x40] sm:$0xf]
  %v4584 = vld [vmem:[%s3 + $0x44] sm:$0xf]
  %v4585 = vld [vmem:[%s3 + $0x48] sm:$0xf]
  %v4586 = vld [vmem:[%s3 + $0x4c] sm:$0xf]
  %v4587 = vld [vmem:[%s3 + $0x50] sm:$0xf]
  %v4588 = vld [vmem:[%s3 + $0x54] sm:$0xf]
  %v4589 = vld [vmem:[%s3 + $0x58] sm:$0xf]
  %v4590 = vld [vmem:[%s3 + $0x5c] sm:$0xf]
  %v4591 = vld [vmem:[%s3 + $0x60] sm:$0xf]
  %v4592 = vld [vmem:[%s3 + $0x64] sm:$0xf]
  %v4593 = vld [vmem:[%s3 + $0x68] sm:$0xf]
  %v4594 = vld [vmem:[%s3 + $0x6c] sm:$0xf]
  %v4595 = vld [vmem:[%s3 + $0x70] sm:$0xf]
  %v4596 = vld [vmem:[%s3 + $0x74] sm:$0xf]
  %v4597 = vld [vmem:[%s3 + $0x78] sm:$0xf]
  %v4598 = vld [vmem:[%s3 + $0x7c] sm:$0xf]
  %v4599 = vld [vmem:[%s4] sm:$0xff]
  %v4600 = vld [vmem:[%s4 + $0x8] sm:$0xff]
  %v4601 = vld [vmem:[%s4 + $0x10] sm:$0xff]
  %v4602 = vld [vmem:[%s4 + $0x18] sm:$0xff]
  %v4603 = vld [vmem:[%s4 + $0x20] sm:$0xff]
  %v4604 = vld [vmem:[%s4 + $0x28] sm:$0xff]
  %v4605 = vld [vmem:[%s4 + $0x30] sm:$0xff]
  %v4606 = vld [vmem:[%s4 + $0x38] sm:$0xff]
  %v4607 = vld [vmem:[%s4 + $0x40] sm:$0xff]
  %v4608 = vld [vmem:[%s4 + $0x48] sm:$0xff]
  %v4609 = vld [vmem:[%s4 + $0x50] sm:$0xff]
  %v4610 = vld [vmem:[%s4 + $0x58] sm:$0xff]
  %v4611 = vld [vmem:[%s4 + $0x60] sm:$0xff]
  %v4612 = vld [vmem:[%s4 + $0x68] sm:$0xff]
  %v4613 = vld [vmem:[%s4 + $0x70] sm:$0xff]
  %v4614 = vld [vmem:[%s4 + $0x78] sm:$0xff]
  %v4647 = vunpack.c.l.b16 %v4567
  %v4648 = vunpack.c.l.b16 %v4568
  %v4649 = vunpack.c.l.b16 %v4569
  %v4650 = vunpack.c.l.b16 %v4570
  %v4651 = vunpack.c.l.b16 %v4571
  %v4652 = vunpack.c.l.b16 %v4572
  %v4653 = vunpack.c.l.b16 %v4573
  %v4654 = vunpack.c.l.b16 %v4574
  %v4655 = vunpack.c.l.b16 %v4575
  %v4656 = vunpack.c.l.b16 %v4576
  %v4657 = vunpack.c.l.b16 %v4577
  %v4658 = vunpack.c.l.b16 %v4578
  %v4659 = vunpack.c.l.b16 %v4579
  %v4660 = vunpack.c.l.b16 %v4580
  %v4661 = vunpack.c.l.b16 %v4581
  %v4662 = vunpack.c.l.b16 %v4582
  %v4663 = vunpack.c.l.b16 %v4583
  %v4664 = vunpack.c.l.b16 %v4584
  %v4665 = vunpack.c.l.b16 %v4585
  %v4666 = vunpack.c.l.b16 %v4586
  %v4667 = vunpack.c.l.b16 %v4587
  %v4668 = vunpack.c.l.b16 %v4588
  %v4669 = vunpack.c.l.b16 %v4589
  %v4670 = vunpack.c.l.b16 %v4590
  %v4671 = vunpack.c.l.b16 %v4591
  %v4672 = vunpack.c.l.b16 %v4592
  %v4673 = vunpack.c.l.b16 %v4593
  %v4674 = vunpack.c.l.b16 %v4594
  %v4675 = vunpack.c.l.b16 %v4595
  %v4676 = vunpack.c.l.b16 %v4596
  %v4677 = vunpack.c.l.b16 %v4597
  %v4678 = vunpack.c.l.b16 %v4598
  %v4679 = vpack.c.b16 %v4648, %v4647
  %v4680 = vpack.c.b16 %v4650, %v4649
  %v4681 = vpack.c.b16 %v4652, %v4651
  %v4682 = vpack.c.b16 %v4654, %v4653
  %v4683 = vpack.c.b16 %v4656, %v4655
  %v4684 = vpack.c.b16 %v4658, %v4657
  %v4685 = vpack.c.b16 %v4660, %v4659
  %v4686 = vpack.c.b16 %v4662, %v4661
  %v4687 = vpack.c.b16 %v4664, %v4663
  %v4688 = vpack.c.b16 %v4666, %v4665
  %v4689 = vpack.c.b16 %v4668, %v4667
  %v4690 = vpack.c.b16 %v4670, %v4669
  %v4691 = vpack.c.b16 %v4672, %v4671
  %v4692 = vpack.c.b16 %v4674, %v4673
  %v4693 = vpack.c.b16 %v4676, %v4675
  %v4694 = vpack.c.b16 %v4678, %v4677
  %4711 = vmatprep.subr.bf16.mxu0 0
  %4712 = vmatpush1.bf16.msra.mxu0 %v4679
  %4713 = vmatprep.subr.bf16.mxu0 0
  %4714 = vmatpush1.bf16.msra.mxu0 %v4680
  %4715 = vmatprep.subr.bf16.mxu0 0
  %4716 = vmatpush1.bf16.msra.mxu0 %v4681
  %4717 = vmatprep.subr.bf16.mxu0 0
  %4718 = vmatpush1.bf16.msra.mxu0 %v4682
  %4719 = vmatprep.subr.bf16.mxu0 0
  %4720 = vmatpush1.bf16.msra.mxu0 %v4683
  %4721 = vmatprep.subr.bf16.mxu0 0
  %4722 = vmatpush1.bf16.msra.mxu0 %v4684
  %4723 = vmatprep.subr.bf16.mxu0 0
  %4724 = vmatpush1.bf16.msra.mxu0 %v4685
  %4725 = vmatprep.subr.bf16.mxu0 0
  %4726 = vmatpush1.bf16.msra.mxu0 %v4686
  %4727 = vmatprep.subr.bf16.mxu0 0
  %4728 = vmatpush1.bf16.msra.mxu0 %v4687
  %4729 = vmatprep.subr.bf16.mxu0 0
  %4730 = vmatpush1.bf16.msra.mxu0 %v4688
  %4731 = vmatprep.subr.bf16.mxu0 0
  %4732 = vmatpush1.bf16.msra.mxu0 %v4689
  %4733 = vmatprep.subr.bf16.mxu0 0
  %4734 = vmatpush1.bf16.msra.mxu0 %v4690
  %4735 = vmatprep.subr.bf16.mxu0 0
  %4736 = vmatpush1.bf16.msra.mxu0 %v4691
  %4737 = vmatprep.subr.bf16.mxu0 0
  %4738 = vmatpush1.bf16.msra.mxu0 %v4692
  %4739 = vmatprep.subr.bf16.mxu0 0
  %4740 = vmatpush1.bf16.msra.mxu0 %v4693
  %4741 = vmatprep.subr.bf16.mxu0 0
  %4742 = vmatpush1.bf16.msra.mxu0 %v4694
  %4743 = vmatprep.mubr.bf16.mxu0 %v4552
  %4744 = vmatmul.mubr.bf16.gmra.mrb[0].mxu0 %v4551
  %v4745 = vpop.f32.mrb[0].mxu0
  %v4746 = vadd.f32 %v4599, %v4745
  %v4747 = vpop.f32.mrb[0].mxu0
  %v4748 = vpop.f32.mrb[0].mxu0
  %v4749 = vadd.f32 %v4600, %v4748
  %v4750 = vpop.f32.mrb[0].mxu0
  %4751 = vmatprep.mubr.bf16.mxu0 %v4554
  %4752 = vmatmul.mubr.bf16.gmra.mrb[0].mxu0 %v4553
  %v4753 = vpop.f32.mrb[0].mxu0
  %v4754 = vadd.f32 %v4601, %v4753
  %v4755 = vpop.f32.mrb[0].mxu0
  %v4756 = vpop.f32.mrb[0].mxu0
  %v4757 = vadd.f32 %v4602, %v4756
  %v4758 = vpop.f32.mrb[0].mxu0
  %4759 = vmatprep.mubr.bf16.mxu0 %v4556
  %4760 = vmatmul.mubr.bf16.gmra.mrb[0].mxu0 %v4555
  %v4761 = vpop.f32.mrb[0].mxu0
  %v4762 = vadd.f32 %v4603, %v4761
  %v4763 = vpop.f32.mrb[0].mxu0
  %v4764 = vpop.f32.mrb[0].mxu0
  %v4765 = vadd.f32 %v4604, %v4764
  %v4766 = vpop.f32.mrb[0].mxu0
  %4767 = vmatprep.mubr.bf16.mxu0 %v4558
  %4768 = vmatmul.mubr.bf16.gmra.mrb[0].mxu0 %v4557
  %v4769 = vpop.f32.mrb[0].mxu0
  %v4770 = vadd.f32 %v4605, %v4769
  %v4771 = vpop.f32.mrb[0].mxu0
  %v4772 = vpop.f32.mrb[0].mxu0
  %v4773 = vadd.f32 %v4606, %v4772
  %v4774 = vpop.f32.mrb[0].mxu0
  %4775 = vmatprep.mubr.bf16.mxu0 %v4560
  %4776 = vmatmul.mubr.bf16.gmra.mrb[0].mxu0 %v4559
  %v4777 = vpop.f32.mrb[0].mxu0
  %v4778 = vadd.f32 %v4607, %v4777
  %v4779 = vpop.f32.mrb[0].mxu0
  %v4780 = vpop.f32.mrb[0].mxu0
  %v4781 = vadd.f32 %v4608, %v4780
  %v4782 = vpop.f32.mrb[0].mxu0
  %4783 = vmatprep.mubr.bf16.mxu0 %v4562
  %4784 = vmatmul.mubr.bf16.gmra.mrb[0].mxu0 %v4561
  %v4785 = vpop.f32.mrb[0].mxu0
  %v4786 = vadd.f32 %v4609, %v4785
  %v4787 = vpop.f32.mrb[0].mxu0
  %v4788 = vpop.f32.mrb[0].mxu0
  %v4789 = vadd.f32 %v4610, %v4788
  %v4790 = vpop.f32.mrb[0].mxu0
  %4791 = vmatprep.mubr.bf16.mxu0 %v4564
  %4792 = vmatmul.mubr.bf16.gmra.mrb[0].mxu0 %v4563
  %v4793 = vpop.f32.mrb[0].mxu0
  %v4794 = vadd.f32 %v4611, %v4793
  %v4795 = vpop.f32.mrb[0].mxu0
  %v4796 = vpop.f32.mrb[0].mxu0
  %v4797 = vadd.f32 %v4612, %v4796
  %v4798 = vpop.f32.mrb[0].mxu0
  %4799 = vmatprep.mubr.bf16.mxu0 %v4566
  %4800 = vmatmul.mubr.bf16.gmra.mrb[0].mxu0 %v4565
  %v4801 = vpop.f32.mrb[0].mxu0
  %v4802 = vadd.f32 %v4613, %v4801
  %v4803 = vpop.f32.mrb[0].mxu0
  %v4804 = vpop.f32.mrb[0].mxu0
  %v4805 = vadd.f32 %v4614, %v4804
  %v4806 = vpop.f32.mrb[0].mxu0
  %4807 = vdwg.mxu0
  %vm4808 = vcmask 64512
  %4809 = vst.msk [vmem:[%s5] sm:$0xff] %vm4808, %v4746
  %4810 = vst.msk [vmem:[%s5 + $0x8] sm:$0xff] %vm4808, %v4749
  %4811 = vst.msk [vmem:[%s5 + $0x10] sm:$0xff] %vm4808, %v4754
  %4812 = vst.msk [vmem:[%s5 + $0x18] sm:$0xff] %vm4808, %v4757
  %4813 = vst.msk [vmem:[%s5 + $0x20] sm:$0xff] %vm4808, %v4762
  %4814 = vst.msk [vmem:[%s5 + $0x28] sm:$0xff] %vm4808, %v4765
  %4815 = vst.msk [vmem:[%s5 + $0x30] sm:$0xff] %vm4808, %v4770
  %4816 = vst.msk [vmem:[%s5 + $0x38] sm:$0xff] %vm4808, %v4773
  %4817 = vst.msk [vmem:[%s5 + $0x40] sm:$0xff] %vm4808, %v4778
  %4818 = vst.msk [vmem:[%s5 + $0x48] sm:$0xff] %vm4808, %v4781
  %4819 = vst.msk [vmem:[%s5 + $0x50] sm:$0xff] %vm4808, %v4786
  %4820 = vst.msk [vmem:[%s5 + $0x58] sm:$0xff] %vm4808, %v4789
  %4821 = vst.msk [vmem:[%s5 + $0x60] sm:$0xff] %vm4808, %v4794
  %4822 = vst.msk [vmem:[%s5 + $0x68] sm:$0xff] %vm4808, %v4797
  %4823 = vst.msk [vmem:[%s5 + $0x70] sm:$0xff] %vm4808, %v4802
  %4824 = vst.msk [vmem:[%s5 + $0x78] sm:$0xff] %vm4808, %v4805
  %v4825 = vld [vmem:[#allocation3 + $0x1] sm:$0xff]
  %v4826 = vld [vmem:[#allocation3 + $0x11] sm:$0xff]
  %v4827 = vld [vmem:[#allocation3 + $0x21] sm:$0xff]
  %v4828 = vld [vmem:[#allocation3 + $0x31] sm:$0xff]
  %v4829 = vld [vmem:[#allocation3 + $0x41] sm:$0xff]
  %v4830 = vld [vmem:[#allocation3 + $0x51] sm:$0xff]
  %v4831 = vld [vmem:[#allocation3 + $0x61] sm:$0xff]
  %v4832 = vld [vmem:[#allocation3 + $0x71] sm:$0xff]
  %v4833 = vld [vmem:[#allocation3 + $0xa1] sm:$0xff]
  %v4834 = vld [vmem:[#allocation3 + $0xb1] sm:$0xff]
  %v4835 = vld [vmem:[#allocation3 + $0xc1] sm:$0xff]
  %v4836 = vld [vmem:[#allocation3 + $0xd1] sm:$0xff]
  %v4837 = vld [vmem:[#allocation3 + $0xe1] sm:$0xff]
  %v4838 = vld [vmem:[#allocation3 + $0xf1] sm:$0xff]
  %v4839 = vld [vmem:[#allocation3 + $0x101] sm:$0xff]
  %v4840 = vld [vmem:[#allocation3 + $0x111] sm:$0xff]
  %v4841 = vld [vmem:[#allocation3 + $0x2] sm:$0xff]
  %v4842 = vld [vmem:[#allocation3 + $0x12] sm:$0xff]
  %v4843 = vld [vmem:[#allocation3 + $0x22] sm:$0xff]
  %v4844 = vld [vmem:[#allocation3 + $0x32] sm:$0xff]
  %v4845 = vld [vmem:[#allocation3 + $0x42] sm:$0xff]
  %v4846 = vld [vmem:[#allocation3 + $0x52] sm:$0xff]
  %v4847 = vld [vmem:[#allocation3 + $0x62] sm:$0xff]
  %v4848 = vld [vmem:[#allocation3 + $0x72] sm:$0xff]
  %v4849 = vld [vmem:[#allocation3 + $0xa2] sm:$0xff]
  %v4850 = vld [vmem:[#allocation3 + $0xb2] sm:$0xff]
  %v4851 = vld [vmem:[#allocation3 + $0xc2] sm:$0xff]
  %v4852 = vld [vmem:[#allocation3 + $0xd2] sm:$0xff]
  %v4853 = vld [vmem:[#allocation3 + $0xe2] sm:$0xff]
  %v4854 = vld [vmem:[#allocation3 + $0xf2] sm:$0xff]
  %v4855 = vld [vmem:[#allocation3 + $0x102] sm:$0xff]
  %v4856 = vld [vmem:[#allocation3 + $0x112] sm:$0xff]
  %v4857 = vld [vmem:[%s4310 + $0x1] sm:$0xff]
  %v4858 = vld [vmem:[%s4310 + $0x11] sm:$0xff]
  %v4859 = vld [vmem:[%s4310 + $0x21] sm:$0xff]
  %v4860 = vld [vmem:[%s4310 + $0x31] sm:$0xff]
  %v4861 = vld [vmem:[%s4310 + $0x41] sm:$0xff]
  %v4862 = vld [vmem:[%s4310 + $0x51] sm:$0xff]
  %v4863 = vld [vmem:[%s4310 + $0x61] sm:$0xff]
  %v4864 = vld [vmem:[%s4310 + $0x71] sm:$0xff]
  %v4865 = vld [vmem:[%s4310 + $0xa1] sm:$0xff]
  %v4866 = vld [vmem:[%s4310 + $0xb1] sm:$0xff]
  %v4867 = vld [vmem:[%s4310 + $0xc1] sm:$0xff]
  %v4868 = vld [vmem:[%s4310 + $0xd1] sm:$0xff]
  %v4869 = vld [vmem:[%s4310 + $0xe1] sm:$0xff]
  %v4870 = vld [vmem:[%s4310 + $0xf1] sm:$0xff]
  %v4871 = vld [vmem:[%s4310 + $0x101] sm:$0xff]
  %v4872 = vld [vmem:[%s4310 + $0x111] sm:$0xff]
  %v4873 = vld [vmem:[%s4310 + $0x2] sm:$0xff]
  %v4874 = vld [vmem:[%s4310 + $0x12] sm:$0xff]
  %v4875 = vld [vmem:[%s4310 + $0x22] sm:$0xff]
  %v4876 = vld [vmem:[%s4310 + $0x32] sm:$0xff]
  %v4877 = vld [vmem:[%s4310 + $0x42] sm:$0xff]
  %v4878 = vld [vmem:[%s4310 + $0x52] sm:$0xff]
  %v4879 = vld [vmem:[%s4310 + $0x62] sm:$0xff]
  %v4880 = vld [vmem:[%s4310 + $0x72] sm:$0xff]
  %v4881 = vld [vmem:[%s4310 + $0xa2] sm:$0xff]
  %v4882 = vld [vmem:[%s4310 + $0xb2] sm:$0xff]
  %v4883 = vld [vmem:[%s4310 + $0xc2] sm:$0xff]
  %v4884 = vld [vmem:[%s4310 + $0xd2] sm:$0xff]
  %v4885 = vld [vmem:[%s4310 + $0xe2] sm:$0xff]
  %v4886 = vld [vmem:[%s4310 + $0xf2] sm:$0xff]
  %v4887 = vld [vmem:[%s4310 + $0x102] sm:$0xff]
  %v4888 = vld [vmem:[%s4310 + $0x112] sm:$0xff]
  %4905 = vrot.lane.b32.xlu0 %v4841, 64
  %v4906 = vpop.permute.xlu0 %4905
  %4907 = vrot.lane.b32.xlu0 %v4842, 64
  %v4908 = vpop.permute.xlu0 %4907
  %4909 = vrot.lane.b32.xlu0 %v4843, 64
  %v4910 = vpop.permute.xlu0 %4909
  %4911 = vrot.lane.b32.xlu0 %v4844, 64
  %v4912 = vpop.permute.xlu0 %4911
  %4913 = vrot.lane.b32.xlu0 %v4845, 64
  %v4914 = vpop.permute.xlu0 %4913
  %4915 = vrot.lane.b32.xlu0 %v4846, 64
  %v4916 = vpop.permute.xlu0 %4915
  %4917 = vrot.lane.b32.xlu0 %v4847, 64
  %v4918 = vpop.permute.xlu0 %4917
  %4919 = vrot.lane.b32.xlu0 %v4848, 64
  %v4920 = vpop.permute.xlu0 %4919
  %4921 = vrot.lane.b32.xlu0 %v4849, 64
  %v4922 = vpop.permute.xlu0 %4921
  %4923 = vrot.lane.b32.xlu0 %v4850, 64
  %v4924 = vpop.permute.xlu0 %4923
  %4925 = vrot.lane.b32.xlu0 %v4851, 64
  %v4926 = vpop.permute.xlu0 %4925
  %4927 = vrot.lane.b32.xlu0 %v4852, 64
  %v4928 = vpop.permute.xlu0 %4927
  %4929 = vrot.lane.b32.xlu0 %v4853, 64
  %v4930 = vpop.permute.xlu0 %4929
  %4931 = vrot.lane.b32.xlu0 %v4854, 64
  %v4932 = vpop.permute.xlu0 %4931
  %4933 = vrot.lane.b32.xlu0 %v4855, 64
  %v4934 = vpop.permute.xlu0 %4933
  %4935 = vrot.lane.b32.xlu0 %v4856, 64
  %v4936 = vpop.permute.xlu0 %4935
  %4969 = vrot.lane.b32.xlu0 %v4873, 64
  %v4970 = vpop.permute.xlu0 %4969
  %4971 = vrot.lane.b32.xlu0 %v4874, 64
  %v4972 = vpop.permute.xlu0 %4971
  %4973 = vrot.lane.b32.xlu0 %v4875, 64
  %v4974 = vpop.permute.xlu0 %4973
  %4975 = vrot.lane.b32.xlu0 %v4876, 64
  %v4976 = vpop.permute.xlu0 %4975
  %4977 = vrot.lane.b32.xlu0 %v4877, 64
  %v4978 = vpop.permute.xlu0 %4977
  %4979 = vrot.lane.b32.xlu0 %v4878, 64
  %v4980 = vpop.permute.xlu0 %4979
  %4981 = vrot.lane.b32.xlu0 %v4879, 64
  %v4982 = vpop.permute.xlu0 %4981
  %4983 = vrot.lane.b32.xlu0 %v4880, 64
  %v4984 = vpop.permute.xlu0 %4983
  %4985 = vrot.lane.b32.xlu0 %v4881, 64
  %v4986 = vpop.permute.xlu0 %4985
  %4987 = vrot.lane.b32.xlu0 %v4882, 64
  %v4988 = vpop.permute.xlu0 %4987
  %4989 = vrot.lane.b32.xlu0 %v4883, 64
  %v4990 = vpop.permute.xlu0 %4989
  %4991 = vrot.lane.b32.xlu0 %v4884, 64
  %v4992 = vpop.permute.xlu0 %4991
  %4993 = vrot.lane.b32.xlu0 %v4885, 64
  %v4994 = vpop.permute.xlu0 %4993
  %4995 = vrot.lane.b32.xlu0 %v4886, 64
  %v4996 = vpop.permute.xlu0 %4995
  %4997 = vrot.lane.b32.xlu0 %v4887, 64
  %v4998 = vpop.permute.xlu0 %4997
  %4999 = vrot.lane.b32.xlu0 %v4888, 64
  %v5000 = vpop.permute.xlu0 %4999
  %v5017 = vsel %vm4147, %v4825, %v4906
  %v5018 = vsel %vm4147, %v4826, %v4908
  %v5019 = vsel %vm4147, %v4827, %v4910
  %v5020 = vsel %vm4147, %v4828, %v4912
  %v5021 = vsel %vm4147, %v4829, %v4914
  %v5022 = vsel %vm4147, %v4830, %v4916
  %v5023 = vsel %vm4147, %v4831, %v4918
  %v5024 = vsel %vm4147, %v4832, %v4920
  %v5025 = vsel %vm4147, %v4833, %v4922
  %v5026 = vsel %vm4147, %v4834, %v4924
  %v5027 = vsel %vm4147, %v4835, %v4926
  %v5028 = vsel %vm4147, %v4836, %v4928
  %v5029 = vsel %vm4147, %v4837, %v4930
  %v5030 = vsel %vm4147, %v4838, %v4932
  %v5031 = vsel %vm4147, %v4839, %v4934
  %v5032 = vsel %vm4147, %v4840, %v4936
  %v5033 = vsel %vm4147, %v4857, %v4970
  %v5034 = vsel %vm4147, %v4858, %v4972
  %v5035 = vsel %vm4147, %v4859, %v4974
  %v5036 = vsel %vm4147, %v4860, %v4976
  %v5037 = vsel %vm4147, %v4861, %v4978
  %v5038 = vsel %vm4147, %v4862, %v4980
  %v5039 = vsel %vm4147, %v4863, %v4982
  %v5040 = vsel %vm4147, %v4864, %v4984
  %v5041 = vsel %vm4147, %v4865, %v4986
  %v5042 = vsel %vm4147, %v4866, %v4988
  %v5043 = vsel %vm4147, %v4867, %v4990
  %v5044 = vsel %vm4147, %v4868, %v4992
  %v5045 = vsel %vm4147, %v4869, %v4994
  %v5046 = vsel %vm4147, %v4870, %v4996
  %v5047 = vsel %vm4147, %v4871, %v4998
  %v5048 = vsel %vm4147, %v4872, %v5000
  %v5049 = vpack.c.bf16 %v5018, %v5017
  %v5050 = vpack.c.bf16 %v5034, %v5033
  %v5051 = vpack.c.bf16 %v5020, %v5019
  %v5052 = vpack.c.bf16 %v5036, %v5035
  %v5053 = vpack.c.bf16 %v5022, %v5021
  %v5054 = vpack.c.bf16 %v5038, %v5037
  %v5055 = vpack.c.bf16 %v5024, %v5023
  %v5056 = vpack.c.bf16 %v5040, %v5039
  %v5057 = vpack.c.bf16 %v5026, %v5025
  %v5058 = vpack.c.bf16 %v5042, %v5041
  %v5059 = vpack.c.bf16 %v5028, %v5027
  %v5060 = vpack.c.bf16 %v5044, %v5043
  %v5061 = vpack.c.bf16 %v5030, %v5029
  %v5062 = vpack.c.bf16 %v5046, %v5045
  %v5063 = vpack.c.bf16 %v5032, %v5031
  %v5064 = vpack.c.bf16 %v5048, %v5047
  %s5065 = scalar_lea.vmem %s3, 128
  %v5066 = vld [vmem:[%s5065] sm:$0xf]
  %v5067 = vld [vmem:[%s5065 + $0x4] sm:$0xf]
  %v5068 = vld [vmem:[%s5065 + $0x8] sm:$0xf]
  %v5069 = vld [vmem:[%s5065 + $0xc] sm:$0xf]
  %v5070 = vld [vmem:[%s5065 + $0x10] sm:$0xf]
  %v5071 = vld [vmem:[%s5065 + $0x14] sm:$0xf]
  %v5072 = vld [vmem:[%s5065 + $0x18] sm:$0xf]
  %v5073 = vld [vmem:[%s5065 + $0x1c] sm:$0xf]
  %v5074 = vld [vmem:[%s5065 + $0x20] sm:$0xf]
  %v5075 = vld [vmem:[%s5065 + $0x24] sm:$0xf]
  %v5076 = vld [vmem:[%s5065 + $0x28] sm:$0xf]
  %v5077 = vld [vmem:[%s5065 + $0x2c] sm:$0xf]
  %v5078 = vld [vmem:[%s5065 + $0x30] sm:$0xf]
  %v5079 = vld [vmem:[%s5065 + $0x34] sm:$0xf]
  %v5080 = vld [vmem:[%s5065 + $0x38] sm:$0xf]
  %v5081 = vld [vmem:[%s5065 + $0x3c] sm:$0xf]
  %v5082 = vld [vmem:[%s5065 + $0x40] sm:$0xf]
  %v5083 = vld [vmem:[%s5065 + $0x44] sm:$0xf]
  %v5084 = vld [vmem:[%s5065 + $0x48] sm:$0xf]
  %v5085 = vld [vmem:[%s5065 + $0x4c] sm:$0xf]
  %v5086 = vld [vmem:[%s5065 + $0x50] sm:$0xf]
  %v5087 = vld [vmem:[%s5065 + $0x54] sm:$0xf]
  %v5088 = vld [vmem:[%s5065 + $0x58] sm:$0xf]
  %v5089 = vld [vmem:[%s5065 + $0x5c] sm:$0xf]
  %v5090 = vld [vmem:[%s5065 + $0x60] sm:$0xf]
  %v5091 = vld [vmem:[%s5065 + $0x64] sm:$0xf]
  %v5092 = vld [vmem:[%s5065 + $0x68] sm:$0xf]
  %v5093 = vld [vmem:[%s5065 + $0x6c] sm:$0xf]
  %v5094 = vld [vmem:[%s5065 + $0x70] sm:$0xf]
  %v5095 = vld [vmem:[%s5065 + $0x74] sm:$0xf]
  %v5096 = vld [vmem:[%s5065 + $0x78] sm:$0xf]
  %v5097 = vld [vmem:[%s5065 + $0x7c] sm:$0xf]
  %s5098 = scalar_lea.vmem %s4, 128
  %v5099 = vld [vmem:[%s5098] sm:$0xff]
  %v5100 = vld [vmem:[%s5098 + $0x8] sm:$0xff]
  %v5101 = vld [vmem:[%s5098 + $0x10] sm:$0xff]
  %v5102 = vld [vmem:[%s5098 + $0x18] sm:$0xff]
  %v5103 = vld [vmem:[%s5098 + $0x20] sm:$0xff]
  %v5104 = vld [vmem:[%s5098 + $0x28] sm:$0xff]
  %v5105 = vld [vmem:[%s5098 + $0x30] sm:$0xff]
  %v5106 = vld [vmem:[%s5098 + $0x38] sm:$0xff]
  %v5107 = vld [vmem:[%s5098 + $0x40] sm:$0xff]
  %v5108 = vld [vmem:[%s5098 + $0x48] sm:$0xff]
  %v5109 = vld [vmem:[%s5098 + $0x50] sm:$0xff]
  %v5110 = vld [vmem:[%s5098 + $0x58] sm:$0xff]
  %v5111 = vld [vmem:[%s5098 + $0x60] sm:$0xff]
  %v5112 = vld [vmem:[%s5098 + $0x68] sm:$0xff]
  %v5113 = vld [vmem:[%s5098 + $0x70] sm:$0xff]
  %v5114 = vld [vmem:[%s5098 + $0x78] sm:$0xff]
  %v5147 = vunpack.c.l.b16 %v5066
  %v5148 = vunpack.c.l.b16 %v5067
  %v5149 = vunpack.c.l.b16 %v5068
  %v5150 = vunpack.c.l.b16 %v5069
  %v5151 = vunpack.c.l.b16 %v5070
  %v5152 = vunpack.c.l.b16 %v5071
  %v5153 = vunpack.c.l.b16 %v5072
  %v5154 = vunpack.c.l.b16 %v5073
  %v5155 = vunpack.c.l.b16 %v5074
  %v5156 = vunpack.c.l.b16 %v5075
  %v5157 = vunpack.c.l.b16 %v5076
  %v5158 = vunpack.c.l.b16 %v5077
  %v5159 = vunpack.c.l.b16 %v5078
  %v5160 = vunpack.c.l.b16 %v5079
  %v5161 = vunpack.c.l.b16 %v5080
  %v5162 = vunpack.c.l.b16 %v5081
  %v5163 = vunpack.c.l.b16 %v5082
  %v5164 = vunpack.c.l.b16 %v5083
  %v5165 = vunpack.c.l.b16 %v5084
  %v5166 = vunpack.c.l.b16 %v5085
  %v5167 = vunpack.c.l.b16 %v5086
  %v5168 = vunpack.c.l.b16 %v5087
  %v5169 = vunpack.c.l.b16 %v5088
  %v5170 = vunpack.c.l.b16 %v5089
  %v5171 = vunpack.c.l.b16 %v5090
  %v5172 = vunpack.c.l.b16 %v5091
  %v5173 = vunpack.c.l.b16 %v5092
  %v5174 = vunpack.c.l.b16 %v5093
  %v5175 = vunpack.c.l.b16 %v5094
  %v5176 = vunpack.c.l.b16 %v5095
  %v5177 = vunpack.c.l.b16 %v5096
  %v5178 = vunpack.c.l.b16 %v5097
  %v5179 = vpack.c.b16 %v5148, %v5147
  %v5180 = vpack.c.b16 %v5150, %v5149
  %v5181 = vpack.c.b16 %v5152, %v5151
  %v5182 = vpack.c.b16 %v5154, %v5153
  %v5183 = vpack.c.b16 %v5156, %v5155
  %v5184 = vpack.c.b16 %v5158, %v5157
  %v5185 = vpack.c.b16 %v5160, %v5159
  %v5186 = vpack.c.b16 %v5162, %v5161
  %v5187 = vpack.c.b16 %v5164, %v5163
  %v5188 = vpack.c.b16 %v5166, %v5165
  %v5189 = vpack.c.b16 %v5168, %v5167
  %v5190 = vpack.c.b16 %v5170, %v5169
  %v5191 = vpack.c.b16 %v5172, %v5171
  %v5192 = vpack.c.b16 %v5174, %v5173
  %v5193 = vpack.c.b16 %v5176, %v5175
  %v5194 = vpack.c.b16 %v5178, %v5177
  %5211 = vmatprep.subr.bf16.mxu0 0
  %5212 = vmatpush1.bf16.msra.mxu0 %v5179
  %5213 = vmatprep.subr.bf16.mxu0 0
  %5214 = vmatpush1.bf16.msra.mxu0 %v5180
  %5215 = vmatprep.subr.bf16.mxu0 0
  %5216 = vmatpush1.bf16.msra.mxu0 %v5181
  %5217 = vmatprep.subr.bf16.mxu0 0
  %5218 = vmatpush1.bf16.msra.mxu0 %v5182
  %5219 = vmatprep.subr.bf16.mxu0 0
  %5220 = vmatpush1.bf16.msra.mxu0 %v5183
  %5221 = vmatprep.subr.bf16.mxu0 0
  %5222 = vmatpush1.bf16.msra.mxu0 %v5184
  %5223 = vmatprep.subr.bf16.mxu0 0
  %5224 = vmatpush1.bf16.msra.mxu0 %v5185
  %5225 = vmatprep.subr.bf16.mxu0 0
  %5226 = vmatpush1.bf16.msra.mxu0 %v5186
  %5227 = vmatprep.subr.bf16.mxu0 0
  %5228 = vmatpush1.bf16.msra.mxu0 %v5187
  %5229 = vmatprep.subr.bf16.mxu0 0
  %5230 = vmatpush1.bf16.msra.mxu0 %v5188
  %5231 = vmatprep.subr.bf16.mxu0 0
  %5232 = vmatpush1.bf16.msra.mxu0 %v5189
  %5233 = vmatprep.subr.bf16.mxu0 0
  %5234 = vmatpush1.bf16.msra.mxu0 %v5190
  %5235 = vmatprep.subr.bf16.mxu0 0
  %5236 = vmatpush1.bf16.msra.mxu0 %v5191
  %5237 = vmatprep.subr.bf16.mxu0 0
  %5238 = vmatpush1.bf16.msra.mxu0 %v5192
  %5239 = vmatprep.subr.bf16.mxu0 0
  %5240 = vmatpush1.bf16.msra.mxu0 %v5193
  %5241 = vmatprep.subr.bf16.mxu0 0
  %5242 = vmatpush1.bf16.msra.mxu0 %v5194
  %5243 = vmatprep.mubr.bf16.mxu0 %v5050
  %5244 = vmatmul.mubr.bf16.gmra.mrb[0].mxu0 %v5049
  %v5245 = vpop.f32.mrb[0].mxu0
  %v5246 = vadd.f32 %v5099, %v5245
  %v5247 = vpop.f32.mrb[0].mxu0
  %v5248 = vpop.f32.mrb[0].mxu0
  %v5249 = vadd.f32 %v5100, %v5248
  %v5250 = vpop.f32.mrb[0].mxu0
  %5251 = vmatprep.mubr.bf16.mxu0 %v5052
  %5252 = vmatmul.mubr.bf16.gmra.mrb[0].mxu0 %v5051
  %v5253 = vpop.f32.mrb[0].mxu0
  %v5254 = vadd.f32 %v5101, %v5253
  %v5255 = vpop.f32.mrb[0].mxu0
  %v5256 = vpop.f32.mrb[0].mxu0
  %v5257 = vadd.f32 %v5102, %v5256
  %v5258 = vpop.f32.mrb[0].mxu0
  %5259 = vmatprep.mubr.bf16.mxu0 %v5054
  %5260 = vmatmul.mubr.bf16.gmra.mrb[0].mxu0 %v5053
  %v5261 = vpop.f32.mrb[0].mxu0
  %v5262 = vadd.f32 %v5103, %v5261
  %v5263 = vpop.f32.mrb[0].mxu0
  %v5264 = vpop.f32.mrb[0].mxu0
  %v5265 = vadd.f32 %v5104, %v5264
  %v5266 = vpop.f32.mrb[0].mxu0
  %5267 = vmatprep.mubr.bf16.mxu0 %v5056
  %5268 = vmatmul.mubr.bf16.gmra.mrb[0].mxu0 %v5055
  %v5269 = vpop.f32.mrb[0].mxu0
  %v5270 = vadd.f32 %v5105, %v5269
  %v5271 = vpop.f32.mrb[0].mxu0
  %v5272 = vpop.f32.mrb[0].mxu0
  %v5273 = vadd.f32 %v5106, %v5272
  %v5274 = vpop.f32.mrb[0].mxu0
  %5275 = vmatprep.mubr.bf16.mxu0 %v5058
  %5276 = vmatmul.mubr.bf16.gmra.mrb[0].mxu0 %v5057
  %v5277 = vpop.f32.mrb[0].mxu0
  %v5278 = vadd.f32 %v5107, %v5277
  %v5279 = vpop.f32.mrb[0].mxu0
  %v5280 = vpop.f32.mrb[0].mxu0
  %v5281 = vadd.f32 %v5108, %v5280
  %v5282 = vpop.f32.mrb[0].mxu0
  %5283 = vmatprep.mubr.bf16.mxu0 %v5060
  %5284 = vmatmul.mubr.bf16.gmra.mrb[0].mxu0 %v5059
  %v5285 = vpop.f32.mrb[0].mxu0
  %v5286 = vadd.f32 %v5109, %v5285
  %v5287 = vpop.f32.mrb[0].mxu0
  %v5288 = vpop.f32.mrb[0].mxu0
  %v5289 = vadd.f32 %v5110, %v5288
  %v5290 = vpop.f32.mrb[0].mxu0
  %5291 = vmatprep.mubr.bf16.mxu0 %v5062
  %5292 = vmatmul.mubr.bf16.gmra.mrb[0].mxu0 %v5061
  %v5293 = vpop.f32.mrb[0].mxu0
  %v5294 = vadd.f32 %v5111, %v5293
  %v5295 = vpop.f32.mrb[0].mxu0
  %v5296 = vpop.f32.mrb[0].mxu0
  %v5297 = vadd.f32 %v5112, %v5296
  %v5298 = vpop.f32.mrb[0].mxu0
  %5299 = vmatprep.mubr.bf16.mxu0 %v5064
  %5300 = vmatmul.mubr.bf16.gmra.mrb[0].mxu0 %v5063
  %v5301 = vpop.f32.mrb[0].mxu0
  %v5302 = vadd.f32 %v5113, %v5301
  %v5303 = vpop.f32.mrb[0].mxu0
  %v5304 = vpop.f32.mrb[0].mxu0
  %v5305 = vadd.f32 %v5114, %v5304
  %v5306 = vpop.f32.mrb[0].mxu0
  %5307 = vdwg.mxu0
  %s5308 = scalar_lea.vmem %s5, 128
  %5309 = vst.msk [vmem:[%s5308] sm:$0xff] %vm4808, %v5246
  %5310 = vst.msk [vmem:[%s5308 + $0x8] sm:$0xff] %vm4808, %v5249
  %5311 = vst.msk [vmem:[%s5308 + $0x10] sm:$0xff] %vm4808, %v5254
  %5312 = vst.msk [vmem:[%s5308 + $0x18] sm:$0xff] %vm4808, %v5257
  %5313 = vst.msk [vmem:[%s5308 + $0x20] sm:$0xff] %vm4808, %v5262
  %5314 = vst.msk [vmem:[%s5308 + $0x28] sm:$0xff] %vm4808, %v5265
  %5315 = vst.msk [vmem:[%s5308 + $0x30] sm:$0xff] %vm4808, %v5270
  %5316 = vst.msk [vmem:[%s5308 + $0x38] sm:$0xff] %vm4808, %v5273
  %5317 = vst.msk [vmem:[%s5308 + $0x40] sm:$0xff] %vm4808, %v5278
  %5318 = vst.msk [vmem:[%s5308 + $0x48] sm:$0xff] %vm4808, %v5281
  %5319 = vst.msk [vmem:[%s5308 + $0x50] sm:$0xff] %vm4808, %v5286
  %5320 = vst.msk [vmem:[%s5308 + $0x58] sm:$0xff] %vm4808, %v5289
  %5321 = vst.msk [vmem:[%s5308 + $0x60] sm:$0xff] %vm4808, %v5294
  %5322 = vst.msk [vmem:[%s5308 + $0x68] sm:$0xff] %vm4808, %v5297
  %5323 = vst.msk [vmem:[%s5308 + $0x70] sm:$0xff] %vm4808, %v5302
  %5324 = vst.msk [vmem:[%s5308 + $0x78] sm:$0xff] %vm4808, %v5305
  %v5325 = vld [vmem:[%s4310] sm:$0xff]
  %v5326 = vld [vmem:[%s4310 + $0x10] sm:$0xff]
  %v5327 = vld [vmem:[%s4310 + $0x20] sm:$0xff]
  %v5328 = vld [vmem:[%s4310 + $0x30] sm:$0xff]
  %v5329 = vld [vmem:[%s4310 + $0x40] sm:$0xff]
  %v5330 = vld [vmem:[%s4310 + $0x50] sm:$0xff]
  %v5331 = vld [vmem:[%s4310 + $0x60] sm:$0xff]
  %v5332 = vld [vmem:[%s4310 + $0x70] sm:$0xff]
  %v5333 = vld [vmem:[%s4310 + $0xa0] sm:$0xff]
  %v5334 = vld [vmem:[%s4310 + $0xb0] sm:$0xff]
  %v5335 = vld [vmem:[%s4310 + $0xc0] sm:$0xff]
  %v5336 = vld [vmem:[%s4310 + $0xd0] sm:$0xff]
  %v5337 = vld [vmem:[%s4310 + $0xe0] sm:$0xff]
  %v5338 = vld [vmem:[%s4310 + $0xf0] sm:$0xff]
  %v5339 = vld [vmem:[%s4310 + $0x100] sm:$0xff]
  %v5340 = vld [vmem:[%s4310 + $0x110] sm:$0xff]
  %v5341 = vld [vmem:[%s4310 + $0x1] sm:$0xff]
  %v5342 = vld [vmem:[%s4310 + $0x11] sm:$0xff]
  %v5343 = vld [vmem:[%s4310 + $0x21] sm:$0xff]
  %v5344 = vld [vmem:[%s4310 + $0x31] sm:$0xff]
  %v5345 = vld [vmem:[%s4310 + $0x41] sm:$0xff]
  %v5346 = vld [vmem:[%s4310 + $0x51] sm:$0xff]
  %v5347 = vld [vmem:[%s4310 + $0x61] sm:$0xff]
  %v5348 = vld [vmem:[%s4310 + $0x71] sm:$0xff]
  %v5349 = vld [vmem:[%s4310 + $0xa1] sm:$0xff]
  %v5350 = vld [vmem:[%s4310 + $0xb1] sm:$0xff]
  %v5351 = vld [vmem:[%s4310 + $0xc1] sm:$0xff]
  %v5352 = vld [vmem:[%s4310 + $0xd1] sm:$0xff]
  %v5353 = vld [vmem:[%s4310 + $0xe1] sm:$0xff]
  %v5354 = vld [vmem:[%s4310 + $0xf1] sm:$0xff]
  %v5355 = vld [vmem:[%s4310 + $0x101] sm:$0xff]
  %v5356 = vld [vmem:[%s4310 + $0x111] sm:$0xff]
  %s5357 = scalar_lea.vmem [#allocation3], 32
  %v5358 = vld [vmem:[%s5357] sm:$0xff]
  %v5359 = vld [vmem:[%s5357 + $0x10] sm:$0xff]
  %v5360 = vld [vmem:[%s5357 + $0x20] sm:$0xff]
  %v5361 = vld [vmem:[%s5357 + $0x30] sm:$0xff]
  %v5362 = vld [vmem:[%s5357 + $0x40] sm:$0xff]
  %v5363 = vld [vmem:[%s5357 + $0x50] sm:$0xff]
  %v5364 = vld [vmem:[%s5357 + $0x60] sm:$0xff]
  %v5365 = vld [vmem:[%s5357 + $0x70] sm:$0xff]
  %v5366 = vld [vmem:[%s5357 + $0xa0] sm:$0xff]
  %v5367 = vld [vmem:[%s5357 + $0xb0] sm:$0xff]
  %v5368 = vld [vmem:[%s5357 + $0xc0] sm:$0xff]
  %v5369 = vld [vmem:[%s5357 + $0xd0] sm:$0xff]
  %v5370 = vld [vmem:[%s5357 + $0xe0] sm:$0xff]
  %v5371 = vld [vmem:[%s5357 + $0xf0] sm:$0xff]
  %v5372 = vld [vmem:[%s5357 + $0x100] sm:$0xff]
  %v5373 = vld [vmem:[%s5357 + $0x110] sm:$0xff]
  %v5374 = vld [vmem:[%s5357 + $0x1] sm:$0xff]
  %v5375 = vld [vmem:[%s5357 + $0x11] sm:$0xff]
  %v5376 = vld [vmem:[%s5357 + $0x21] sm:$0xff]
  %v5377 = vld [vmem:[%s5357 + $0x31] sm:$0xff]
  %v5378 = vld [vmem:[%s5357 + $0x41] sm:$0xff]
  %v5379 = vld [vmem:[%s5357 + $0x51] sm:$0xff]
  %v5380 = vld [vmem:[%s5357 + $0x61] sm:$0xff]
  %v5381 = vld [vmem:[%s5357 + $0x71] sm:$0xff]
  %v5382 = vld [vmem:[%s5357 + $0xa1] sm:$0xff]
  %v5383 = vld [vmem:[%s5357 + $0xb1] sm:$0xff]
  %v5384 = vld [vmem:[%s5357 + $0xc1] sm:$0xff]
  %v5385 = vld [vmem:[%s5357 + $0xd1] sm:$0xff]
  %v5386 = vld [vmem:[%s5357 + $0xe1] sm:$0xff]
  %v5387 = vld [vmem:[%s5357 + $0xf1] sm:$0xff]
  %v5388 = vld [vmem:[%s5357 + $0x101] sm:$0xff]
  %v5389 = vld [vmem:[%s5357 + $0x111] sm:$0xff]
  %5406 = vrot.lane.b32.xlu0 %v5341, 64
  %v5407 = vpop.permute.xlu0 %5406
  %5408 = vrot.lane.b32.xlu0 %v5342, 64
  %v5409 = vpop.permute.xlu0 %5408
  %5410 = vrot.lane.b32.xlu0 %v5343, 64
  %v5411 = vpop.permute.xlu0 %5410
  %5412 = vrot.lane.b32.xlu0 %v5344, 64
  %v5413 = vpop.permute.xlu0 %5412
  %5414 = vrot.lane.b32.xlu0 %v5345, 64
  %v5415 = vpop.permute.xlu0 %5414
  %5416 = vrot.lane.b32.xlu0 %v5346, 64
  %v5417 = vpop.permute.xlu0 %5416
  %5418 = vrot.lane.b32.xlu0 %v5347, 64
  %v5419 = vpop.permute.xlu0 %5418
  %5420 = vrot.lane.b32.xlu0 %v5348, 64
  %v5421 = vpop.permute.xlu0 %5420
  %5422 = vrot.lane.b32.xlu0 %v5349, 64
  %v5423 = vpop.permute.xlu0 %5422
  %5424 = vrot.lane.b32.xlu0 %v5350, 64
  %v5425 = vpop.permute.xlu0 %5424
  %5426 = vrot.lane.b32.xlu0 %v5351, 64
  %v5427 = vpop.permute.xlu0 %5426
  %5428 = vrot.lane.b32.xlu0 %v5352, 64
  %v5429 = vpop.permute.xlu0 %5428
  %5430 = vrot.lane.b32.xlu0 %v5353, 64
  %v5431 = vpop.permute.xlu0 %5430
  %5432 = vrot.lane.b32.xlu0 %v5354, 64
  %v5433 = vpop.permute.xlu0 %5432
  %5434 = vrot.lane.b32.xlu0 %v5355, 64
  %v5435 = vpop.permute.xlu0 %5434
  %5436 = vrot.lane.b32.xlu0 %v5356, 64
  %v5437 = vpop.permute.xlu0 %5436
  %5470 = vrot.lane.b32.xlu0 %v5374, 64
  %v5471 = vpop.permute.xlu0 %5470
  %5472 = vrot.lane.b32.xlu0 %v5375, 64
  %v5473 = vpop.permute.xlu0 %5472
  %5474 = vrot.lane.b32.xlu0 %v5376, 64
  %v5475 = vpop.permute.xlu0 %5474
  %5476 = vrot.lane.b32.xlu0 %v5377, 64
  %v5477 = vpop.permute.xlu0 %5476
  %5478 = vrot.lane.b32.xlu0 %v5378, 64
  %v5479 = vpop.permute.xlu0 %5478
  %5480 = vrot.lane.b32.xlu0 %v5379, 64
  %v5481 = vpop.permute.xlu0 %5480
  %5482 = vrot.lane.b32.xlu0 %v5380, 64
  %v5483 = vpop.permute.xlu0 %5482
  %5484 = vrot.lane.b32.xlu0 %v5381, 64
  %v5485 = vpop.permute.xlu0 %5484
  %5486 = vrot.lane.b32.xlu0 %v5382, 64
  %v5487 = vpop.permute.xlu0 %5486
  %5488 = vrot.lane.b32.xlu0 %v5383, 64
  %v5489 = vpop.permute.xlu0 %5488
  %5490 = vrot.lane.b32.xlu0 %v5384, 64
  %v5491 = vpop.permute.xlu0 %5490
  %5492 = vrot.lane.b32.xlu0 %v5385, 64
  %v5493 = vpop.permute.xlu0 %5492
  %5494 = vrot.lane.b32.xlu0 %v5386, 64
  %v5495 = vpop.permute.xlu0 %5494
  %5496 = vrot.lane.b32.xlu0 %v5387, 64
  %v5497 = vpop.permute.xlu0 %5496
  %5498 = vrot.lane.b32.xlu0 %v5388, 64
  %v5499 = vpop.permute.xlu0 %5498
  %5500 = vrot.lane.b32.xlu0 %v5389, 64
  %v5501 = vpop.permute.xlu0 %5500
  %v5518 = vsel %vm4147, %v5325, %v5407
  %v5519 = vsel %vm4147, %v5326, %v5409
  %v5520 = vsel %vm4147, %v5327, %v5411
  %v5521 = vsel %vm4147, %v5328, %v5413
  %v5522 = vsel %vm4147, %v5329, %v5415
  %v5523 = vsel %vm4147, %v5330, %v5417
  %v5524 = vsel %vm4147, %v5331, %v5419
  %v5525 = vsel %vm4147, %v5332, %v5421
  %v5526 = vsel %vm4147, %v5333, %v5423
  %v5527 = vsel %vm4147, %v5334, %v5425
  %v5528 = vsel %vm4147, %v5335, %v5427
  %v5529 = vsel %vm4147, %v5336, %v5429
  %v5530 = vsel %vm4147, %v5337, %v5431
  %v5531 = vsel %vm4147, %v5338, %v5433
  %v5532 = vsel %vm4147, %v5339, %v5435
  %v5533 = vsel %vm4147, %v5340, %v5437
  %v5534 = vsel %vm4147, %v5358, %v5471
  %v5535 = vsel %vm4147, %v5359, %v5473
  %v5536 = vsel %vm4147, %v5360, %v5475
  %v5537 = vsel %vm4147, %v5361, %v5477
  %v5538 = vsel %vm4147, %v5362, %v5479
  %v5539 = vsel %vm4147, %v5363, %v5481
  %v5540 = vsel %vm4147, %v5364, %v5483
  %v5541 = vsel %vm4147, %v5365, %v5485
  %v5542 = vsel %vm4147, %v5366, %v5487
  %v5543 = vsel %vm4147, %v5367, %v5489
  %v5544 = vsel %vm4147, %v5368, %v5491
  %v5545 = vsel %vm4147, %v5369, %v5493
  %v5546 = vsel %vm4147, %v5370, %v5495
  %v5547 = vsel %vm4147, %v5371, %v5497
  %v5548 = vsel %vm4147, %v5372, %v5499
  %v5549 = vsel %vm4147, %v5373, %v5501
  %v5550 = vpack.c.bf16 %v5519, %v5518
  %v5551 = vpack.c.bf16 %v5535, %v5534
  %v5552 = vpack.c.bf16 %v5521, %v5520
  %v5553 = vpack.c.bf16 %v5537, %v5536
  %v5554 = vpack.c.bf16 %v5523, %v5522
  %v5555 = vpack.c.bf16 %v5539, %v5538
  %v5556 = vpack.c.bf16 %v5525, %v5524
  %v5557 = vpack.c.bf16 %v5541, %v5540
  %v5558 = vpack.c.bf16 %v5527, %v5526
  %v5559 = vpack.c.bf16 %v5543, %v5542
  %v5560 = vpack.c.bf16 %v5529, %v5528
  %v5561 = vpack.c.bf16 %v5545, %v5544
  %v5562 = vpack.c.bf16 %v5531, %v5530
  %v5563 = vpack.c.bf16 %v5547, %v5546
  %v5564 = vpack.c.bf16 %v5533, %v5532
  %v5565 = vpack.c.bf16 %v5549, %v5548
  %s5566 = scalar_lea.vmem %s3, 256
  %v5567 = vld [vmem:[%s5566] sm:$0xf]
  %v5568 = vld [vmem:[%s5566 + $0x4] sm:$0xf]
  %v5569 = vld [vmem:[%s5566 + $0x8] sm:$0xf]
  %v5570 = vld [vmem:[%s5566 + $0xc] sm:$0xf]
  %v5571 = vld [vmem:[%s5566 + $0x10] sm:$0xf]
  %v5572 = vld [vmem:[%s5566 + $0x14] sm:$0xf]
  %v5573 = vld [vmem:[%s5566 + $0x18] sm:$0xf]
  %v5574 = vld [vmem:[%s5566 + $0x1c] sm:$0xf]
  %v5575 = vld [vmem:[%s5566 + $0x20] sm:$0xf]
  %v5576 = vld [vmem:[%s5566 + $0x24] sm:$0xf]
  %v5577 = vld [vmem:[%s5566 + $0x28] sm:$0xf]
  %v5578 = vld [vmem:[%s5566 + $0x2c] sm:$0xf]
  %v5579 = vld [vmem:[%s5566 + $0x30] sm:$0xf]
  %v5580 = vld [vmem:[%s5566 + $0x34] sm:$0xf]
  %v5581 = vld [vmem:[%s5566 + $0x38] sm:$0xf]
  %v5582 = vld [vmem:[%s5566 + $0x3c] sm:$0xf]
  %v5583 = vld [vmem:[%s5566 + $0x40] sm:$0xf]
  %v5584 = vld [vmem:[%s5566 + $0x44] sm:$0xf]
  %v5585 = vld [vmem:[%s5566 + $0x48] sm:$0xf]
  %v5586 = vld [vmem:[%s5566 + $0x4c] sm:$0xf]
  %v5587 = vld [vmem:[%s5566 + $0x50] sm:$0xf]
  %v5588 = vld [vmem:[%s5566 + $0x54] sm:$0xf]
  %v5589 = vld [vmem:[%s5566 + $0x58] sm:$0xf]
  %v5590 = vld [vmem:[%s5566 + $0x5c] sm:$0xf]
  %v5591 = vld [vmem:[%s5566 + $0x60] sm:$0xf]
  %v5592 = vld [vmem:[%s5566 + $0x64] sm:$0xf]
  %v5593 = vld [vmem:[%s5566 + $0x68] sm:$0xf]
  %v5594 = vld [vmem:[%s5566 + $0x6c] sm:$0xf]
  %v5595 = vld [vmem:[%s5566 + $0x70] sm:$0xf]
  %v5596 = vld [vmem:[%s5566 + $0x74] sm:$0xf]
  %v5597 = vld [vmem:[%s5566 + $0x78] sm:$0xf]
  %v5598 = vld [vmem:[%s5566 + $0x7c] sm:$0xf]
  %s5599 = scalar_lea.vmem %s4, 256
  %v5600 = vld [vmem:[%s5599] sm:$0xff]
  %v5601 = vld [vmem:[%s5599 + $0x8] sm:$0xff]
  %v5602 = vld [vmem:[%s5599 + $0x10] sm:$0xff]
  %v5603 = vld [vmem:[%s5599 + $0x18] sm:$0xff]
  %v5604 = vld [vmem:[%s5599 + $0x20] sm:$0xff]
  %v5605 = vld [vmem:[%s5599 + $0x28] sm:$0xff]
  %v5606 = vld [vmem:[%s5599 + $0x30] sm:$0xff]
  %v5607 = vld [vmem:[%s5599 + $0x38] sm:$0xff]
  %v5608 = vld [vmem:[%s5599 + $0x40] sm:$0xff]
  %v5609 = vld [vmem:[%s5599 + $0x48] sm:$0xff]
  %v5610 = vld [vmem:[%s5599 + $0x50] sm:$0xff]
  %v5611 = vld [vmem:[%s5599 + $0x58] sm:$0xff]
  %v5612 = vld [vmem:[%s5599 + $0x60] sm:$0xff]
  %v5613 = vld [vmem:[%s5599 + $0x68] sm:$0xff]
  %v5614 = vld [vmem:[%s5599 + $0x70] sm:$0xff]
  %v5615 = vld [vmem:[%s5599 + $0x78] sm:$0xff]
  %v5648 = vunpack.c.l.b16 %v5567
  %v5649 = vunpack.c.l.b16 %v5568
  %v5650 = vunpack.c.l.b16 %v5569
  %v5651 = vunpack.c.l.b16 %v5570
  %v5652 = vunpack.c.l.b16 %v5571
  %v5653 = vunpack.c.l.b16 %v5572
  %v5654 = vunpack.c.l.b16 %v5573
  %v5655 = vunpack.c.l.b16 %v5574
  %v5656 = vunpack.c.l.b16 %v5575
  %v5657 = vunpack.c.l.b16 %v5576
  %v5658 = vunpack.c.l.b16 %v5577
  %v5659 = vunpack.c.l.b16 %v5578
  %v5660 = vunpack.c.l.b16 %v5579
  %v5661 = vunpack.c.l.b16 %v5580
  %v5662 = vunpack.c.l.b16 %v5581
  %v5663 = vunpack.c.l.b16 %v5582
  %v5664 = vunpack.c.l.b16 %v5583
  %v5665 = vunpack.c.l.b16 %v5584
  %v5666 = vunpack.c.l.b16 %v5585
  %v5667 = vunpack.c.l.b16 %v5586
  %v5668 = vunpack.c.l.b16 %v5587
  %v5669 = vunpack.c.l.b16 %v5588
  %v5670 = vunpack.c.l.b16 %v5589
  %v5671 = vunpack.c.l.b16 %v5590
  %v5672 = vunpack.c.l.b16 %v5591
  %v5673 = vunpack.c.l.b16 %v5592
  %v5674 = vunpack.c.l.b16 %v5593
  %v5675 = vunpack.c.l.b16 %v5594
  %v5676 = vunpack.c.l.b16 %v5595
  %v5677 = vunpack.c.l.b16 %v5596
  %v5678 = vunpack.c.l.b16 %v5597
  %v5679 = vunpack.c.l.b16 %v5598
  %v5680 = vpack.c.b16 %v5649, %v5648
  %v5681 = vpack.c.b16 %v5651, %v5650
  %v5682 = vpack.c.b16 %v5653, %v5652
  %v5683 = vpack.c.b16 %v5655, %v5654
  %v5684 = vpack.c.b16 %v5657, %v5656
  %v5685 = vpack.c.b16 %v5659, %v5658
  %v5686 = vpack.c.b16 %v5661, %v5660
  %v5687 = vpack.c.b16 %v5663, %v5662
  %v5688 = vpack.c.b16 %v5665, %v5664
  %v5689 = vpack.c.b16 %v5667, %v5666
  %v5690 = vpack.c.b16 %v5669, %v5668
  %v5691 = vpack.c.b16 %v5671, %v5670
  %v5692 = vpack.c.b16 %v5673, %v5672
  %v5693 = vpack.c.b16 %v5675, %v5674
  %v5694 = vpack.c.b16 %v5677, %v5676
  %v5695 = vpack.c.b16 %v5679, %v5678
  %5712 = vmatprep.subr.bf16.mxu0 0
  %5713 = vmatpush1.bf16.msra.mxu0 %v5680
  %5714 = vmatprep.subr.bf16.mxu0 0
  %5715 = vmatpush1.bf16.msra.mxu0 %v5681
  %5716 = vmatprep.subr.bf16.mxu0 0
  %5717 = vmatpush1.bf16.msra.mxu0 %v5682
  %5718 = vmatprep.subr.bf16.mxu0 0
  %5719 = vmatpush1.bf16.msra.mxu0 %v5683
  %5720 = vmatprep.subr.bf16.mxu0 0
  %5721 = vmatpush1.bf16.msra.mxu0 %v5684
  %5722 = vmatprep.subr.bf16.mxu0 0
  %5723 = vmatpush1.bf16.msra.mxu0 %v5685
  %5724 = vmatprep.subr.bf16.mxu0 0
  %5725 = vmatpush1.bf16.msra.mxu0 %v5686
  %5726 = vmatprep.subr.bf16.mxu0 0
  %5727 = vmatpush1.bf16.msra.mxu0 %v5687
  %5728 = vmatprep.subr.bf16.mxu0 0
  %5729 = vmatpush1.bf16.msra.mxu0 %v5688
  %5730 = vmatprep.subr.bf16.mxu0 0
  %5731 = vmatpush1.bf16.msra.mxu0 %v5689
  %5732 = vmatprep.subr.bf16.mxu0 0
  %5733 = vmatpush1.bf16.msra.mxu0 %v5690
  %5734 = vmatprep.subr.bf16.mxu0 0
  %5735 = vmatpush1.bf16.msra.mxu0 %v5691
  %5736 = vmatprep.subr.bf16.mxu0 0
  %5737 = vmatpush1.bf16.msra.mxu0 %v5692
  %5738 = vmatprep.subr.bf16.mxu0 0
  %5739 = vmatpush1.bf16.msra.mxu0 %v5693
  %5740 = vmatprep.subr.bf16.mxu0 0
  %5741 = vmatpush1.bf16.msra.mxu0 %v5694
  %5742 = vmatprep.subr.bf16.mxu0 0
  %5743 = vmatpush1.bf16.msra.mxu0 %v5695
  %5744 = vmatprep.mubr.bf16.mxu0 %v5551
  %5745 = vmatmul.mubr.bf16.gmra.mrb[0].mxu0 %v5550
  %v5746 = vpop.f32.mrb[0].mxu0
  %v5747 = vadd.f32 %v5600, %v5746
  %v5748 = vpop.f32.mrb[0].mxu0
  %v5749 = vpop.f32.mrb[0].mxu0
  %v5750 = vadd.f32 %v5601, %v5749
  %v5751 = vpop.f32.mrb[0].mxu0
  %5752 = vmatprep.mubr.bf16.mxu0 %v5553
  %5753 = vmatmul.mubr.bf16.gmra.mrb[0].mxu0 %v5552
  %v5754 = vpop.f32.mrb[0].mxu0
  %v5755 = vadd.f32 %v5602, %v5754
  %v5756 = vpop.f32.mrb[0].mxu0
  %v5757 = vpop.f32.mrb[0].mxu0
  %v5758 = vadd.f32 %v5603, %v5757
  %v5759 = vpop.f32.mrb[0].mxu0
  %5760 = vmatprep.mubr.bf16.mxu0 %v5555
  %5761 = vmatmul.mubr.bf16.gmra.mrb[0].mxu0 %v5554
  %v5762 = vpop.f32.mrb[0].mxu0
  %v5763 = vadd.f32 %v5604, %v5762
  %v5764 = vpop.f32.mrb[0].mxu0
  %v5765 = vpop.f32.mrb[0].mxu0
  %v5766 = vadd.f32 %v5605, %v5765
  %v5767 = vpop.f32.mrb[0].mxu0
  %5768 = vmatprep.mubr.bf16.mxu0 %v5557
  %5769 = vmatmul.mubr.bf16.gmra.mrb[0].mxu0 %v5556
  %v5770 = vpop.f32.mrb[0].mxu0
  %v5771 = vadd.f32 %v5606, %v5770
  %v5772 = vpop.f32.mrb[0].mxu0
  %v5773 = vpop.f32.mrb[0].mxu0
  %v5774 = vadd.f32 %v5607, %v5773
  %v5775 = vpop.f32.mrb[0].mxu0
  %5776 = vmatprep.mubr.bf16.mxu0 %v5559
  %5777 = vmatmul.mubr.bf16.gmra.mrb[0].mxu0 %v5558
  %v5778 = vpop.f32.mrb[0].mxu0
  %v5779 = vadd.f32 %v5608, %v5778
  %v5780 = vpop.f32.mrb[0].mxu0
  %v5781 = vpop.f32.mrb[0].mxu0
  %v5782 = vadd.f32 %v5609, %v5781
  %v5783 = vpop.f32.mrb[0].mxu0
  %5784 = vmatprep.mubr.bf16.mxu0 %v5561
  %5785 = vmatmul.mubr.bf16.gmra.mrb[0].mxu0 %v5560
  %v5786 = vpop.f32.mrb[0].mxu0
  %v5787 = vadd.f32 %v5610, %v5786
  %v5788 = vpop.f32.mrb[0].mxu0
  %v5789 = vpop.f32.mrb[0].mxu0
  %v5790 = vadd.f32 %v5611, %v5789
  %v5791 = vpop.f32.mrb[0].mxu0
  %5792 = vmatprep.mubr.bf16.mxu0 %v5563
  %5793 = vmatmul.mubr.bf16.gmra.mrb[0].mxu0 %v5562
  %v5794 = vpop.f32.mrb[0].mxu0
  %v5795 = vadd.f32 %v5612, %v5794
  %v5796 = vpop.f32.mrb[0].mxu0
  %v5797 = vpop.f32.mrb[0].mxu0
  %v5798 = vadd.f32 %v5613, %v5797
  %v5799 = vpop.f32.mrb[0].mxu0
  %5800 = vmatprep.mubr.bf16.mxu0 %v5565
  %5801 = vmatmul.mubr.bf16.gmra.mrb[0].mxu0 %v5564
  %v5802 = vpop.f32.mrb[0].mxu0
  %v5803 = vadd.f32 %v5614, %v5802
  %v5804 = vpop.f32.mrb[0].mxu0
  %v5805 = vpop.f32.mrb[0].mxu0
  %v5806 = vadd.f32 %v5615, %v5805
  %v5807 = vpop.f32.mrb[0].mxu0
  %5808 = vdwg.mxu0
  %s5809 = scalar_lea.vmem %s5, 256
  %5810 = vst.msk [vmem:[%s5809] sm:$0xff] %vm4808, %v5747
  %5811 = vst.msk [vmem:[%s5809 + $0x8] sm:$0xff] %vm4808, %v5750
  %5812 = vst.msk [vmem:[%s5809 + $0x10] sm:$0xff] %vm4808, %v5755
  %5813 = vst.msk [vmem:[%s5809 + $0x18] sm:$0xff] %vm4808, %v5758
  %5814 = vst.msk [vmem:[%s5809 + $0x20] sm:$0xff] %vm4808, %v5763
  %5815 = vst.msk [vmem:[%s5809 + $0x28] sm:$0xff] %vm4808, %v5766
  %5816 = vst.msk [vmem:[%s5809 + $0x30] sm:$0xff] %vm4808, %v5771
  %5817 = vst.msk [vmem:[%s5809 + $0x38] sm:$0xff] %vm4808, %v5774
  %5818 = vst.msk [vmem:[%s5809 + $0x40] sm:$0xff] %vm4808, %v5779
  %5819 = vst.msk [vmem:[%s5809 + $0x48] sm:$0xff] %vm4808, %v5782
  %5820 = vst.msk [vmem:[%s5809 + $0x50] sm:$0xff] %vm4808, %v5787
  %5821 = vst.msk [vmem:[%s5809 + $0x58] sm:$0xff] %vm4808, %v5790
  %5822 = vst.msk [vmem:[%s5809 + $0x60] sm:$0xff] %vm4808, %v5795
  %5823 = vst.msk [vmem:[%s5809 + $0x68] sm:$0xff] %vm4808, %v5798
  %5824 = vst.msk [vmem:[%s5809 + $0x70] sm:$0xff] %vm4808, %v5803
  %5825 = vst.msk [vmem:[%s5809 + $0x78] sm:$0xff] %vm4808, %v5806
  %v5826 = vld [vmem:[%s4310 + $0x1] sm:$0xff]
  %v5827 = vld [vmem:[%s4310 + $0x11] sm:$0xff]
  %v5828 = vld [vmem:[%s4310 + $0x21] sm:$0xff]
  %v5829 = vld [vmem:[%s4310 + $0x31] sm:$0xff]
  %v5830 = vld [vmem:[%s4310 + $0x41] sm:$0xff]
  %v5831 = vld [vmem:[%s4310 + $0x51] sm:$0xff]
  %v5832 = vld [vmem:[%s4310 + $0x61] sm:$0xff]
  %v5833 = vld [vmem:[%s4310 + $0x71] sm:$0xff]
  %v5834 = vld [vmem:[%s4310 + $0xa1] sm:$0xff]
  %v5835 = vld [vmem:[%s4310 + $0xb1] sm:$0xff]
  %v5836 = vld [vmem:[%s4310 + $0xc1] sm:$0xff]
  %v5837 = vld [vmem:[%s4310 + $0xd1] sm:$0xff]
  %v5838 = vld [vmem:[%s4310 + $0xe1] sm:$0xff]
  %v5839 = vld [vmem:[%s4310 + $0xf1] sm:$0xff]
  %v5840 = vld [vmem:[%s4310 + $0x101] sm:$0xff]
  %v5841 = vld [vmem:[%s4310 + $0x111] sm:$0xff]
  %v5842 = vld [vmem:[%s4310 + $0x2] sm:$0xff]
  %v5843 = vld [vmem:[%s4310 + $0x12] sm:$0xff]
  %v5844 = vld [vmem:[%s4310 + $0x22] sm:$0xff]
  %v5845 = vld [vmem:[%s4310 + $0x32] sm:$0xff]
  %v5846 = vld [vmem:[%s4310 + $0x42] sm:$0xff]
  %v5847 = vld [vmem:[%s4310 + $0x52] sm:$0xff]
  %v5848 = vld [vmem:[%s4310 + $0x62] sm:$0xff]
  %v5849 = vld [vmem:[%s4310 + $0x72] sm:$0xff]
  %v5850 = vld [vmem:[%s4310 + $0xa2] sm:$0xff]
  %v5851 = vld [vmem:[%s4310 + $0xb2] sm:$0xff]
  %v5852 = vld [vmem:[%s4310 + $0xc2] sm:$0xff]
  %v5853 = vld [vmem:[%s4310 + $0xd2] sm:$0xff]
  %v5854 = vld [vmem:[%s4310 + $0xe2] sm:$0xff]
  %v5855 = vld [vmem:[%s4310 + $0xf2] sm:$0xff]
  %v5856 = vld [vmem:[%s4310 + $0x102] sm:$0xff]
  %v5857 = vld [vmem:[%s4310 + $0x112] sm:$0xff]
  %v5858 = vld [vmem:[%s5357 + $0x1] sm:$0xff]
  %v5859 = vld [vmem:[%s5357 + $0x11] sm:$0xff]
  %v5860 = vld [vmem:[%s5357 + $0x21] sm:$0xff]
  %v5861 = vld [vmem:[%s5357 + $0x31] sm:$0xff]
  %v5862 = vld [vmem:[%s5357 + $0x41] sm:$0xff]
  %v5863 = vld [vmem:[%s5357 + $0x51] sm:$0xff]
  %v5864 = vld [vmem:[%s5357 + $0x61] sm:$0xff]
  %v5865 = vld [vmem:[%s5357 + $0x71] sm:$0xff]
  %v5866 = vld [vmem:[%s5357 + $0xa1] sm:$0xff]
  %v5867 = vld [vmem:[%s5357 + $0xb1] sm:$0xff]
  %v5868 = vld [vmem:[%s5357 + $0xc1] sm:$0xff]
  %v5869 = vld [vmem:[%s5357 + $0xd1] sm:$0xff]
  %v5870 = vld [vmem:[%s5357 + $0xe1] sm:$0xff]
  %v5871 = vld [vmem:[%s5357 + $0xf1] sm:$0xff]
  %v5872 = vld [vmem:[%s5357 + $0x101] sm:$0xff]
  %v5873 = vld [vmem:[%s5357 + $0x111] sm:$0xff]
  %v5874 = vld [vmem:[%s5357 + $0x2] sm:$0xff]
  %v5875 = vld [vmem:[%s5357 + $0x12] sm:$0xff]
  %v5876 = vld [vmem:[%s5357 + $0x22] sm:$0xff]
  %v5877 = vld [vmem:[%s5357 + $0x32] sm:$0xff]
  %v5878 = vld [vmem:[%s5357 + $0x42] sm:$0xff]
  %v5879 = vld [vmem:[%s5357 + $0x52] sm:$0xff]
  %v5880 = vld [vmem:[%s5357 + $0x62] sm:$0xff]
  %v5881 = vld [vmem:[%s5357 + $0x72] sm:$0xff]
  %v5882 = vld [vmem:[%s5357 + $0xa2] sm:$0xff]
  %v5883 = vld [vmem:[%s5357 + $0xb2] sm:$0xff]
  %v5884 = vld [vmem:[%s5357 + $0xc2] sm:$0xff]
  %v5885 = vld [vmem:[%s5357 + $0xd2] sm:$0xff]
  %v5886 = vld [vmem:[%s5357 + $0xe2] sm:$0xff]
  %v5887 = vld [vmem:[%s5357 + $0xf2] sm:$0xff]
  %v5888 = vld [vmem:[%s5357 + $0x102] sm:$0xff]
  %v5889 = vld [vmem:[%s5357 + $0x112] sm:$0xff]
  %5906 = vrot.lane.b32.xlu0 %v5842, 64
  %v5907 = vpop.permute.xlu0 %5906
  %5908 = vrot.lane.b32.xlu0 %v5843, 64
  %v5909 = vpop.permute.xlu0 %5908
  %5910 = vrot.lane.b32.xlu0 %v5844, 64
  %v5911 = vpop.permute.xlu0 %5910
  %5912 = vrot.lane.b32.xlu0 %v5845, 64
  %v5913 = vpop.permute.xlu0 %5912
  %5914 = vrot.lane.b32.xlu0 %v5846, 64
  %v5915 = vpop.permute.xlu0 %5914
  %5916 = vrot.lane.b32.xlu0 %v5847, 64
  %v5917 = vpop.permute.xlu0 %5916
  %5918 = vrot.lane.b32.xlu0 %v5848, 64
  %v5919 = vpop.permute.xlu0 %5918
  %5920 = vrot.lane.b32.xlu0 %v5849, 64
  %v5921 = vpop.permute.xlu0 %5920
  %5922 = vrot.lane.b32.xlu0 %v5850, 64
  %v5923 = vpop.permute.xlu0 %5922
  %5924 = vrot.lane.b32.xlu0 %v5851, 64
  %v5925 = vpop.permute.xlu0 %5924
  %5926 = vrot.lane.b32.xlu0 %v5852, 64
  %v5927 = vpop.permute.xlu0 %5926
  %5928 = vrot.lane.b32.xlu0 %v5853, 64
  %v5929 = vpop.permute.xlu0 %5928
  %5930 = vrot.lane.b32.xlu0 %v5854, 64
  %v5931 = vpop.permute.xlu0 %5930
  %5932 = vrot.lane.b32.xlu0 %v5855, 64
  %v5933 = vpop.permute.xlu0 %5932
  %5934 = vrot.lane.b32.xlu0 %v5856, 64
  %v5935 = vpop.permute.xlu0 %5934
  %5936 = vrot.lane.b32.xlu0 %v5857, 64
  %v5937 = vpop.permute.xlu0 %5936
  %5970 = vrot.lane.b32.xlu0 %v5874, 64
  %v5971 = vpop.permute.xlu0 %5970
  %5972 = vrot.lane.b32.xlu0 %v5875, 64
  %v5973 = vpop.permute.xlu0 %5972
  %5974 = vrot.lane.b32.xlu0 %v5876, 64
  %v5975 = vpop.permute.xlu0 %5974
  %5976 = vrot.lane.b32.xlu0 %v5877, 64
  %v5977 = vpop.permute.xlu0 %5976
  %5978 = vrot.lane.b32.xlu0 %v5878, 64
  %v5979 = vpop.permute.xlu0 %5978
  %5980 = vrot.lane.b32.xlu0 %v5879, 64
  %v5981 = vpop.permute.xlu0 %5980
  %5982 = vrot.lane.b32.xlu0 %v5880, 64
  %v5983 = vpop.permute.xlu0 %5982
  %5984 = vrot.lane.b32.xlu0 %v5881, 64
  %v5985 = vpop.permute.xlu0 %5984
  %5986 = vrot.lane.b32.xlu0 %v5882, 64
  %v5987 = vpop.permute.xlu0 %5986
  %5988 = vrot.lane.b32.xlu0 %v5883, 64
  %v5989 = vpop.permute.xlu0 %5988
  %5990 = vrot.lane.b32.xlu0 %v5884, 64
  %v5991 = vpop.permute.xlu0 %5990
  %5992 = vrot.lane.b32.xlu0 %v5885, 64
  %v5993 = vpop.permute.xlu0 %5992
  %5994 = vrot.lane.b32.xlu0 %v5886, 64
  %v5995 = vpop.permute.xlu0 %5994
  %5996 = vrot.lane.b32.xlu0 %v5887, 64
  %v5997 = vpop.permute.xlu0 %5996
  %5998 = vrot.lane.b32.xlu0 %v5888, 64
  %v5999 = vpop.permute.xlu0 %5998
  %6000 = vrot.lane.b32.xlu0 %v5889, 64
  %v6001 = vpop.permute.xlu0 %6000
  %v6018 = vsel %vm4147, %v5826, %v5907
  %v6019 = vsel %vm4147, %v5827, %v5909
  %v6020 = vsel %vm4147, %v5828, %v5911
  %v6021 = vsel %vm4147, %v5829, %v5913
  %v6022 = vsel %vm4147, %v5830, %v5915
  %v6023 = vsel %vm4147, %v5831, %v5917
  %v6024 = vsel %vm4147, %v5832, %v5919
  %v6025 = vsel %vm4147, %v5833, %v5921
  %v6026 = vsel %vm4147, %v5834, %v5923
  %v6027 = vsel %vm4147, %v5835, %v5925
  %v6028 = vsel %vm4147, %v5836, %v5927
  %v6029 = vsel %vm4147, %v5837, %v5929
  %v6030 = vsel %vm4147, %v5838, %v5931
  %v6031 = vsel %vm4147, %v5839, %v5933
  %v6032 = vsel %vm4147, %v5840, %v5935
  %v6033 = vsel %vm4147, %v5841, %v5937
  %v6034 = vsel %vm4147, %v5858, %v5971
  %v6035 = vsel %vm4147, %v5859, %v5973
  %v6036 = vsel %vm4147, %v5860, %v5975
  %v6037 = vsel %vm4147, %v5861, %v5977
  %v6038 = vsel %vm4147, %v5862, %v5979
  %v6039 = vsel %vm4147, %v5863, %v5981
  %v6040 = vsel %vm4147, %v5864, %v5983
  %v6041 = vsel %vm4147, %v5865, %v5985
  %v6042 = vsel %vm4147, %v5866, %v5987
  %v6043 = vsel %vm4147, %v5867, %v5989
  %v6044 = vsel %vm4147, %v5868, %v5991
  %v6045 = vsel %vm4147, %v5869, %v5993
  %v6046 = vsel %vm4147, %v5870, %v5995
  %v6047 = vsel %vm4147, %v5871, %v5997
  %v6048 = vsel %vm4147, %v5872, %v5999
  %v6049 = vsel %vm4147, %v5873, %v6001
  %v6050 = vpack.c.bf16 %v6019, %v6018
  %v6051 = vpack.c.bf16 %v6035, %v6034
  %v6052 = vpack.c.bf16 %v6021, %v6020
  %v6053 = vpack.c.bf16 %v6037, %v6036
  %v6054 = vpack.c.bf16 %v6023, %v6022
  %v6055 = vpack.c.bf16 %v6039, %v6038
  %v6056 = vpack.c.bf16 %v6025, %v6024
  %v6057 = vpack.c.bf16 %v6041, %v6040
  %v6058 = vpack.c.bf16 %v6027, %v6026
  %v6059 = vpack.c.bf16 %v6043, %v6042
  %v6060 = vpack.c.bf16 %v6029, %v6028
  %v6061 = vpack.c.bf16 %v6045, %v6044
  %v6062 = vpack.c.bf16 %v6031, %v6030
  %v6063 = vpack.c.bf16 %v6047, %v6046
  %v6064 = vpack.c.bf16 %v6033, %v6032
  %v6065 = vpack.c.bf16 %v6049, %v6048
  %s6066 = scalar_lea.vmem %s3, 384
  %v6067 = vld [vmem:[%s6066] sm:$0xf]
  %v6068 = vld [vmem:[%s6066 + $0x4] sm:$0xf]
  %v6069 = vld [vmem:[%s6066 + $0x8] sm:$0xf]
  %v6070 = vld [vmem:[%s6066 + $0xc] sm:$0xf]
  %v6071 = vld [vmem:[%s6066 + $0x10] sm:$0xf]
  %v6072 = vld [vmem:[%s6066 + $0x14] sm:$0xf]
  %v6073 = vld [vmem:[%s6066 + $0x18] sm:$0xf]
  %v6074 = vld [vmem:[%s6066 + $0x1c] sm:$0xf]
  %v6075 = vld [vmem:[%s6066 + $0x20] sm:$0xf]
  %v6076 = vld [vmem:[%s6066 + $0x24] sm:$0xf]
  %v6077 = vld [vmem:[%s6066 + $0x28] sm:$0xf]
  %v6078 = vld [vmem:[%s6066 + $0x2c] sm:$0xf]
  %v6079 = vld [vmem:[%s6066 + $0x30] sm:$0xf]
  %v6080 = vld [vmem:[%s6066 + $0x34] sm:$0xf]
  %v6081 = vld [vmem:[%s6066 + $0x38] sm:$0xf]
  %v6082 = vld [vmem:[%s6066 + $0x3c] sm:$0xf]
  %v6083 = vld [vmem:[%s6066 + $0x40] sm:$0xf]
  %v6084 = vld [vmem:[%s6066 + $0x44] sm:$0xf]
  %v6085 = vld [vmem:[%s6066 + $0x48] sm:$0xf]
  %v6086 = vld [vmem:[%s6066 + $0x4c] sm:$0xf]
  %v6087 = vld [vmem:[%s6066 + $0x50] sm:$0xf]
  %v6088 = vld [vmem:[%s6066 + $0x54] sm:$0xf]
  %v6089 = vld [vmem:[%s6066 + $0x58] sm:$0xf]
  %v6090 = vld [vmem:[%s6066 + $0x5c] sm:$0xf]
  %v6091 = vld [vmem:[%s6066 + $0x60] sm:$0xf]
  %v6092 = vld [vmem:[%s6066 + $0x64] sm:$0xf]
  %v6093 = vld [vmem:[%s6066 + $0x68] sm:$0xf]
  %v6094 = vld [vmem:[%s6066 + $0x6c] sm:$0xf]
  %v6095 = vld [vmem:[%s6066 + $0x70] sm:$0xf]
  %v6096 = vld [vmem:[%s6066 + $0x74] sm:$0xf]
  %v6097 = vld [vmem:[%s6066 + $0x78] sm:$0xf]
  %v6098 = vld [vmem:[%s6066 + $0x7c] sm:$0xf]
  %s6099 = scalar_lea.vmem %s4, 384
  %v6100 = vld [vmem:[%s6099] sm:$0xff]
  %v6101 = vld [vmem:[%s6099 + $0x8] sm:$0xff]
  %v6102 = vld [vmem:[%s6099 + $0x10] sm:$0xff]
  %v6103 = vld [vmem:[%s6099 + $0x18] sm:$0xff]
  %v6104 = vld [vmem:[%s6099 + $0x20] sm:$0xff]
  %v6105 = vld [vmem:[%s6099 + $0x28] sm:$0xff]
  %v6106 = vld [vmem:[%s6099 + $0x30] sm:$0xff]
  %v6107 = vld [vmem:[%s6099 + $0x38] sm:$0xff]
  %v6108 = vld [vmem:[%s6099 + $0x40] sm:$0xff]
  %v6109 = vld [vmem:[%s6099 + $0x48] sm:$0xff]
  %v6110 = vld [vmem:[%s6099 + $0x50] sm:$0xff]
  %v6111 = vld [vmem:[%s6099 + $0x58] sm:$0xff]
  %v6112 = vld [vmem:[%s6099 + $0x60] sm:$0xff]
  %v6113 = vld [vmem:[%s6099 + $0x68] sm:$0xff]
  %v6114 = vld [vmem:[%s6099 + $0x70] sm:$0xff]
  %v6115 = vld [vmem:[%s6099 + $0x78] sm:$0xff]
  %v6148 = vunpack.c.l.b16 %v6067
  %v6149 = vunpack.c.l.b16 %v6068
  %v6150 = vunpack.c.l.b16 %v6069
  %v6151 = vunpack.c.l.b16 %v6070
  %v6152 = vunpack.c.l.b16 %v6071
  %v6153 = vunpack.c.l.b16 %v6072
  %v6154 = vunpack.c.l.b16 %v6073
  %v6155 = vunpack.c.l.b16 %v6074
  %v6156 = vunpack.c.l.b16 %v6075
  %v6157 = vunpack.c.l.b16 %v6076
  %v6158 = vunpack.c.l.b16 %v6077
  %v6159 = vunpack.c.l.b16 %v6078
  %v6160 = vunpack.c.l.b16 %v6079
  %v6161 = vunpack.c.l.b16 %v6080
  %v6162 = vunpack.c.l.b16 %v6081
  %v6163 = vunpack.c.l.b16 %v6082
  %v6164 = vunpack.c.l.b16 %v6083
  %v6165 = vunpack.c.l.b16 %v6084
  %v6166 = vunpack.c.l.b16 %v6085
  %v6167 = vunpack.c.l.b16 %v6086
  %v6168 = vunpack.c.l.b16 %v6087
  %v6169 = vunpack.c.l.b16 %v6088
  %v6170 = vunpack.c.l.b16 %v6089
  %v6171 = vunpack.c.l.b16 %v6090
  %v6172 = vunpack.c.l.b16 %v6091
  %v6173 = vunpack.c.l.b16 %v6092
  %v6174 = vunpack.c.l.b16 %v6093
  %v6175 = vunpack.c.l.b16 %v6094
  %v6176 = vunpack.c.l.b16 %v6095
  %v6177 = vunpack.c.l.b16 %v6096
  %v6178 = vunpack.c.l.b16 %v6097
  %v6179 = vunpack.c.l.b16 %v6098
  %v6180 = vpack.c.b16 %v6149, %v6148
  %v6181 = vpack.c.b16 %v6151, %v6150
  %v6182 = vpack.c.b16 %v6153, %v6152
  %v6183 = vpack.c.b16 %v6155, %v6154
  %v6184 = vpack.c.b16 %v6157, %v6156
  %v6185 = vpack.c.b16 %v6159, %v6158
  %v6186 = vpack.c.b16 %v6161, %v6160
  %v6187 = vpack.c.b16 %v6163, %v6162
  %v6188 = vpack.c.b16 %v6165, %v6164
  %v6189 = vpack.c.b16 %v6167, %v6166
  %v6190 = vpack.c.b16 %v6169, %v6168
  %v6191 = vpack.c.b16 %v6171, %v6170
  %v6192 = vpack.c.b16 %v6173, %v6172
  %v6193 = vpack.c.b16 %v6175, %v6174
  %v6194 = vpack.c.b16 %v6177, %v6176
  %v6195 = vpack.c.b16 %v6179, %v6178
  %6212 = vmatprep.subr.bf16.mxu0 0
  %6213 = vmatpush1.bf16.msra.mxu0 %v6180
  %6214 = vmatprep.subr.bf16.mxu0 0
  %6215 = vmatpush1.bf16.msra.mxu0 %v6181
  %6216 = vmatprep.subr.bf16.mxu0 0
  %6217 = vmatpush1.bf16.msra.mxu0 %v6182
  %6218 = vmatprep.subr.bf16.mxu0 0
  %6219 = vmatpush1.bf16.msra.mxu0 %v6183
  %6220 = vmatprep.subr.bf16.mxu0 0
  %6221 = vmatpush1.bf16.msra.mxu0 %v6184
  %6222 = vmatprep.subr.bf16.mxu0 0
  %6223 = vmatpush1.bf16.msra.mxu0 %v6185
  %6224 = vmatprep.subr.bf16.mxu0 0
  %6225 = vmatpush1.bf16.msra.mxu0 %v6186
  %6226 = vmatprep.subr.bf16.mxu0 0
  %6227 = vmatpush1.bf16.msra.mxu0 %v6187
  %6228 = vmatprep.subr.bf16.mxu0 0
  %6229 = vmatpush1.bf16.msra.mxu0 %v6188
  %6230 = vmatprep.subr.bf16.mxu0 0
  %6231 = vmatpush1.bf16.msra.mxu0 %v6189
  %6232 = vmatprep.subr.bf16.mxu0 0
  %6233 = vmatpush1.bf16.msra.mxu0 %v6190
  %6234 = vmatprep.subr.bf16.mxu0 0
  %6235 = vmatpush1.bf16.msra.mxu0 %v6191
  %6236 = vmatprep.subr.bf16.mxu0 0
  %6237 = vmatpush1.bf16.msra.mxu0 %v6192
  %6238 = vmatprep.subr.bf16.mxu0 0
  %6239 = vmatpush1.bf16.msra.mxu0 %v6193
  %6240 = vmatprep.subr.bf16.mxu0 0
  %6241 = vmatpush1.bf16.msra.mxu0 %v6194
  %6242 = vmatprep.subr.bf16.mxu0 0
  %6243 = vmatpush1.bf16.msra.mxu0 %v6195
  %6244 = vmatprep.mubr.bf16.mxu0 %v6051
  %6245 = vmatmul.mubr.bf16.gmra.mrb[0].mxu0 %v6050
  %v6246 = vpop.f32.mrb[0].mxu0
  %v6247 = vadd.f32 %v6100, %v6246
  %v6248 = vpop.f32.mrb[0].mxu0
  %v6249 = vpop.f32.mrb[0].mxu0
  %v6250 = vadd.f32 %v6101, %v6249
  %v6251 = vpop.f32.mrb[0].mxu0
  %6252 = vmatprep.mubr.bf16.mxu0 %v6053
  %6253 = vmatmul.mubr.bf16.gmra.mrb[0].mxu0 %v6052
  %v6254 = vpop.f32.mrb[0].mxu0
  %v6255 = vadd.f32 %v6102, %v6254
  %v6256 = vpop.f32.mrb[0].mxu0
  %v6257 = vpop.f32.mrb[0].mxu0
  %v6258 = vadd.f32 %v6103, %v6257
  %v6259 = vpop.f32.mrb[0].mxu0
  %6260 = vmatprep.mubr.bf16.mxu0 %v6055
  %6261 = vmatmul.mubr.bf16.gmra.mrb[0].mxu0 %v6054
  %v6262 = vpop.f32.mrb[0].mxu0
  %v6263 = vadd.f32 %v6104, %v6262
  %v6264 = vpop.f32.mrb[0].mxu0
  %v6265 = vpop.f32.mrb[0].mxu0
  %v6266 = vadd.f32 %v6105, %v6265
  %v6267 = vpop.f32.mrb[0].mxu0
  %6268 = vmatprep.mubr.bf16.mxu0 %v6057
  %6269 = vmatmul.mubr.bf16.gmra.mrb[0].mxu0 %v6056
  %v6270 = vpop.f32.mrb[0].mxu0
  %v6271 = vadd.f32 %v6106, %v6270
  %v6272 = vpop.f32.mrb[0].mxu0
  %v6273 = vpop.f32.mrb[0].mxu0
  %v6274 = vadd.f32 %v6107, %v6273
  %v6275 = vpop.f32.mrb[0].mxu0
  %6276 = vmatprep.mubr.bf16.mxu0 %v6059
  %6277 = vmatmul.mubr.bf16.gmra.mrb[0].mxu0 %v6058
  %v6278 = vpop.f32.mrb[0].mxu0
  %v6279 = vadd.f32 %v6108, %v6278
  %v6280 = vpop.f32.mrb[0].mxu0
  %v6281 = vpop.f32.mrb[0].mxu0
  %v6282 = vadd.f32 %v6109, %v6281
  %v6283 = vpop.f32.mrb[0].mxu0
  %6284 = vmatprep.mubr.bf16.mxu0 %v6061
  %6285 = vmatmul.mubr.bf16.gmra.mrb[0].mxu0 %v6060
  %v6286 = vpop.f32.mrb[0].mxu0
  %v6287 = vadd.f32 %v6110, %v6286
  %v6288 = vpop.f32.mrb[0].mxu0
  %v6289 = vpop.f32.mrb[0].mxu0
  %v6290 = vadd.f32 %v6111, %v6289
  %v6291 = vpop.f32.mrb[0].mxu0
  %6292 = vmatprep.mubr.bf16.mxu0 %v6063
  %6293 = vmatmul.mubr.bf16.gmra.mrb[0].mxu0 %v6062
  %v6294 = vpop.f32.mrb[0].mxu0
  %v6295 = vadd.f32 %v6112, %v6294
  %v6296 = vpop.f32.mrb[0].mxu0
  %v6297 = vpop.f32.mrb[0].mxu0
  %v6298 = vadd.f32 %v6113, %v6297
  %v6299 = vpop.f32.mrb[0].mxu0
  %6300 = vmatprep.mubr.bf16.mxu0 %v6065
  %6301 = vmatmul.mubr.bf16.gmra.mrb[0].mxu0 %v6064
  %v6302 = vpop.f32.mrb[0].mxu0
  %v6303 = vadd.f32 %v6114, %v6302
  %v6304 = vpop.f32.mrb[0].mxu0
  %v6305 = vpop.f32.mrb[0].mxu0
  %v6306 = vadd.f32 %v6115, %v6305
  %v6307 = vpop.f32.mrb[0].mxu0
  %6308 = vdwg.mxu0
  %s6309 = scalar_lea.vmem %s5, 384
  %6310 = vst.msk [vmem:[%s6309] sm:$0xff] %vm4808, %v6247
  %6311 = vst.msk [vmem:[%s6309 + $0x8] sm:$0xff] %vm4808, %v6250
  %6312 = vst.msk [vmem:[%s6309 + $0x10] sm:$0xff] %vm4808, %v6255
  %6313 = vst.msk [vmem:[%s6309 + $0x18] sm:$0xff] %vm4808, %v6258
  %6314 = vst.msk [vmem:[%s6309 + $0x20] sm:$0xff] %vm4808, %v6263
  %6315 = vst.msk [vmem:[%s6309 + $0x28] sm:$0xff] %vm4808, %v6266
  %6316 = vst.msk [vmem:[%s6309 + $0x30] sm:$0xff] %vm4808, %v6271
  %6317 = vst.msk [vmem:[%s6309 + $0x38] sm:$0xff] %vm4808, %v6274
  %6318 = vst.msk [vmem:[%s6309 + $0x40] sm:$0xff] %vm4808, %v6279
  %6319 = vst.msk [vmem:[%s6309 + $0x48] sm:$0xff] %vm4808, %v6282
  %6320 = vst.msk [vmem:[%s6309 + $0x50] sm:$0xff] %vm4808, %v6287
  %6321 = vst.msk [vmem:[%s6309 + $0x58] sm:$0xff] %vm4808, %v6290
  %6322 = vst.msk [vmem:[%s6309 + $0x60] sm:$0xff] %vm4808, %v6295
  %6323 = vst.msk [vmem:[%s6309 + $0x68] sm:$0xff] %vm4808, %v6298
  %6324 = vst.msk [vmem:[%s6309 + $0x70] sm:$0xff] %vm4808, %v6303
  %6325 = vst.msk [vmem:[%s6309 + $0x78] sm:$0xff] %vm4808, %v6306
  // Predicated region
  $region22: #{unet_forward.1} parent=0 // pred_check
    _
  $region23: #{unet_forward.1} parent=0 // pred_check_branch
    %6327 = sbr.rel (0) target = $region25
  $region24: #{unet_forward.1} parent=0 // pred_region
    _
  $region25: #{unet_forward.1} parent=0 // pred_fallthru
    _
  // Predicated region
  $region26: #{unet_forward.1} parent=0 // pred_check
    _
  $region27: #{unet_forward.1} parent=0 // pred_check_branch
    %6329 = sbr.rel (0) target = $region29
  $region28: #{unet_forward.1} parent=0 // pred_region
    _
  $region29: #{unet_forward.1} parent=0 // pred_fallthru
    _

</llo_original>
